<compile_context>
chip_gen: v6e
topology: v6e:2x2x1
jax: 0.10.0
libtpu: 0.0.40
codegen_flags: <defaults>
</compile_context>

<pallas_src>
import jax
import jax.numpy as jnp
from jax import lax
from jax.experimental import pallas as pl
from jax.experimental.pallas import tpu as pltpu

EPS = 1e-5


# ---------------------------------------------------------------------------
# Fused kernel factory (static shapes captured by closure).
# ---------------------------------------------------------------------------
def _make_decoder_kernel(N, H, W):
    HW = H * W
    taps = [(dy, dx) for dy in (-1, 0, 1) for dx in (-1, 0, 1)]

    def _shift_lanes(v, d):
        # result[:, p] = v[:, (p + d) % HW]; wrapped reads are zeroed by the
        # caller's edge mask.  Static slices along the lane axis.
        # TODO(synk): use pltpu.roll (XLU slot) when spatially tiling for
        # production sizes.
        d = d % HW
        if d == 0:
            return v
        return jnp.concatenate([v[:, d:], v[:, :d]], axis=1)

    def kernel(up_ref, x_ref, w1u_ref, w1x_ref, upmat_ref, dwk_ref, mask_ref,
               w3_ref, bn1_ref, bn2_ref, bn3_ref, out_ref):
        inv_cnt = 1.0 / float(N * HW)

        w1u = w1u_ref[...]          # (Ch, Cu)  bf16
        w1x = w1x_ref[...]          # (Ch, Cx)  bf16
        upmat = upmat_ref[...]      # (HuWu, HW) f32
        dwk = dwk_ref[...]          # (Ch, 9)   f32
        w3 = w3_ref[...]            # (Cout, Ch) bf16

        # ---- stage 1: 1x1 expansion conv (low-res, bf16 MXU) -> bilinear 2x
        #      upsample (one f32 matmul) + x-branch 1x1 conv.  Concat elided.
        t1 = []
        for n in range(N):
            a_lo = jnp.dot(w1u, up_ref[n].astype(jnp.bfloat16),
                           preferred_element_type=jnp.float32)         # (Ch, HuWu)
            a_up = jnp.dot(a_lo, upmat,
                           preferred_element_type=jnp.float32)         # (Ch, HW)
            xb = jnp.dot(w1x, x_ref[n].astype(jnp.bfloat16),
                         preferred_element_type=jnp.float32)           # (Ch, HW)
            t1.append(a_up + xb)

        # BN1 (training-mode batch stats, two-pass variance) + ReLU6
        mean1 = sum(jnp.sum(t, axis=1, keepdims=True) for t in t1) * inv_cnt
        var1 = sum(jnp.sum((t - mean1) * (t - mean1), axis=1, keepdims=True)
                   for t in t1) * inv_cnt
        sc1 = bn1_ref[0] * lax.rsqrt(var1 + EPS)
        sh1 = bn1_ref[1] - mean1 * sc1
        y1 = [jnp.clip(t * sc1 + sh1, 0.0, 6.0) for t in t1]

        # ---- stage 2: 3x3 depthwise conv (pad=1) via lane shifts + edge masks
        t2 = []
        for n in range(N):
            acc = jnp.zeros_like(y1[n])
            for t_idx, (dy, dx) in enumerate(taps):
                v = _shift_lanes(y1[n], dy * W + dx)                   # (Ch, HW)
                acc = acc + v * mask_ref[t_idx] * dwk[:, t_idx:t_idx + 1]
            t2.append(acc)

        # BN2 + ReLU6
        mean2 = sum(jnp.sum(t, axis=1, keepdims=True) for t in t2) * inv_cnt
        var2 = sum(jnp.sum((t - mean2) * (t - mean2), axis=1, keepdims=True)
                   for t in t2) * inv_cnt
        sc2 = bn2_ref[0] * lax.rsqrt(var2 + EPS)
        sh2 = bn2_ref[1] - mean2 * sc2

        # ---- stage 3: 1x1 projection conv (bf16 MXU) -> (Cout, HW)
        t3 = []
        for n in range(N):
            y2 = jnp.clip(t2[n] * sc2 + sh2, 0.0, 6.0)
            t3.append(jnp.dot(w3, y2.astype(jnp.bfloat16),
                              preferred_element_type=jnp.float32))

        # BN3 (affine only, no activation; no residual since Cin != Cout)
        mean3 = sum(jnp.sum(t, axis=1, keepdims=True) for t in t3) * inv_cnt
        var3 = sum(jnp.sum((t - mean3) * (t - mean3), axis=1, keepdims=True)
                   for t in t3) * inv_cnt
        sc3 = bn3_ref[0] * lax.rsqrt(var3 + EPS)
        sh3 = bn3_ref[1] - mean3 * sc3

        for n in range(N):
            out_ref[n] = t3[n] * sc3 + sh3

    return kernel


# ---------------------------------------------------------------------------
# Wrapper-side constant builders (exact, computed once).
# ---------------------------------------------------------------------------
def _bilinear_matrix(in_size):
    """(2*in_size, in_size) 1-D bilinear 2x upsample, align_corners=False."""
    out_size = 2 * in_size
    o = jnp.arange(out_size, dtype=jnp.float32)
    src = jnp.maximum((o + 0.5) / 2.0 - 0.5, 0.0)
    lo = jnp.clip(jnp.floor(src).astype(jnp.int32), 0, in_size - 1)
    hi = jnp.minimum(lo + 1, in_size - 1)
    frac = src - lo.astype(jnp.float32)
    u = jnp.zeros((out_size, in_size), jnp.float32)
    u = u.at[jnp.arange(out_size), lo].add(1.0 - frac)
    u = u.at[jnp.arange(out_size), hi].add(frac)
    return u


def _dw_edge_masks(H, W):
    """(9, 1, H*W) f32 validity masks for the 3x3 taps (pad=1), tap order
    matching dw.reshape(Ch, 9): t = (dy+1)*3 + (dx+1)."""
    p = jnp.arange(H * W, dtype=jnp.int32)
    hh, ww = p // W, p % W
    ms = []
    for dy in (-1, 0, 1):
        for dx in (-1, 0, 1):
            ok = ((hh + dy >= 0) & (hh + dy < H) &
                  (ww + dx >= 0) & (ww + dx < W))
            ms.append(ok.astype(jnp.float32))
    return jnp.stack(ms).reshape(9, 1, H * W)


def decoder_block_pallas(up_in, x_in, params):
    """up_in: (N, Cu, Hu, Wu), x_in: (N, Cx, 2Hu, 2Wu) -> (N, (Cu+Cx)//2, 2Hu, 2Wu)."""
    w1, g1, b1, dw, g2, b2, w3, g3, b3 = params
    N, Cu, Hu, Wu = up_in.shape
    _, Cx, H, W = x_in.shape
    Cin = Cu + Cx
    Ch = w1.shape[0]
    Cout = w3.shape[0]
    HuWu, HW = Hu * Wu, H * W

    # NCHW consumed directly: (N, C, H, W) -> (N, C, H*W) is a free reshape.
    # Channels sit on sublanes, flattened spatial on the 128-lane axis.
    up_flat = up_in.reshape(N, Cu, HuWu).astype(jnp.float32)
    x_flat = x_in.reshape(N, Cx, HW).astype(jnp.float32)

    # 1x1-conv weights as (Cout_conv, Cin_conv) bf16 matrices; conv1 split so
    # the channel concat never materializes.
    w1_mat = w1.reshape(Ch, Cin)
    w1u = w1_mat[:, :Cu].astype(jnp.bfloat16)                   # (Ch, Cu)
    w1x = w1_mat[:, Cu:].astype(jnp.bfloat16)                   # (Ch, Cx)
    w3_mat = w3.reshape(Cout, Ch).astype(jnp.bfloat16)          # (Cout, Ch)
    dwk = dw.reshape(Ch, 9).astype(jnp.float32)                 # (Ch, 9)

    # Exact separable bilinear 2x upsample as one flattened-spatial matmul.
    upmat = jnp.kron(_bilinear_matrix(Hu), _bilinear_matrix(Wu)).T  # (HuWu, HW)

    masks = _dw_edge_masks(H, W)                                # (9, 1, HW)
    bn1 = jnp.stack([g1, b1]).reshape(2, Ch, 1).astype(jnp.float32)
    bn2 = jnp.stack([g2, b2]).reshape(2, Ch, 1).astype(jnp.float32)
    bn3 = jnp.stack([g3, b3]).reshape(2, Cout, 1).astype(jnp.float32)

    kernel = _make_decoder_kernel(N, H, W)

    def full(shape):
        return pl.BlockSpec(shape, lambda i, _s=shape: (0,) * len(_s))

    out_flat = pl.pallas_call(
        kernel,
        out_shape=jax.ShapeDtypeStruct((N, Cout, HW), jnp.float32),
        grid=(1,),
        in_specs=[
            full((N, Cu, HuWu)),      # up (low-res)
            full((N, Cx, HW)),        # x (skip connection)
            full((Ch, Cu)),           # w1 up-branch
            full((Ch, Cx)),           # w1 x-branch
            full((HuWu, HW)),         # bilinear interpolation matrix
            full((Ch, 9)),            # depthwise taps
            full((9, 1, HW)),         # depthwise edge masks
            full((Cout, Ch)),         # w3
            full((2, Ch, 1)),         # BN1 gamma/beta
            full((2, Ch, 1)),         # BN2 gamma/beta
            full((2, Cout, 1)),       # BN3 gamma/beta
        ],
        out_specs=full((N, Cout, HW)),
        compiler_params=pltpu.CompilerParams(
            dimension_semantics=("arbitrary",),
            vmem_limit_bytes=64 * 1024 * 1024),
    )(up_flat, x_flat, w1u, w1x, upmat, dwk, masks, w3_mat, bn1, bn2, bn3)

    # Free reshape back to NCHW (no transpose anywhere).
    return out_flat.reshape(N, Cout, H, W)


# ---------------------------------------------------------------------------
# Pure-JAX reference (NCHW), mirroring the PyTorch training-mode forward.
# ---------------------------------------------------------------------------
def _bilinear_up2x_ref(x):
    N, C, H, W = x.shape

    def idx(out_size, in_size):
        o = jnp.arange(out_size, dtype=jnp.float32)
        src = jnp.maximum((o + 0.5) / 2.0 - 0.5, 0.0)
        lo = jnp.clip(jnp.floor(src).astype(jnp.int32), 0, in_size - 1)
        hi = jnp.minimum(lo + 1, in_size - 1)
        frac = src - lo.astype(jnp.float32)
        return lo, hi, frac

    hl, hh, hf = idx(2 * H, H)
    wl, wh, wf = idx(2 * W, W)
    xh = (x[:, :, hl, :] * (1.0 - hf)[None, None, :, None]
          + x[:, :, hh, :] * hf[None, None, :, None])
    return (xh[:, :, :, wl] * (1.0 - wf)[None, None, None, :]
            + xh[:, :, :, wh] * wf[None, None, None, :])


def _bn_train_ref(y, gamma, beta):
    mean = jnp.mean(y, axis=(0, 2, 3), keepdims=True)
    var = jnp.mean((y - mean) ** 2, axis=(0, 2, 3), keepdims=True)
    y = (y - mean) * lax.rsqrt(var + EPS)
    return y * gamma[None, :, None, None] + beta[None, :, None, None]


def decoder_block_reference(up_in, x_in, params):
    w1, g1, b1, dw, g2, b2, w3, g3, b3 = params
    dn = ('NCHW', 'OIHW', 'NCHW')
    hp = lax.Precision.HIGHEST
    cat = jnp.concatenate([_bilinear_up2x_ref(up_in), x_in], axis=1)
    y = lax.conv_general_dilated(cat, w1, (1, 1), ((0, 0), (0, 0)),
                                 dimension_numbers=dn, precision=hp)
    y = jnp.clip(_bn_train_ref(y, g1, b1), 0.0, 6.0)
    y = lax.conv_general_dilated(y, dw, (1, 1), ((1, 1), (1, 1)),
                                 dimension_numbers=dn,
                                 feature_group_count=dw.shape[0], precision=hp)
    y = jnp.clip(_bn_train_ref(y, g2, b2), 0.0, 6.0)
    y = lax.conv_general_dilated(y, w3, (1, 1), ((0, 0), (0, 0)),
                                 dimension_numbers=dn, precision=hp)
    return _bn_train_ref(y, g3, b3)


if __name__ == "__main__":
    key = jax.random.PRNGKey(0)
    ks = jax.random.split(key, 11)

    # DecoderBlock(up_in_c=64, x_in_c=64, expand_ratio=0.15):
    #   Cin = 128, hidden = round(128 * 0.15) = 19, Cout = 64; H*W = 256.
    N, Cu, Cx = 2, 64, 64
    Hu = Wu = 8
    H, W = 2 * Hu, 2 * Wu
    Cin = Cu + Cx
    Ch = int(round(Cin * 0.15))
    Cout = Cin // 2

    up_in = jax.random.normal(ks[0], (N, Cu, Hu, Wu), jnp.float32)
    x_in = jax.random.normal(ks[1], (N, Cx, H, W), jnp.float32)

    # Synthetic parameters in PyTorch shapes (all convs bias-free, per module).
    w1 = 0.3 * jax.random.normal(ks[2], (Ch, Cin, 1, 1), jnp.float32)
    dw = 0.3 * jax.random.normal(ks[3], (Ch, 1, 3, 3), jnp.float32)
    w3 = 0.3 * jax.random.normal(ks[4], (Cout, Ch, 1, 1), jnp.float32)
    g1 = 1.0 + 0.1 * jax.random.normal(ks[5], (Ch,), jnp.float32)
    b1 = 0.1 * jax.random.normal(ks[6], (Ch,), jnp.float32)
    g2 = 1.0 + 0.1 * jax.random.normal(ks[7], (Ch,), jnp.float32)
    b2 = 0.1 * jax.random.normal(ks[8], (Ch,), jnp.float32)
    g3 = 1.0 + 0.1 * jax.random.normal(ks[9], (Cout,), jnp.float32)
    b3 = 0.1 * jax.random.normal(ks[10], (Cout,), jnp.float32)
    params = (w1, g1, b1, dw, g2, b2, w3, g3, b3)

    out = jax.block_until_ready(jax.jit(decoder_block_pallas)(up_in, x_in, params))
    ref = decoder_block_reference(up_in, x_in, params)

    assert out.shape == (N, Cout, H, W), out.shape
    max_err = float(jnp.max(jnp.abs(out - ref)))
    # Tolerance reflects bf16 MXU operands for the two 1x1 convs.
    assert jnp.allclose(out, ref, atol=5e-2, rtol=5e-2), f"max abs diff = {max_err}"

    print("KERNEL_OK")
</pallas_src>

<mosaic_0001>
module attributes {stable_mosaic.version = 11 : i64} {
  func.func private @main(%arg0: i32) attributes {dimension_semantics = [#tpu.dimension_semantics<core_parallel>], iteration_bounds = array<i64: 2>, tpu.core_type = #tpu.core_type<sc_scalar_subcore>, window_params = []} {
    return
  }
}

module attributes {stable_mosaic.version = 11 : i64} {
  func.func private @main(%arg0: i32) attributes {dimension_semantics = [#tpu.dimension_semantics<core_parallel>], iteration_bounds = array<i64: 2>, tpu.core_type = #tpu.core_type<sc_scalar_subcore>, window_params = []} {
    return
  }
}

module attributes {stable_mosaic.version = 11 : i64} {
  func.func @kernel(%arg0: i32, %arg1: memref<2x64x64xf32, #tpu.memory_space<vmem>>, %arg2: memref<2x64x256xf32, #tpu.memory_space<vmem>>, %arg3: memref<19x64xbf16, #tpu.memory_space<vmem>>, %arg4: memref<19x64xbf16, #tpu.memory_space<vmem>>, %arg5: memref<64x256xf32, #tpu.memory_space<vmem>>, %arg6: memref<19x9xf32, #tpu.memory_space<vmem>>, %arg7: memref<9x1x256xf32, #tpu.memory_space<vmem>>, %arg8: memref<64x19xbf16, #tpu.memory_space<vmem>>, %arg9: memref<2x19x1xf32, #tpu.memory_space<vmem>>, %arg10: memref<2x19x1xf32, #tpu.memory_space<vmem>>, %arg11: memref<2x64x1xf32, #tpu.memory_space<vmem>>, %arg12: memref<2x64x256xf32, #tpu.memory_space<vmem>>) attributes {dimension_semantics = [#tpu.dimension_semantics<arbitrary>], iteration_bounds = array<i64: 1>, scalar_prefetch = 0 : i64, scratch_operands = 0 : i64, tpu.core_type = #tpu.core_type<tc>, window_params = [{pipeline_mode = #tpu.pipeline_mode<synchronous>, transform_indices = @transform_0, window_bounds = array<i64: 2, 64, 64>}, {pipeline_mode = #tpu.pipeline_mode<synchronous>, transform_indices = @transform_1, window_bounds = array<i64: 2, 64, 256>}, {pipeline_mode = #tpu.pipeline_mode<synchronous>, transform_indices = @transform_2, window_bounds = array<i64: 19, 64>}, {pipeline_mode = #tpu.pipeline_mode<synchronous>, transform_indices = @transform_3, window_bounds = array<i64: 19, 64>}, {pipeline_mode = #tpu.pipeline_mode<synchronous>, transform_indices = @transform_4, window_bounds = array<i64: 64, 256>}, {pipeline_mode = #tpu.pipeline_mode<synchronous>, transform_indices = @transform_5, window_bounds = array<i64: 19, 9>}, {pipeline_mode = #tpu.pipeline_mode<synchronous>, transform_indices = @transform_6, window_bounds = array<i64: 9, 1, 256>}, {pipeline_mode = #tpu.pipeline_mode<synchronous>, transform_indices = @transform_7, window_bounds = array<i64: 64, 19>}, {pipeline_mode = #tpu.pipeline_mode<synchronous>, transform_indices = @transform_8, window_bounds = array<i64: 2, 19, 1>}, {pipeline_mode = #tpu.pipeline_mode<synchronous>, transform_indices = @transform_9, window_bounds = array<i64: 2, 19, 1>}, {pipeline_mode = #tpu.pipeline_mode<synchronous>, transform_indices = @transform_10, window_bounds = array<i64: 2, 64, 1>}, {pipeline_mode = #tpu.pipeline_mode<synchronous>, transform_indices = @transform_11, window_bounds = array<i64: 2, 64, 256>}]} {
    %c0 = arith.constant 0 : index
    %c0_0 = arith.constant 0 : index
    %0 = vector.load %arg3[%c0, %c0_0] : memref<19x64xbf16, #tpu.memory_space<vmem>>, vector<19x64xbf16>
    %c0_1 = arith.constant 0 : index
    %c0_2 = arith.constant 0 : index
    %1 = vector.load %arg4[%c0_1, %c0_2] : memref<19x64xbf16, #tpu.memory_space<vmem>>, vector<19x64xbf16>
    %c0_3 = arith.constant 0 : index
    %c0_4 = arith.constant 0 : index
    %2 = vector.load %arg5[%c0_3, %c0_4] : memref<64x256xf32, #tpu.memory_space<vmem>>, vector<64x256xf32>
    %c0_5 = arith.constant 0 : index
    %c0_6 = arith.constant 0 : index
    %3 = vector.load %arg6[%c0_5, %c0_6] : memref<19x9xf32, #tpu.memory_space<vmem>>, vector<19x9xf32>
    %c0_7 = arith.constant 0 : index
    %c0_8 = arith.constant 0 : index
    %4 = vector.load %arg8[%c0_7, %c0_8] : memref<64x19xbf16, #tpu.memory_space<vmem>>, vector<64x19xbf16>
    %c0_9 = arith.constant 0 : index
    %c0_10 = arith.constant 0 : index
    %c0_11 = arith.constant 0 : index
    %5 = vector.load %arg1[%c0_9, %c0_10, %c0_11] : memref<2x64x64xf32, #tpu.memory_space<vmem>>, vector<1x64x64xf32>
    %6 = vector.shape_cast %5 : vector<1x64x64xf32> to vector<64x64xf32>
    %7 = arith.truncf %6 : vector<64x64xf32> to vector<64x64xbf16>
    %cst = arith.constant dense<0.000000e+00> : vector<19x64xf32>
    %8 = tpu.matmul %0, %7, %cst {dimension_numbers = #tpu.dot_dimension_numbers<[1], [0], [0], [1], [0, 0, 1, 1], [], []>} : vector<19x64xbf16>, vector<64x64xbf16>, vector<19x64xf32> -> vector<19x64xf32>
    %cst_12 = arith.constant dense<0.000000e+00> : vector<19x256xf32>
    %9 = tpu.matmul %8, %2, %cst_12 {dimension_numbers = #tpu.dot_dimension_numbers<[1], [0], [0], [1], [0, 0, 1, 1], [], []>} : vector<19x64xf32>, vector<64x256xf32>, vector<19x256xf32> -> vector<19x256xf32>
    %c0_13 = arith.constant 0 : index
    %c0_14 = arith.constant 0 : index
    %c0_15 = arith.constant 0 : index
    %10 = vector.load %arg2[%c0_13, %c0_14, %c0_15] : memref<2x64x256xf32, #tpu.memory_space<vmem>>, vector<1x64x256xf32>
    %11 = vector.shape_cast %10 : vector<1x64x256xf32> to vector<64x256xf32>
    %12 = arith.truncf %11 : vector<64x256xf32> to vector<64x256xbf16>
    %cst_16 = arith.constant dense<0.000000e+00> : vector<19x256xf32>
    %13 = tpu.matmul %1, %12, %cst_16 {dimension_numbers = #tpu.dot_dimension_numbers<[1], [0], [0], [1], [0, 0, 1, 1], [], []>} : vector<19x64xbf16>, vector<64x256xbf16>, vector<19x256xf32> -> vector<19x256xf32>
    %14 = arith.addf %9, %13 : vector<19x256xf32>
    %c1 = arith.constant 1 : index
    %c0_17 = arith.constant 0 : index
    %c0_18 = arith.constant 0 : index
    %15 = vector.load %arg1[%c1, %c0_17, %c0_18] : memref<2x64x64xf32, #tpu.memory_space<vmem>>, vector<1x64x64xf32>
    %16 = vector.shape_cast %15 : vector<1x64x64xf32> to vector<64x64xf32>
    %17 = arith.truncf %16 : vector<64x64xf32> to vector<64x64xbf16>
    %cst_19 = arith.constant dense<0.000000e+00> : vector<19x64xf32>
    %18 = tpu.matmul %0, %17, %cst_19 {dimension_numbers = #tpu.dot_dimension_numbers<[1], [0], [0], [1], [0, 0, 1, 1], [], []>} : vector<19x64xbf16>, vector<64x64xbf16>, vector<19x64xf32> -> vector<19x64xf32>
    %cst_20 = arith.constant dense<0.000000e+00> : vector<19x256xf32>
    %19 = tpu.matmul %18, %2, %cst_20 {dimension_numbers = #tpu.dot_dimension_numbers<[1], [0], [0], [1], [0, 0, 1, 1], [], []>} : vector<19x64xf32>, vector<64x256xf32>, vector<19x256xf32> -> vector<19x256xf32>
    %c1_21 = arith.constant 1 : index
    %c0_22 = arith.constant 0 : index
    %c0_23 = arith.constant 0 : index
    %20 = vector.load %arg2[%c1_21, %c0_22, %c0_23] : memref<2x64x256xf32, #tpu.memory_space<vmem>>, vector<1x64x256xf32>
    %21 = vector.shape_cast %20 : vector<1x64x256xf32> to vector<64x256xf32>
    %22 = arith.truncf %21 : vector<64x256xf32> to vector<64x256xbf16>
    %cst_24 = arith.constant dense<0.000000e+00> : vector<19x256xf32>
    %23 = tpu.matmul %1, %22, %cst_24 {dimension_numbers = #tpu.dot_dimension_numbers<[1], [0], [0], [1], [0, 0, 1, 1], [], []>} : vector<19x64xbf16>, vector<64x256xbf16>, vector<19x256xf32> -> vector<19x256xf32>
    %24 = arith.addf %19, %23 : vector<19x256xf32>
    %cst_25 = arith.constant dense<0.000000e+00> : vector<19xf32>
    %25 = vector.multi_reduction <add>, %14, %cst_25 [1] : vector<19x256xf32> to vector<19xf32>
    %26 = vector.shape_cast %25 : vector<19xf32> to vector<19x1xf32>
    %cst_26 = arith.constant 0.000000e+00 : f32
    %27 = vector.broadcast %cst_26 : f32 to vector<19x1xf32>
    %28 = arith.addf %27, %26 : vector<19x1xf32>
    %cst_27 = arith.constant dense<0.000000e+00> : vector<19xf32>
    %29 = vector.multi_reduction <add>, %24, %cst_27 [1] : vector<19x256xf32> to vector<19xf32>
    %30 = vector.shape_cast %29 : vector<19xf32> to vector<19x1xf32>
    %31 = arith.addf %28, %30 : vector<19x1xf32>
    %cst_28 = arith.constant 0.001953125 : f32
    %32 = vector.broadcast %cst_28 : f32 to vector<19x1xf32>
    %33 = arith.mulf %31, %32 : vector<19x1xf32>
    %34 = vector.broadcast %33 : vector<19x1xf32> to vector<19x256xf32>
    %35 = arith.subf %14, %34 : vector<19x256xf32>
    %36 = vector.broadcast %33 : vector<19x1xf32> to vector<19x256xf32>
    %37 = arith.subf %14, %36 : vector<19x256xf32>
    %38 = arith.mulf %35, %37 : vector<19x256xf32>
    %cst_29 = arith.constant dense<0.000000e+00> : vector<19xf32>
    %39 = vector.multi_reduction <add>, %38, %cst_29 [1] : vector<19x256xf32> to vector<19xf32>
    %40 = vector.shape_cast %39 : vector<19xf32> to vector<19x1xf32>
    %cst_30 = arith.constant 0.000000e+00 : f32
    %41 = vector.broadcast %cst_30 : f32 to vector<19x1xf32>
    %42 = arith.addf %41, %40 : vector<19x1xf32>
    %43 = vector.broadcast %33 : vector<19x1xf32> to vector<19x256xf32>
    %44 = arith.subf %24, %43 : vector<19x256xf32>
    %45 = vector.broadcast %33 : vector<19x1xf32> to vector<19x256xf32>
    %46 = arith.subf %24, %45 : vector<19x256xf32>
    %47 = arith.mulf %44, %46 : vector<19x256xf32>
    %cst_31 = arith.constant dense<0.000000e+00> : vector<19xf32>
    %48 = vector.multi_reduction <add>, %47, %cst_31 [1] : vector<19x256xf32> to vector<19xf32>
    %49 = vector.shape_cast %48 : vector<19xf32> to vector<19x1xf32>
    %50 = arith.addf %42, %49 : vector<19x1xf32>
    %cst_32 = arith.constant 0.001953125 : f32
    %51 = vector.broadcast %cst_32 : f32 to vector<19x1xf32>
    %52 = arith.mulf %50, %51 : vector<19x1xf32>
    %c0_33 = arith.constant 0 : index
    %c0_34 = arith.constant 0 : index
    %c0_35 = arith.constant 0 : index
    %53 = vector.load %arg9[%c0_33, %c0_34, %c0_35] : memref<2x19x1xf32, #tpu.memory_space<vmem>>, vector<1x19x1xf32>
    %54 = vector.shape_cast %53 : vector<1x19x1xf32> to vector<19x1xf32>
    %cst_36 = arith.constant 9.99999974E-6 : f32
    %55 = vector.broadcast %cst_36 : f32 to vector<19x1xf32>
    %56 = arith.addf %52, %55 : vector<19x1xf32>
    %57 = math.rsqrt %56 : vector<19x1xf32>
    %58 = arith.mulf %54, %57 : vector<19x1xf32>
    %c1_37 = arith.constant 1 : index
    %c0_38 = arith.constant 0 : index
    %c0_39 = arith.constant 0 : index
    %59 = vector.load %arg9[%c1_37, %c0_38, %c0_39] : memref<2x19x1xf32, #tpu.memory_space<vmem>>, vector<1x19x1xf32>
    %60 = vector.shape_cast %59 : vector<1x19x1xf32> to vector<19x1xf32>
    %61 = arith.mulf %33, %58 : vector<19x1xf32>
    %62 = arith.subf %60, %61 : vector<19x1xf32>
    %63 = vector.broadcast %58 : vector<19x1xf32> to vector<19x256xf32>
    %64 = arith.mulf %14, %63 : vector<19x256xf32>
    %65 = vector.broadcast %62 : vector<19x1xf32> to vector<19x256xf32>
    %66 = arith.addf %64, %65 : vector<19x256xf32>
    %cst_40 = arith.constant 0.000000e+00 : f32
    %cst_41 = arith.constant 6.000000e+00 : f32
    %67 = vector.broadcast %cst_40 : f32 to vector<19x256xf32>
    %68 = arith.maximumf %67, %66 : vector<19x256xf32>
    %69 = vector.broadcast %cst_41 : f32 to vector<19x256xf32>
    %70 = arith.minimumf %69, %68 : vector<19x256xf32>
    %71 = vector.broadcast %58 : vector<19x1xf32> to vector<19x256xf32>
    %72 = arith.mulf %24, %71 : vector<19x256xf32>
    %73 = vector.broadcast %62 : vector<19x1xf32> to vector<19x256xf32>
    %74 = arith.addf %72, %73 : vector<19x256xf32>
    %cst_42 = arith.constant 0.000000e+00 : f32
    %cst_43 = arith.constant 6.000000e+00 : f32
    %75 = vector.broadcast %cst_42 : f32 to vector<19x256xf32>
    %76 = arith.maximumf %75, %74 : vector<19x256xf32>
    %77 = vector.broadcast %cst_43 : f32 to vector<19x256xf32>
    %78 = arith.minimumf %77, %76 : vector<19x256xf32>
    %cst_44 = arith.constant 0.000000e+00 : f32
    %79 = vector.broadcast %cst_44 : f32 to vector<19x256xf32>
    %80 = vector.extract_strided_slice %70 {offsets = [0, 239], sizes = [19, 17], strides = [1, 1]} : vector<19x256xf32> to vector<19x17xf32>
    %81 = vector.extract_strided_slice %70 {offsets = [0, 0], sizes = [19, 239], strides = [1, 1]} : vector<19x256xf32> to vector<19x239xf32>
    %82 = tpu.concatenate %80, %81 in 1 : vector<19x17xf32>, vector<19x239xf32> -> vector<19x256xf32>
    %c0_45 = arith.constant 0 : index
    %c0_46 = arith.constant 0 : index
    %c0_47 = arith.constant 0 : index
    %83 = vector.load %arg7[%c0_45, %c0_46, %c0_47] : memref<9x1x256xf32, #tpu.memory_space<vmem>>, vector<1x1x256xf32>
    %84 = vector.shape_cast %83 : vector<1x1x256xf32> to vector<1x256xf32>
    %85 = vector.broadcast %84 : vector<1x256xf32> to vector<19x256xf32>
    %86 = arith.mulf %82, %85 : vector<19x256xf32>
    %87 = vector.extract_strided_slice %3 {offsets = [0, 0], sizes = [19, 1], strides = [1, 1]} : vector<19x9xf32> to vector<19x1xf32>
    %88 = vector.broadcast %87 : vector<19x1xf32> to vector<19x256xf32>
    %89 = arith.mulf %86, %88 : vector<19x256xf32>
    %90 = arith.addf %79, %89 : vector<19x256xf32>
    %91 = vector.extract_strided_slice %70 {offsets = [0, 240], sizes = [19, 16], strides = [1, 1]} : vector<19x256xf32> to vector<19x16xf32>
    %92 = vector.extract_strided_slice %70 {offsets = [0, 0], sizes = [19, 240], strides = [1, 1]} : vector<19x256xf32> to vector<19x240xf32>
    %93 = tpu.concatenate %91, %92 in 1 : vector<19x16xf32>, vector<19x240xf32> -> vector<19x256xf32>
    %c1_48 = arith.constant 1 : index
    %c0_49 = arith.constant 0 : index
    %c0_50 = arith.constant 0 : index
    %94 = vector.load %arg7[%c1_48, %c0_49, %c0_50] : memref<9x1x256xf32, #tpu.memory_space<vmem>>, vector<1x1x256xf32>
    %95 = vector.shape_cast %94 : vector<1x1x256xf32> to vector<1x256xf32>
    %96 = vector.broadcast %95 : vector<1x256xf32> to vector<19x256xf32>
    %97 = arith.mulf %93, %96 : vector<19x256xf32>
    %98 = vector.extract_strided_slice %3 {offsets = [0, 1], sizes = [19, 1], strides = [1, 1]} : vector<19x9xf32> to vector<19x1xf32>
    %99 = vector.broadcast %98 : vector<19x1xf32> to vector<19x256xf32>
    %100 = arith.mulf %97, %99 : vector<19x256xf32>
    %101 = arith.addf %90, %100 : vector<19x256xf32>
    %102 = vector.extract_strided_slice %70 {offsets = [0, 241], sizes = [19, 15], strides = [1, 1]} : vector<19x256xf32> to vector<19x15xf32>
    %103 = vector.extract_strided_slice %70 {offsets = [0, 0], sizes = [19, 241], strides = [1, 1]} : vector<19x256xf32> to vector<19x241xf32>
    %104 = tpu.concatenate %102, %103 in 1 : vector<19x15xf32>, vector<19x241xf32> -> vector<19x256xf32>
    %c2 = arith.constant 2 : index
    %c0_51 = arith.constant 0 : index
    %c0_52 = arith.constant 0 : index
    %105 = vector.load %arg7[%c2, %c0_51, %c0_52] : memref<9x1x256xf32, #tpu.memory_space<vmem>>, vector<1x1x256xf32>
    %106 = vector.shape_cast %105 : vector<1x1x256xf32> to vector<1x256xf32>
    %107 = vector.broadcast %106 : vector<1x256xf32> to vector<19x256xf32>
    %108 = arith.mulf %104, %107 : vector<19x256xf32>
    %109 = vector.extract_strided_slice %3 {offsets = [0, 2], sizes = [19, 1], strides = [1, 1]} : vector<19x9xf32> to vector<19x1xf32>
    %110 = vector.broadcast %109 : vector<19x1xf32> to vector<19x256xf32>
    %111 = arith.mulf %108, %110 : vector<19x256xf32>
    %112 = arith.addf %101, %111 : vector<19x256xf32>
    %113 = vector.extract_strided_slice %70 {offsets = [0, 255], sizes = [19, 1], strides = [1, 1]} : vector<19x256xf32> to vector<19x1xf32>
    %114 = vector.extract_strided_slice %70 {offsets = [0, 0], sizes = [19, 255], strides = [1, 1]} : vector<19x256xf32> to vector<19x255xf32>
    %115 = tpu.concatenate %113, %114 in 1 : vector<19x1xf32>, vector<19x255xf32> -> vector<19x256xf32>
    %c3 = arith.constant 3 : index
    %c0_53 = arith.constant 0 : index
    %c0_54 = arith.constant 0 : index
    %116 = vector.load %arg7[%c3, %c0_53, %c0_54] : memref<9x1x256xf32, #tpu.memory_space<vmem>>, vector<1x1x256xf32>
    %117 = vector.shape_cast %116 : vector<1x1x256xf32> to vector<1x256xf32>
    %118 = vector.broadcast %117 : vector<1x256xf32> to vector<19x256xf32>
    %119 = arith.mulf %115, %118 : vector<19x256xf32>
    %120 = vector.extract_strided_slice %3 {offsets = [0, 3], sizes = [19, 1], strides = [1, 1]} : vector<19x9xf32> to vector<19x1xf32>
    %121 = vector.broadcast %120 : vector<19x1xf32> to vector<19x256xf32>
    %122 = arith.mulf %119, %121 : vector<19x256xf32>
    %123 = arith.addf %112, %122 : vector<19x256xf32>
    %c4 = arith.constant 4 : index
    %c0_55 = arith.constant 0 : index
    %c0_56 = arith.constant 0 : index
    %124 = vector.load %arg7[%c4, %c0_55, %c0_56] : memref<9x1x256xf32, #tpu.memory_space<vmem>>, vector<1x1x256xf32>
    %125 = vector.shape_cast %124 : vector<1x1x256xf32> to vector<1x256xf32>
    %126 = vector.broadcast %125 : vector<1x256xf32> to vector<19x256xf32>
    %127 = arith.mulf %70, %126 : vector<19x256xf32>
    %128 = vector.extract_strided_slice %3 {offsets = [0, 4], sizes = [19, 1], strides = [1, 1]} : vector<19x9xf32> to vector<19x1xf32>
    %129 = vector.broadcast %128 : vector<19x1xf32> to vector<19x256xf32>
    %130 = arith.mulf %127, %129 : vector<19x256xf32>
    %131 = arith.addf %123, %130 : vector<19x256xf32>
    %132 = vector.extract_strided_slice %70 {offsets = [0, 1], sizes = [19, 255], strides = [1, 1]} : vector<19x256xf32> to vector<19x255xf32>
    %133 = vector.extract_strided_slice %70 {offsets = [0, 0], sizes = [19, 1], strides = [1, 1]} : vector<19x256xf32> to vector<19x1xf32>
    %134 = tpu.concatenate %132, %133 in 1 : vector<19x255xf32>, vector<19x1xf32> -> vector<19x256xf32>
    %c5 = arith.constant 5 : index
    %c0_57 = arith.constant 0 : index
    %c0_58 = arith.constant 0 : index
    %135 = vector.load %arg7[%c5, %c0_57, %c0_58] : memref<9x1x256xf32, #tpu.memory_space<vmem>>, vector<1x1x256xf32>
    %136 = vector.shape_cast %135 : vector<1x1x256xf32> to vector<1x256xf32>
    %137 = vector.broadcast %136 : vector<1x256xf32> to vector<19x256xf32>
    %138 = arith.mulf %134, %137 : vector<19x256xf32>
    %139 = vector.extract_strided_slice %3 {offsets = [0, 5], sizes = [19, 1], strides = [1, 1]} : vector<19x9xf32> to vector<19x1xf32>
    %140 = vector.broadcast %139 : vector<19x1xf32> to vector<19x256xf32>
    %141 = arith.mulf %138, %140 : vector<19x256xf32>
    %142 = arith.addf %131, %141 : vector<19x256xf32>
    %143 = vector.extract_strided_slice %70 {offsets = [0, 15], sizes = [19, 241], strides = [1, 1]} : vector<19x256xf32> to vector<19x241xf32>
    %144 = vector.extract_strided_slice %70 {offsets = [0, 0], sizes = [19, 15], strides = [1, 1]} : vector<19x256xf32> to vector<19x15xf32>
    %145 = tpu.concatenate %143, %144 in 1 : vector<19x241xf32>, vector<19x15xf32> -> vector<19x256xf32>
    %c6 = arith.constant 6 : index
    %c0_59 = arith.constant 0 : index
    %c0_60 = arith.constant 0 : index
    %146 = vector.load %arg7[%c6, %c0_59, %c0_60] : memref<9x1x256xf32, #tpu.memory_space<vmem>>, vector<1x1x256xf32>
    %147 = vector.shape_cast %146 : vector<1x1x256xf32> to vector<1x256xf32>
    %148 = vector.broadcast %147 : vector<1x256xf32> to vector<19x256xf32>
    %149 = arith.mulf %145, %148 : vector<19x256xf32>
    %150 = vector.extract_strided_slice %3 {offsets = [0, 6], sizes = [19, 1], strides = [1, 1]} : vector<19x9xf32> to vector<19x1xf32>
    %151 = vector.broadcast %150 : vector<19x1xf32> to vector<19x256xf32>
    %152 = arith.mulf %149, %151 : vector<19x256xf32>
    %153 = arith.addf %142, %152 : vector<19x256xf32>
    %154 = vector.extract_strided_slice %70 {offsets = [0, 16], sizes = [19, 240], strides = [1, 1]} : vector<19x256xf32> to vector<19x240xf32>
    %155 = vector.extract_strided_slice %70 {offsets = [0, 0], sizes = [19, 16], strides = [1, 1]} : vector<19x256xf32> to vector<19x16xf32>
    %156 = tpu.concatenate %154, %155 in 1 : vector<19x240xf32>, vector<19x16xf32> -> vector<19x256xf32>
    %c7 = arith.constant 7 : index
    %c0_61 = arith.constant 0 : index
    %c0_62 = arith.constant 0 : index
    %157 = vector.load %arg7[%c7, %c0_61, %c0_62] : memref<9x1x256xf32, #tpu.memory_space<vmem>>, vector<1x1x256xf32>
    %158 = vector.shape_cast %157 : vector<1x1x256xf32> to vector<1x256xf32>
    %159 = vector.broadcast %158 : vector<1x256xf32> to vector<19x256xf32>
    %160 = arith.mulf %156, %159 : vector<19x256xf32>
    %161 = vector.extract_strided_slice %3 {offsets = [0, 7], sizes = [19, 1], strides = [1, 1]} : vector<19x9xf32> to vector<19x1xf32>
    %162 = vector.broadcast %161 : vector<19x1xf32> to vector<19x256xf32>
    %163 = arith.mulf %160, %162 : vector<19x256xf32>
    %164 = arith.addf %153, %163 : vector<19x256xf32>
    %165 = vector.extract_strided_slice %70 {offsets = [0, 17], sizes = [19, 239], strides = [1, 1]} : vector<19x256xf32> to vector<19x239xf32>
    %166 = vector.extract_strided_slice %70 {offsets = [0, 0], sizes = [19, 17], strides = [1, 1]} : vector<19x256xf32> to vector<19x17xf32>
    %167 = tpu.concatenate %165, %166 in 1 : vector<19x239xf32>, vector<19x17xf32> -> vector<19x256xf32>
    %c8 = arith.constant 8 : index
    %c0_63 = arith.constant 0 : index
    %c0_64 = arith.constant 0 : index
    %168 = vector.load %arg7[%c8, %c0_63, %c0_64] : memref<9x1x256xf32, #tpu.memory_space<vmem>>, vector<1x1x256xf32>
    %169 = vector.shape_cast %168 : vector<1x1x256xf32> to vector<1x256xf32>
    %170 = vector.broadcast %169 : vector<1x256xf32> to vector<19x256xf32>
    %171 = arith.mulf %167, %170 : vector<19x256xf32>
    %172 = vector.extract_strided_slice %3 {offsets = [0, 8], sizes = [19, 1], strides = [1, 1]} : vector<19x9xf32> to vector<19x1xf32>
    %173 = vector.broadcast %172 : vector<19x1xf32> to vector<19x256xf32>
    %174 = arith.mulf %171, %173 : vector<19x256xf32>
    %175 = arith.addf %164, %174 : vector<19x256xf32>
    %cst_65 = arith.constant 0.000000e+00 : f32
    %176 = vector.broadcast %cst_65 : f32 to vector<19x256xf32>
    %177 = vector.extract_strided_slice %78 {offsets = [0, 239], sizes = [19, 17], strides = [1, 1]} : vector<19x256xf32> to vector<19x17xf32>
    %178 = vector.extract_strided_slice %78 {offsets = [0, 0], sizes = [19, 239], strides = [1, 1]} : vector<19x256xf32> to vector<19x239xf32>
    %179 = tpu.concatenate %177, %178 in 1 : vector<19x17xf32>, vector<19x239xf32> -> vector<19x256xf32>
    %c0_66 = arith.constant 0 : index
    %c0_67 = arith.constant 0 : index
    %c0_68 = arith.constant 0 : index
    %180 = vector.load %arg7[%c0_66, %c0_67, %c0_68] : memref<9x1x256xf32, #tpu.memory_space<vmem>>, vector<1x1x256xf32>
    %181 = vector.shape_cast %180 : vector<1x1x256xf32> to vector<1x256xf32>
    %182 = vector.broadcast %181 : vector<1x256xf32> to vector<19x256xf32>
    %183 = arith.mulf %179, %182 : vector<19x256xf32>
    %184 = vector.extract_strided_slice %3 {offsets = [0, 0], sizes = [19, 1], strides = [1, 1]} : vector<19x9xf32> to vector<19x1xf32>
    %185 = vector.broadcast %184 : vector<19x1xf32> to vector<19x256xf32>
    %186 = arith.mulf %183, %185 : vector<19x256xf32>
    %187 = arith.addf %176, %186 : vector<19x256xf32>
    %188 = vector.extract_strided_slice %78 {offsets = [0, 240], sizes = [19, 16], strides = [1, 1]} : vector<19x256xf32> to vector<19x16xf32>
    %189 = vector.extract_strided_slice %78 {offsets = [0, 0], sizes = [19, 240], strides = [1, 1]} : vector<19x256xf32> to vector<19x240xf32>
    %190 = tpu.concatenate %188, %189 in 1 : vector<19x16xf32>, vector<19x240xf32> -> vector<19x256xf32>
    %c1_69 = arith.constant 1 : index
    %c0_70 = arith.constant 0 : index
    %c0_71 = arith.constant 0 : index
    %191 = vector.load %arg7[%c1_69, %c0_70, %c0_71] : memref<9x1x256xf32, #tpu.memory_space<vmem>>, vector<1x1x256xf32>
    %192 = vector.shape_cast %191 : vector<1x1x256xf32> to vector<1x256xf32>
    %193 = vector.broadcast %192 : vector<1x256xf32> to vector<19x256xf32>
    %194 = arith.mulf %190, %193 : vector<19x256xf32>
    %195 = vector.extract_strided_slice %3 {offsets = [0, 1], sizes = [19, 1], strides = [1, 1]} : vector<19x9xf32> to vector<19x1xf32>
    %196 = vector.broadcast %195 : vector<19x1xf32> to vector<19x256xf32>
    %197 = arith.mulf %194, %196 : vector<19x256xf32>
    %198 = arith.addf %187, %197 : vector<19x256xf32>
    %199 = vector.extract_strided_slice %78 {offsets = [0, 241], sizes = [19, 15], strides = [1, 1]} : vector<19x256xf32> to vector<19x15xf32>
    %200 = vector.extract_strided_slice %78 {offsets = [0, 0], sizes = [19, 241], strides = [1, 1]} : vector<19x256xf32> to vector<19x241xf32>
    %201 = tpu.concatenate %199, %200 in 1 : vector<19x15xf32>, vector<19x241xf32> -> vector<19x256xf32>
    %c2_72 = arith.constant 2 : index
    %c0_73 = arith.constant 0 : index
    %c0_74 = arith.constant 0 : index
    %202 = vector.load %arg7[%c2_72, %c0_73, %c0_74] : memref<9x1x256xf32, #tpu.memory_space<vmem>>, vector<1x1x256xf32>
    %203 = vector.shape_cast %202 : vector<1x1x256xf32> to vector<1x256xf32>
    %204 = vector.broadcast %203 : vector<1x256xf32> to vector<19x256xf32>
    %205 = arith.mulf %201, %204 : vector<19x256xf32>
    %206 = vector.extract_strided_slice %3 {offsets = [0, 2], sizes = [19, 1], strides = [1, 1]} : vector<19x9xf32> to vector<19x1xf32>
    %207 = vector.broadcast %206 : vector<19x1xf32> to vector<19x256xf32>
    %208 = arith.mulf %205, %207 : vector<19x256xf32>
    %209 = arith.addf %198, %208 : vector<19x256xf32>
    %210 = vector.extract_strided_slice %78 {offsets = [0, 255], sizes = [19, 1], strides = [1, 1]} : vector<19x256xf32> to vector<19x1xf32>
    %211 = vector.extract_strided_slice %78 {offsets = [0, 0], sizes = [19, 255], strides = [1, 1]} : vector<19x256xf32> to vector<19x255xf32>
    %212 = tpu.concatenate %210, %211 in 1 : vector<19x1xf32>, vector<19x255xf32> -> vector<19x256xf32>
    %c3_75 = arith.constant 3 : index
    %c0_76 = arith.constant 0 : index
    %c0_77 = arith.constant 0 : index
    %213 = vector.load %arg7[%c3_75, %c0_76, %c0_77] : memref<9x1x256xf32, #tpu.memory_space<vmem>>, vector<1x1x256xf32>
    %214 = vector.shape_cast %213 : vector<1x1x256xf32> to vector<1x256xf32>
    %215 = vector.broadcast %214 : vector<1x256xf32> to vector<19x256xf32>
    %216 = arith.mulf %212, %215 : vector<19x256xf32>
    %217 = vector.extract_strided_slice %3 {offsets = [0, 3], sizes = [19, 1], strides = [1, 1]} : vector<19x9xf32> to vector<19x1xf32>
    %218 = vector.broadcast %217 : vector<19x1xf32> to vector<19x256xf32>
    %219 = arith.mulf %216, %218 : vector<19x256xf32>
    %220 = arith.addf %209, %219 : vector<19x256xf32>
    %c4_78 = arith.constant 4 : index
    %c0_79 = arith.constant 0 : index
    %c0_80 = arith.constant 0 : index
    %221 = vector.load %arg7[%c4_78, %c0_79, %c0_80] : memref<9x1x256xf32, #tpu.memory_space<vmem>>, vector<1x1x256xf32>
    %222 = vector.shape_cast %221 : vector<1x1x256xf32> to vector<1x256xf32>
    %223 = vector.broadcast %222 : vector<1x256xf32> to vector<19x256xf32>
    %224 = arith.mulf %78, %223 : vector<19x256xf32>
    %225 = vector.extract_strided_slice %3 {offsets = [0, 4], sizes = [19, 1], strides = [1, 1]} : vector<19x9xf32> to vector<19x1xf32>
    %226 = vector.broadcast %225 : vector<19x1xf32> to vector<19x256xf32>
    %227 = arith.mulf %224, %226 : vector<19x256xf32>
    %228 = arith.addf %220, %227 : vector<19x256xf32>
    %229 = vector.extract_strided_slice %78 {offsets = [0, 1], sizes = [19, 255], strides = [1, 1]} : vector<19x256xf32> to vector<19x255xf32>
    %230 = vector.extract_strided_slice %78 {offsets = [0, 0], sizes = [19, 1], strides = [1, 1]} : vector<19x256xf32> to vector<19x1xf32>
    %231 = tpu.concatenate %229, %230 in 1 : vector<19x255xf32>, vector<19x1xf32> -> vector<19x256xf32>
    %c5_81 = arith.constant 5 : index
    %c0_82 = arith.constant 0 : index
    %c0_83 = arith.constant 0 : index
    %232 = vector.load %arg7[%c5_81, %c0_82, %c0_83] : memref<9x1x256xf32, #tpu.memory_space<vmem>>, vector<1x1x256xf32>
    %233 = vector.shape_cast %232 : vector<1x1x256xf32> to vector<1x256xf32>
    %234 = vector.broadcast %233 : vector<1x256xf32> to vector<19x256xf32>
    %235 = arith.mulf %231, %234 : vector<19x256xf32>
    %236 = vector.extract_strided_slice %3 {offsets = [0, 5], sizes = [19, 1], strides = [1, 1]} : vector<19x9xf32> to vector<19x1xf32>
    %237 = vector.broadcast %236 : vector<19x1xf32> to vector<19x256xf32>
    %238 = arith.mulf %235, %237 : vector<19x256xf32>
    %239 = arith.addf %228, %238 : vector<19x256xf32>
    %240 = vector.extract_strided_slice %78 {offsets = [0, 15], sizes = [19, 241], strides = [1, 1]} : vector<19x256xf32> to vector<19x241xf32>
    %241 = vector.extract_strided_slice %78 {offsets = [0, 0], sizes = [19, 15], strides = [1, 1]} : vector<19x256xf32> to vector<19x15xf32>
    %242 = tpu.concatenate %240, %241 in 1 : vector<19x241xf32>, vector<19x15xf32> -> vector<19x256xf32>
    %c6_84 = arith.constant 6 : index
    %c0_85 = arith.constant 0 : index
    %c0_86 = arith.constant 0 : index
    %243 = vector.load %arg7[%c6_84, %c0_85, %c0_86] : memref<9x1x256xf32, #tpu.memory_space<vmem>>, vector<1x1x256xf32>
    %244 = vector.shape_cast %243 : vector<1x1x256xf32> to vector<1x256xf32>
    %245 = vector.broadcast %244 : vector<1x256xf32> to vector<19x256xf32>
    %246 = arith.mulf %242, %245 : vector<19x256xf32>
    %247 = vector.extract_strided_slice %3 {offsets = [0, 6], sizes = [19, 1], strides = [1, 1]} : vector<19x9xf32> to vector<19x1xf32>
    %248 = vector.broadcast %247 : vector<19x1xf32> to vector<19x256xf32>
    %249 = arith.mulf %246, %248 : vector<19x256xf32>
    %250 = arith.addf %239, %249 : vector<19x256xf32>
    %251 = vector.extract_strided_slice %78 {offsets = [0, 16], sizes = [19, 240], strides = [1, 1]} : vector<19x256xf32> to vector<19x240xf32>
    %252 = vector.extract_strided_slice %78 {offsets = [0, 0], sizes = [19, 16], strides = [1, 1]} : vector<19x256xf32> to vector<19x16xf32>
    %253 = tpu.concatenate %251, %252 in 1 : vector<19x240xf32>, vector<19x16xf32> -> vector<19x256xf32>
    %c7_87 = arith.constant 7 : index
    %c0_88 = arith.constant 0 : index
    %c0_89 = arith.constant 0 : index
    %254 = vector.load %arg7[%c7_87, %c0_88, %c0_89] : memref<9x1x256xf32, #tpu.memory_space<vmem>>, vector<1x1x256xf32>
    %255 = vector.shape_cast %254 : vector<1x1x256xf32> to vector<1x256xf32>
    %256 = vector.broadcast %255 : vector<1x256xf32> to vector<19x256xf32>
    %257 = arith.mulf %253, %256 : vector<19x256xf32>
    %258 = vector.extract_strided_slice %3 {offsets = [0, 7], sizes = [19, 1], strides = [1, 1]} : vector<19x9xf32> to vector<19x1xf32>
    %259 = vector.broadcast %258 : vector<19x1xf32> to vector<19x256xf32>
    %260 = arith.mulf %257, %259 : vector<19x256xf32>
    %261 = arith.addf %250, %260 : vector<19x256xf32>
    %262 = vector.extract_strided_slice %78 {offsets = [0, 17], sizes = [19, 239], strides = [1, 1]} : vector<19x256xf32> to vector<19x239xf32>
    %263 = vector.extract_strided_slice %78 {offsets = [0, 0], sizes = [19, 17], strides = [1, 1]} : vector<19x256xf32> to vector<19x17xf32>
    %264 = tpu.concatenate %262, %263 in 1 : vector<19x239xf32>, vector<19x17xf32> -> vector<19x256xf32>
    %c8_90 = arith.constant 8 : index
    %c0_91 = arith.constant 0 : index
    %c0_92 = arith.constant 0 : index
    %265 = vector.load %arg7[%c8_90, %c0_91, %c0_92] : memref<9x1x256xf32, #tpu.memory_space<vmem>>, vector<1x1x256xf32>
    %266 = vector.shape_cast %265 : vector<1x1x256xf32> to vector<1x256xf32>
    %267 = vector.broadcast %266 : vector<1x256xf32> to vector<19x256xf32>
    %268 = arith.mulf %264, %267 : vector<19x256xf32>
    %269 = vector.extract_strided_slice %3 {offsets = [0, 8], sizes = [19, 1], strides = [1, 1]} : vector<19x9xf32> to vector<19x1xf32>
    %270 = vector.broadcast %269 : vector<19x1xf32> to vector<19x256xf32>
    %271 = arith.mulf %268, %270 : vector<19x256xf32>
    %272 = arith.addf %261, %271 : vector<19x256xf32>
    %cst_93 = arith.constant dense<0.000000e+00> : vector<19xf32>
    %273 = vector.multi_reduction <add>, %175, %cst_93 [1] : vector<19x256xf32> to vector<19xf32>
    %274 = vector.shape_cast %273 : vector<19xf32> to vector<19x1xf32>
    %cst_94 = arith.constant 0.000000e+00 : f32
    %275 = vector.broadcast %cst_94 : f32 to vector<19x1xf32>
    %276 = arith.addf %275, %274 : vector<19x1xf32>
    %cst_95 = arith.constant dense<0.000000e+00> : vector<19xf32>
    %277 = vector.multi_reduction <add>, %272, %cst_95 [1] : vector<19x256xf32> to vector<19xf32>
    %278 = vector.shape_cast %277 : vector<19xf32> to vector<19x1xf32>
    %279 = arith.addf %276, %278 : vector<19x1xf32>
    %cst_96 = arith.constant 0.001953125 : f32
    %280 = vector.broadcast %cst_96 : f32 to vector<19x1xf32>
    %281 = arith.mulf %279, %280 : vector<19x1xf32>
    %282 = vector.broadcast %281 : vector<19x1xf32> to vector<19x256xf32>
    %283 = arith.subf %175, %282 : vector<19x256xf32>
    %284 = vector.broadcast %281 : vector<19x1xf32> to vector<19x256xf32>
    %285 = arith.subf %175, %284 : vector<19x256xf32>
    %286 = arith.mulf %283, %285 : vector<19x256xf32>
    %cst_97 = arith.constant dense<0.000000e+00> : vector<19xf32>
    %287 = vector.multi_reduction <add>, %286, %cst_97 [1] : vector<19x256xf32> to vector<19xf32>
    %288 = vector.shape_cast %287 : vector<19xf32> to vector<19x1xf32>
    %cst_98 = arith.constant 0.000000e+00 : f32
    %289 = vector.broadcast %cst_98 : f32 to vector<19x1xf32>
    %290 = arith.addf %289, %288 : vector<19x1xf32>
    %291 = vector.broadcast %281 : vector<19x1xf32> to vector<19x256xf32>
    %292 = arith.subf %272, %291 : vector<19x256xf32>
    %293 = vector.broadcast %281 : vector<19x1xf32> to vector<19x256xf32>
    %294 = arith.subf %272, %293 : vector<19x256xf32>
    %295 = arith.mulf %292, %294 : vector<19x256xf32>
    %cst_99 = arith.constant dense<0.000000e+00> : vector<19xf32>
    %296 = vector.multi_reduction <add>, %295, %cst_99 [1] : vector<19x256xf32> to vector<19xf32>
    %297 = vector.shape_cast %296 : vector<19xf32> to vector<19x1xf32>
    %298 = arith.addf %290, %297 : vector<19x1xf32>
    %cst_100 = arith.constant 0.001953125 : f32
    %299 = vector.broadcast %cst_100 : f32 to vector<19x1xf32>
    %300 = arith.mulf %298, %299 : vector<19x1xf32>
    %c0_101 = arith.constant 0 : index
    %c0_102 = arith.constant 0 : index
    %c0_103 = arith.constant 0 : index
    %301 = vector.load %arg10[%c0_101, %c0_102, %c0_103] : memref<2x19x1xf32, #tpu.memory_space<vmem>>, vector<1x19x1xf32>
    %302 = vector.shape_cast %301 : vector<1x19x1xf32> to vector<19x1xf32>
    %cst_104 = arith.constant 9.99999974E-6 : f32
    %303 = vector.broadcast %cst_104 : f32 to vector<19x1xf32>
    %304 = arith.addf %300, %303 : vector<19x1xf32>
    %305 = math.rsqrt %304 : vector<19x1xf32>
    %306 = arith.mulf %302, %305 : vector<19x1xf32>
    %c1_105 = arith.constant 1 : index
    %c0_106 = arith.constant 0 : index
    %c0_107 = arith.constant 0 : index
    %307 = vector.load %arg10[%c1_105, %c0_106, %c0_107] : memref<2x19x1xf32, #tpu.memory_space<vmem>>, vector<1x19x1xf32>
    %308 = vector.shape_cast %307 : vector<1x19x1xf32> to vector<19x1xf32>
    %309 = arith.mulf %281, %306 : vector<19x1xf32>
    %310 = arith.subf %308, %309 : vector<19x1xf32>
    %311 = vector.broadcast %306 : vector<19x1xf32> to vector<19x256xf32>
    %312 = arith.mulf %175, %311 : vector<19x256xf32>
    %313 = vector.broadcast %310 : vector<19x1xf32> to vector<19x256xf32>
    %314 = arith.addf %312, %313 : vector<19x256xf32>
    %cst_108 = arith.constant 0.000000e+00 : f32
    %cst_109 = arith.constant 6.000000e+00 : f32
    %315 = vector.broadcast %cst_108 : f32 to vector<19x256xf32>
    %316 = arith.maximumf %315, %314 : vector<19x256xf32>
    %317 = vector.broadcast %cst_109 : f32 to vector<19x256xf32>
    %318 = arith.minimumf %317, %316 : vector<19x256xf32>
    %319 = arith.truncf %318 : vector<19x256xf32> to vector<19x256xbf16>
    %cst_110 = arith.constant dense<0.000000e+00> : vector<64x256xf32>
    %320 = tpu.matmul %4, %319, %cst_110 {dimension_numbers = #tpu.dot_dimension_numbers<[1], [0], [0], [1], [0, 0, 1, 1], [], []>} : vector<64x19xbf16>, vector<19x256xbf16>, vector<64x256xf32> -> vector<64x256xf32>
    %321 = vector.broadcast %306 : vector<19x1xf32> to vector<19x256xf32>
    %322 = arith.mulf %272, %321 : vector<19x256xf32>
    %323 = vector.broadcast %310 : vector<19x1xf32> to vector<19x256xf32>
    %324 = arith.addf %322, %323 : vector<19x256xf32>
    %cst_111 = arith.constant 0.000000e+00 : f32
    %cst_112 = arith.constant 6.000000e+00 : f32
    %325 = vector.broadcast %cst_111 : f32 to vector<19x256xf32>
    %326 = arith.maximumf %325, %324 : vector<19x256xf32>
    %327 = vector.broadcast %cst_112 : f32 to vector<19x256xf32>
    %328 = arith.minimumf %327, %326 : vector<19x256xf32>
    %329 = arith.truncf %328 : vector<19x256xf32> to vector<19x256xbf16>
    %cst_113 = arith.constant dense<0.000000e+00> : vector<64x256xf32>
    %330 = tpu.matmul %4, %329, %cst_113 {dimension_numbers = #tpu.dot_dimension_numbers<[1], [0], [0], [1], [0, 0, 1, 1], [], []>} : vector<64x19xbf16>, vector<19x256xbf16>, vector<64x256xf32> -> vector<64x256xf32>
    %cst_114 = arith.constant dense<0.000000e+00> : vector<64xf32>
    %331 = vector.multi_reduction <add>, %320, %cst_114 [1] : vector<64x256xf32> to vector<64xf32>
    %332 = vector.shape_cast %331 : vector<64xf32> to vector<64x1xf32>
    %cst_115 = arith.constant 0.000000e+00 : f32
    %333 = vector.broadcast %cst_115 : f32 to vector<64x1xf32>
    %334 = arith.addf %333, %332 : vector<64x1xf32>
    %cst_116 = arith.constant dense<0.000000e+00> : vector<64xf32>
    %335 = vector.multi_reduction <add>, %330, %cst_116 [1] : vector<64x256xf32> to vector<64xf32>
    %336 = vector.shape_cast %335 : vector<64xf32> to vector<64x1xf32>
    %337 = arith.addf %334, %336 : vector<64x1xf32>
    %cst_117 = arith.constant 0.001953125 : f32
    %338 = vector.broadcast %cst_117 : f32 to vector<64x1xf32>
    %339 = arith.mulf %337, %338 : vector<64x1xf32>
    %340 = vector.broadcast %339 : vector<64x1xf32> to vector<64x256xf32>
    %341 = arith.subf %320, %340 : vector<64x256xf32>
    %342 = vector.broadcast %339 : vector<64x1xf32> to vector<64x256xf32>
    %343 = arith.subf %320, %342 : vector<64x256xf32>
    %344 = arith.mulf %341, %343 : vector<64x256xf32>
    %cst_118 = arith.constant dense<0.000000e+00> : vector<64xf32>
    %345 = vector.multi_reduction <add>, %344, %cst_118 [1] : vector<64x256xf32> to vector<64xf32>
    %346 = vector.shape_cast %345 : vector<64xf32> to vector<64x1xf32>
    %cst_119 = arith.constant 0.000000e+00 : f32
    %347 = vector.broadcast %cst_119 : f32 to vector<64x1xf32>
    %348 = arith.addf %347, %346 : vector<64x1xf32>
    %349 = vector.broadcast %339 : vector<64x1xf32> to vector<64x256xf32>
    %350 = arith.subf %330, %349 : vector<64x256xf32>
    %351 = vector.broadcast %339 : vector<64x1xf32> to vector<64x256xf32>
    %352 = arith.subf %330, %351 : vector<64x256xf32>
    %353 = arith.mulf %350, %352 : vector<64x256xf32>
    %cst_120 = arith.constant dense<0.000000e+00> : vector<64xf32>
    %354 = vector.multi_reduction <add>, %353, %cst_120 [1] : vector<64x256xf32> to vector<64xf32>
    %355 = vector.shape_cast %354 : vector<64xf32> to vector<64x1xf32>
    %356 = arith.addf %348, %355 : vector<64x1xf32>
    %cst_121 = arith.constant 0.001953125 : f32
    %357 = vector.broadcast %cst_121 : f32 to vector<64x1xf32>
    %358 = arith.mulf %356, %357 : vector<64x1xf32>
    %c0_122 = arith.constant 0 : index
    %c0_123 = arith.constant 0 : index
    %c0_124 = arith.constant 0 : index
    %359 = vector.load %arg11[%c0_122, %c0_123, %c0_124] : memref<2x64x1xf32, #tpu.memory_space<vmem>>, vector<1x64x1xf32>
    %360 = vector.shape_cast %359 : vector<1x64x1xf32> to vector<64x1xf32>
    %cst_125 = arith.constant 9.99999974E-6 : f32
    %361 = vector.broadcast %cst_125 : f32 to vector<64x1xf32>
    %362 = arith.addf %358, %361 : vector<64x1xf32>
    %363 = math.rsqrt %362 : vector<64x1xf32>
    %364 = arith.mulf %360, %363 : vector<64x1xf32>
    %c1_126 = arith.constant 1 : index
    %c0_127 = arith.constant 0 : index
    %c0_128 = arith.constant 0 : index
    %365 = vector.load %arg11[%c1_126, %c0_127, %c0_128] : memref<2x64x1xf32, #tpu.memory_space<vmem>>, vector<1x64x1xf32>
    %366 = vector.shape_cast %365 : vector<1x64x1xf32> to vector<64x1xf32>
    %367 = arith.mulf %339, %364 : vector<64x1xf32>
    %368 = arith.subf %366, %367 : vector<64x1xf32>
    %369 = vector.broadcast %364 : vector<64x1xf32> to vector<64x256xf32>
    %370 = arith.mulf %320, %369 : vector<64x256xf32>
    %371 = vector.broadcast %368 : vector<64x1xf32> to vector<64x256xf32>
    %372 = arith.addf %370, %371 : vector<64x256xf32>
    %c0_129 = arith.constant 0 : index
    %c0_130 = arith.constant 0 : index
    %c0_131 = arith.constant 0 : index
    %373 = vector.load %arg12[%c0_129, %c0_130, %c0_131] : memref<2x64x256xf32, #tpu.memory_space<vmem>>, vector<1x64x256xf32>
    %374 = vector.shape_cast %373 : vector<1x64x256xf32> to vector<64x256xf32>
    %375 = vector.shape_cast %372 : vector<64x256xf32> to vector<1x64x256xf32>
    tpu.vector_store %arg12[%c0_129, %c0_130, %c0_131], %375 {strides = array<i32>} : memref<2x64x256xf32, #tpu.memory_space<vmem>>, vector<1x64x256xf32>,
    %376 = vector.broadcast %364 : vector<64x1xf32> to vector<64x256xf32>
    %377 = arith.mulf %330, %376 : vector<64x256xf32>
    %378 = vector.broadcast %368 : vector<64x1xf32> to vector<64x256xf32>
    %379 = arith.addf %377, %378 : vector<64x256xf32>
    %c1_132 = arith.constant 1 : index
    %c0_133 = arith.constant 0 : index
    %c0_134 = arith.constant 0 : index
    %380 = vector.load %arg12[%c1_132, %c0_133, %c0_134] : memref<2x64x256xf32, #tpu.memory_space<vmem>>, vector<1x64x256xf32>
    %381 = vector.shape_cast %380 : vector<1x64x256xf32> to vector<64x256xf32>
    %382 = vector.shape_cast %379 : vector<64x256xf32> to vector<1x64x256xf32>
    tpu.vector_store %arg12[%c1_132, %c0_133, %c0_134], %382 {strides = array<i32>} : memref<2x64x256xf32, #tpu.memory_space<vmem>>, vector<1x64x256xf32>,
    return
  }
  func.func @transform_0(%arg0: i32) -> (i32, i32, i32) {
    %c0_i32 = arith.constant 0 : i32
    %c0_i32_0 = arith.constant 0 : i32
    %c0_i32_1 = arith.constant 0 : i32
    %c0_i32_2 = arith.constant 0 : i32
    return %c0_i32, %c0_i32_0, %c0_i32_1 : i32, i32, i32
  }
  func.func @transform_1(%arg0: i32) -> (i32, i32, i32) {
    %c0_i32 = arith.constant 0 : i32
    %c0_i32_0 = arith.constant 0 : i32
    %c0_i32_1 = arith.constant 0 : i32
    %c0_i32_2 = arith.constant 0 : i32
    return %c0_i32, %c0_i32_0, %c0_i32_1 : i32, i32, i32
  }
  func.func @transform_2(%arg0: i32) -> (i32, i32) {
    %c0_i32 = arith.constant 0 : i32
    %c0_i32_0 = arith.constant 0 : i32
    %c0_i32_1 = arith.constant 0 : i32
    return %c0_i32, %c0_i32_0 : i32, i32
  }
  func.func @transform_3(%arg0: i32) -> (i32, i32) {
    %c0_i32 = arith.constant 0 : i32
    %c0_i32_0 = arith.constant 0 : i32
    %c0_i32_1 = arith.constant 0 : i32
    return %c0_i32, %c0_i32_0 : i32, i32
  }
  func.func @transform_4(%arg0: i32) -> (i32, i32) {
    %c0_i32 = arith.constant 0 : i32
    %c0_i32_0 = arith.constant 0 : i32
    %c0_i32_1 = arith.constant 0 : i32
    return %c0_i32, %c0_i32_0 : i32, i32
  }
  func.func @transform_5(%arg0: i32) -> (i32, i32) {
    %c0_i32 = arith.constant 0 : i32
    %c0_i32_0 = arith.constant 0 : i32
    %c0_i32_1 = arith.constant 0 : i32
    return %c0_i32, %c0_i32_0 : i32, i32
  }
  func.func @transform_6(%arg0: i32) -> (i32, i32, i32) {
    %c0_i32 = arith.constant 0 : i32
    %c0_i32_0 = arith.constant 0 : i32
    %c0_i32_1 = arith.constant 0 : i32
    %c0_i32_2 = arith.constant 0 : i32
    return %c0_i32, %c0_i32_0, %c0_i32_1 : i32, i32, i32
  }
  func.func @transform_7(%arg0: i32) -> (i32, i32) {
    %c0_i32 = arith.constant 0 : i32
    %c0_i32_0 = arith.constant 0 : i32
    %c0_i32_1 = arith.constant 0 : i32
    return %c0_i32, %c0_i32_0 : i32, i32
  }
  func.func @transform_8(%arg0: i32) -> (i32, i32, i32) {
    %c0_i32 = arith.constant 0 : i32
    %c0_i32_0 = arith.constant 0 : i32
    %c0_i32_1 = arith.constant 0 : i32
    %c0_i32_2 = arith.constant 0 : i32
    return %c0_i32, %c0_i32_0, %c0_i32_1 : i32, i32, i32
  }
  func.func @transform_9(%arg0: i32) -> (i32, i32, i32) {
    %c0_i32 = arith.constant 0 : i32
    %c0_i32_0 = arith.constant 0 : i32
    %c0_i32_1 = arith.constant 0 : i32
    %c0_i32_2 = arith.constant 0 : i32
    return %c0_i32, %c0_i32_0, %c0_i32_1 : i32, i32, i32
  }
  func.func @transform_10(%arg0: i32) -> (i32, i32, i32) {
    %c0_i32 = arith.constant 0 : i32
    %c0_i32_0 = arith.constant 0 : i32
    %c0_i32_1 = arith.constant 0 : i32
    %c0_i32_2 = arith.constant 0 : i32
    return %c0_i32, %c0_i32_0, %c0_i32_1 : i32, i32, i32
  }
  func.func @transform_11(%arg0: i32) -> (i32, i32, i32) {
    %c0_i32 = arith.constant 0 : i32
    %c0_i32_0 = arith.constant 0 : i32
    %c0_i32_1 = arith.constant 0 : i32
    %c0_i32_2 = arith.constant 0 : i32
    return %c0_i32, %c0_i32_0, %c0_i32_1 : i32, i32, i32
  }
}

</mosaic_0001>

<llo_original>
// kernel: decoder_block_pallas.1
$region0: #{decoder_block_pallas.1}
  #allocation0 [shape = 'u32[]', space=smem, size = 0x4, offset = 0x4, fixed_abs, tag = 'smem constant byte address 0x4 - core index']
  #allocation1 [shape = 'u32[144,128]{1,0:T(1,128)}', space=vmem, size = 0x12000, scoped, tag = 'internal scratch']
  %s0 = inlined_call_operand.vmem [shape: f32[2,64,64], index: 0, kind: input, shape index: {}]
  %s1 = inlined_call_operand.vmem [shape: f32[2,64,256], index: 1, kind: input, shape index: {}]
  %s2 = inlined_call_operand.vmem [shape: bf16[19,64], index: 2, kind: input, shape index: {}]
  %s3 = inlined_call_operand.vmem [shape: bf16[19,64], index: 3, kind: input, shape index: {}]
  %s4 = inlined_call_operand.vmem [shape: f32[64,256], index: 4, kind: input, shape index: {}]
  %s5 = inlined_call_operand.vmem [shape: f32[19,9], index: 5, kind: input, shape index: {}]
  %s6 = inlined_call_operand.vmem [shape: f32[9,1,256], index: 6, kind: input, shape index: {}]
  %s7 = inlined_call_operand.vmem [shape: bf16[64,19], index: 7, kind: input, shape index: {}]
  %s8 = inlined_call_operand.vmem [shape: f32[2,19,1], index: 8, kind: input, shape index: {}]
  %s9 = inlined_call_operand.vmem [shape: f32[2,19,1], index: 9, kind: input, shape index: {}]
  %s10 = inlined_call_operand.vmem [shape: f32[2,64,1], index: 10, kind: input, shape index: {}]
  %s11 = inlined_call_operand.vmem [shape: f32[2,64,256], index: 11, kind: output, shape index: {}]
  %s12 = sld [smem:[#allocation0]]
  $region54: #{decoder_block_pallas.1} parent=0
    _
  %s14 = ssub.s32 1, %s12
  %s15 = scalar_select 0, %s14, %s12
  // Predicated region
  $region2: #{decoder_block_pallas.1} parent=0 // pred_check
    _
  $region3: #{decoder_block_pallas.1} parent=0 // pred_check_branch
    %17 = sbr.rel (0) target = $region5
  $region4: #{decoder_block_pallas.1} parent=0 // pred_region
    _
  $region5: #{decoder_block_pallas.1} parent=0 // pred_fallthru
    _
  // Predicated region
  $region6: #{decoder_block_pallas.1} parent=0 // pred_check
    _
  $region7: #{decoder_block_pallas.1} parent=0 // pred_check_branch
    %19 = sbr.rel (0) target = $region9
  $region8: #{decoder_block_pallas.1} parent=0 // pred_region
    _
  $region9: #{decoder_block_pallas.1} parent=0 // pred_fallthru
    _
  // Predicated region
  $region10: #{decoder_block_pallas.1} parent=0 // pred_check
    _
  $region11: #{decoder_block_pallas.1} parent=0 // pred_check_branch
    %21 = sbr.rel (0) target = $region13
  $region12: #{decoder_block_pallas.1} parent=0 // pred_region
    _
  $region13: #{decoder_block_pallas.1} parent=0 // pred_fallthru
    _
  // Predicated region
  $region14: #{decoder_block_pallas.1} parent=0 // pred_check
    _
  $region15: #{decoder_block_pallas.1} parent=0 // pred_check_branch
    %23 = sbr.rel (0) target = $region17
  $region16: #{decoder_block_pallas.1} parent=0 // pred_region
    _
  $region17: #{decoder_block_pallas.1} parent=0 // pred_fallthru
    _
  // Predicated region
  $region18: #{decoder_block_pallas.1} parent=0 // pred_check
    _
  $region19: #{decoder_block_pallas.1} parent=0 // pred_check_branch
    %25 = sbr.rel (0) target = $region21
  $region20: #{decoder_block_pallas.1} parent=0 // pred_region
    _
  $region21: #{decoder_block_pallas.1} parent=0 // pred_fallthru
    _
  // Predicated region
  $region22: #{decoder_block_pallas.1} parent=0 // pred_check
    _
  $region23: #{decoder_block_pallas.1} parent=0 // pred_check_branch
    %27 = sbr.rel (0) target = $region25
  $region24: #{decoder_block_pallas.1} parent=0 // pred_region
    _
  $region25: #{decoder_block_pallas.1} parent=0 // pred_fallthru
    _
  // Predicated region
  $region26: #{decoder_block_pallas.1} parent=0 // pred_check
    _
  $region27: #{decoder_block_pallas.1} parent=0 // pred_check_branch
    %29 = sbr.rel (0) target = $region29
  $region28: #{decoder_block_pallas.1} parent=0 // pred_region
    _
  $region29: #{decoder_block_pallas.1} parent=0 // pred_fallthru
    _
  // Predicated region
  $region30: #{decoder_block_pallas.1} parent=0 // pred_check
    _
  $region31: #{decoder_block_pallas.1} parent=0 // pred_check_branch
    %31 = sbr.rel (0) target = $region33
  $region32: #{decoder_block_pallas.1} parent=0 // pred_region
    _
  $region33: #{decoder_block_pallas.1} parent=0 // pred_fallthru
    _
  // Predicated region
  $region34: #{decoder_block_pallas.1} parent=0 // pred_check
    _
  $region35: #{decoder_block_pallas.1} parent=0 // pred_check_branch
    %33 = sbr.rel (0) target = $region37
  $region36: #{decoder_block_pallas.1} parent=0 // pred_region
    _
  $region37: #{decoder_block_pallas.1} parent=0 // pred_fallthru
    _
  // Predicated region
  $region38: #{decoder_block_pallas.1} parent=0 // pred_check
    _
  $region39: #{decoder_block_pallas.1} parent=0 // pred_check_branch
    %35 = sbr.rel (0) target = $region41
  $region40: #{decoder_block_pallas.1} parent=0 // pred_region
    _
  $region41: #{decoder_block_pallas.1} parent=0 // pred_fallthru
    _
  // Predicated region
  $region42: #{decoder_block_pallas.1} parent=0 // pred_check
    _
  $region43: #{decoder_block_pallas.1} parent=0 // pred_check_branch
    %37 = sbr.rel (0) target = $region45
  $region44: #{decoder_block_pallas.1} parent=0 // pred_region
    _
  $region45: #{decoder_block_pallas.1} parent=0 // pred_fallthru
    _
  %v39 = vld [vmem:[%s2] sm:$0xf]
  %v40 = vld [vmem:[%s2 + $0x4] sm:$0xf]
  %v41 = vld [vmem:[%s2 + $0x8] sm:$0x3]
  %v42 = vld [vmem:[%s3] sm:$0xf]
  %v43 = vld [vmem:[%s3 + $0x4] sm:$0xf]
  %v44 = vld [vmem:[%s3 + $0x8] sm:$0x3]
  %v45 = vld [vmem:[%s4] sm:$0xff]
  %v46 = vld [vmem:[%s4 + $0x8] sm:$0xff]
  %v47 = vld [vmem:[%s4 + $0x10] sm:$0xff]
  %v48 = vld [vmem:[%s4 + $0x18] sm:$0xff]
  %v49 = vld [vmem:[%s4 + $0x20] sm:$0xff]
  %v50 = vld [vmem:[%s4 + $0x28] sm:$0xff]
  %v51 = vld [vmem:[%s4 + $0x30] sm:$0xff]
  %v52 = vld [vmem:[%s4 + $0x38] sm:$0xff]
  %v53 = vld [vmem:[%s4 + $0x40] sm:$0xff]
  %v54 = vld [vmem:[%s4 + $0x48] sm:$0xff]
  %v55 = vld [vmem:[%s4 + $0x50] sm:$0xff]
  %v56 = vld [vmem:[%s4 + $0x58] sm:$0xff]
  %v57 = vld [vmem:[%s4 + $0x60] sm:$0xff]
  %v58 = vld [vmem:[%s4 + $0x68] sm:$0xff]
  %v59 = vld [vmem:[%s4 + $0x70] sm:$0xff]
  %v60 = vld [vmem:[%s4 + $0x78] sm:$0xff]
  %v61 = vld [vmem:[%s5] sm:$0xff]
  %v62 = vld [vmem:[%s5 + $0x8] sm:$0xff]
  %v63 = vld [vmem:[%s5 + $0x10] sm:$0x7]
  %v64 = vld [vmem:[%s7] sm:$0xf]
  %v65 = vld [vmem:[%s7 + $0x4] sm:$0xf]
  %v66 = vld [vmem:[%s7 + $0x8] sm:$0xf]
  %v67 = vld [vmem:[%s7 + $0xc] sm:$0xf]
  %v68 = vld [vmem:[%s7 + $0x10] sm:$0xf]
  %v69 = vld [vmem:[%s7 + $0x14] sm:$0xf]
  %v70 = vld [vmem:[%s7 + $0x18] sm:$0xf]
  %v71 = vld [vmem:[%s7 + $0x1c] sm:$0xf]
  %v72 = vld [vmem:[%s0] sm:$0xff]
  %v73 = vld [vmem:[%s0 + $0x8] sm:$0xff]
  %v74 = vld [vmem:[%s0 + $0x10] sm:$0xff]
  %v75 = vld [vmem:[%s0 + $0x18] sm:$0xff]
  %v76 = vld [vmem:[%s0 + $0x20] sm:$0xff]
  %v77 = vld [vmem:[%s0 + $0x28] sm:$0xff]
  %v78 = vld [vmem:[%s0 + $0x30] sm:$0xff]
  %v79 = vld [vmem:[%s0 + $0x38] sm:$0xff]
  %v80 = vpack.c.bf16 %v73, %v72
  %v81 = vpack.c.bf16 %v75, %v74
  %v82 = vpack.c.bf16 %v77, %v76
  %v83 = vpack.c.bf16 %v79, %v78
  %v87 = vunpack.c.l.b16 %v39
  %v88 = vunpack.c.l.b16 %v40
  %v89 = vunpack.c.l.b16 %v41
  %v90 = vpack.c.b16 %v88, %v87
  %v91 = vpack.c.b16 %v89, %v89
  %vm92 = vcmask 523264
  %v94 = vsel %vm92, %v90, 0
  %v97 = vsel %vm92, %v91, 0
  %99 = vmatprep.subr.bf16.mxu0 0
  %100 = vmatpush1.bf16.msra.mxu0 0
  %101 = vmatprep.subr.bf16.mxu0 0
  %102 = vmatpush1.bf16.msra.mxu0 0
  %103 = vmatprep.subr.bf16.mxu0 0
  %104 = vmatpush1.bf16.msra.mxu0 0
  %105 = vmatprep.subr.bf16.mxu0 0
  %106 = vmatpush1.bf16.msra.mxu0 0
  %107 = vmatprep.subr.bf16.mxu0 0
  %108 = vmatpush1.bf16.msra.mxu0 %v83
  %109 = vmatprep.subr.bf16.mxu0 0
  %110 = vmatpush1.bf16.msra.mxu0 %v82
  %111 = vmatprep.subr.bf16.mxu0 0
  %112 = vmatpush1.bf16.msra.mxu0 %v81
  %113 = vmatprep.subr.bf16.mxu0 0
  %114 = vmatpush1.bf16.msra.mxu0 %v80
  %115 = vmatprep.subr.bf16.mxu0 0
  %116 = vmatpush2.bf16.msra.mxu0 0
  %117 = vmatprep.subr.bf16.mxu0 0
  %118 = vmatpush2.bf16.msra.mxu0 0
  %119 = vmatprep.subr.bf16.mxu0 0
  %120 = vmatpush2.bf16.msra.mxu0 0
  %121 = vmatprep.subr.bf16.mxu0 0
  %122 = vmatpush2.bf16.msra.mxu0 0
  %123 = vmatprep.subr.bf16.mxu0 0
  %124 = vmatpush2.bf16.msra.mxu0 0
  %125 = vmatprep.subr.bf16.mxu0 0
  %126 = vmatpush2.bf16.msra.mxu0 0
  %127 = vmatprep.subr.bf16.mxu0 0
  %128 = vmatpush2.bf16.msra.mxu0 0
  %129 = vmatprep.subr.bf16.mxu0 0
  %130 = vmatpush2.bf16.msra.mxu0 0
  %131 = vmatprep.mubr.bf16.mxu0 0
  %132 = vmatmul.mubr.bf16.gmra.mxu0 %v94
  %v133 = vpop.f32.mrf.mxu0
  %v134 = vadd.f32 0.0, %v133
  %v135 = vpop.f32.mrf.mxu0
  %v136 = vpop.f32.mrf.mxu0
  %v137 = vadd.f32 0.0, %v136
  %v138 = vpop.f32.mrf.mxu0
  %139 = vmatprep.mubr.bf16.mxu0 0
  %140 = vmatmul.mubr.bf16.gmra.mxu0 %v97
  %v141 = vpop.f32.mrf.mxu0
  %v142 = vadd.f32 0.0, %v141
  %v143 = vpop.f32.mrf.mxu0
  %v144 = vpop.f32.mrf.mxu0
  %v145 = vpop.f32.mrf.mxu0
  %146 = vdwg.mxu0
  %v147 = vld [vmem:[%s1] sm:$0xff]
  %v148 = vld [vmem:[%s1 + $0x8] sm:$0xff]
  %v149 = vld [vmem:[%s1 + $0x10] sm:$0xff]
  %v150 = vld [vmem:[%s1 + $0x18] sm:$0xff]
  %v151 = vld [vmem:[%s1 + $0x20] sm:$0xff]
  %v152 = vld [vmem:[%s1 + $0x28] sm:$0xff]
  %v153 = vld [vmem:[%s1 + $0x30] sm:$0xff]
  %v154 = vld [vmem:[%s1 + $0x38] sm:$0xff]
  %v155 = vld [vmem:[%s1 + $0x40] sm:$0xff]
  %v156 = vld [vmem:[%s1 + $0x48] sm:$0xff]
  %v157 = vld [vmem:[%s1 + $0x50] sm:$0xff]
  %v158 = vld [vmem:[%s1 + $0x58] sm:$0xff]
  %v159 = vld [vmem:[%s1 + $0x60] sm:$0xff]
  %v160 = vld [vmem:[%s1 + $0x68] sm:$0xff]
  %v161 = vld [vmem:[%s1 + $0x70] sm:$0xff]
  %v162 = vld [vmem:[%s1 + $0x78] sm:$0xff]
  %v163 = vpack.c.bf16 %v149, %v147
  %v164 = vpack.c.bf16 %v150, %v148
  %v165 = vpack.c.bf16 %v153, %v151
  %v166 = vpack.c.bf16 %v154, %v152
  %v167 = vpack.c.bf16 %v157, %v155
  %v168 = vpack.c.bf16 %v158, %v156
  %v169 = vpack.c.bf16 %v161, %v159
  %v170 = vpack.c.bf16 %v162, %v160
  %v174 = vunpack.c.l.b16 %v42
  %v175 = vunpack.c.l.b16 %v43
  %v176 = vunpack.c.l.b16 %v44
  %v177 = vpack.c.b16 %v175, %v174
  %v178 = vpack.c.b16 %v176, %v176
  %v180 = vsel %vm92, %v177, 0
  %v183 = vsel %vm92, %v178, 0
  %185 = vmatprep.subr.bf16.mxu0 0
  %186 = vmatpush1.bf16.msra.mxu0 0
  %187 = vmatprep.subr.bf16.mxu0 0
  %188 = vmatpush1.bf16.msra.mxu0 0
  %189 = vmatprep.subr.bf16.mxu0 0
  %190 = vmatpush1.bf16.msra.mxu0 0
  %191 = vmatprep.subr.bf16.mxu0 0
  %192 = vmatpush1.bf16.msra.mxu0 0
  %193 = vmatprep.subr.bf16.mxu0 %v170
  %194 = vmatpush1.bf16.msra.mxu0 %v169
  %195 = vmatprep.subr.bf16.mxu0 %v168
  %196 = vmatpush1.bf16.msra.mxu0 %v167
  %197 = vmatprep.subr.bf16.mxu0 %v166
  %198 = vmatpush1.bf16.msra.mxu0 %v165
  %199 = vmatprep.subr.bf16.mxu0 %v164
  %200 = vmatpush1.bf16.msra.mxu0 %v163
  %201 = vmatprep.subr.bf16.mxu0 0
  %202 = vmatpush2.bf16.msra.mxu0 0
  %203 = vmatprep.subr.bf16.mxu0 0
  %204 = vmatpush2.bf16.msra.mxu0 0
  %205 = vmatprep.subr.bf16.mxu0 0
  %206 = vmatpush2.bf16.msra.mxu0 0
  %207 = vmatprep.subr.bf16.mxu0 0
  %208 = vmatpush2.bf16.msra.mxu0 0
  %209 = vmatprep.subr.bf16.mxu0 0
  %210 = vmatpush2.bf16.msra.mxu0 0
  %211 = vmatprep.subr.bf16.mxu0 0
  %212 = vmatpush2.bf16.msra.mxu0 0
  %213 = vmatprep.subr.bf16.mxu0 0
  %214 = vmatpush2.bf16.msra.mxu0 0
  %215 = vmatprep.subr.bf16.mxu0 0
  %216 = vmatpush2.bf16.msra.mxu0 0
  %217 = vmatprep.mubr.bf16.mxu0 0
  %218 = vmatmul.mubr.bf16.gmra.mxu0 %v180
  %v219 = vpop.f32.mrf.mxu0
  %v220 = vadd.f32 0.0, %v219
  %v221 = vpop.f32.mrf.mxu0
  %v222 = vadd.f32 0.0, %v221
  %v223 = vpop.f32.mrf.mxu0
  %v224 = vadd.f32 0.0, %v223
  %v225 = vpop.f32.mrf.mxu0
  %v226 = vadd.f32 0.0, %v225
  %227 = vmatprep.mubr.bf16.mxu0 0
  %228 = vmatmul.mubr.bf16.gmra.mxu0 %v183
  %v229 = vpop.f32.mrf.mxu0
  %v230 = vadd.f32 0.0, %v229
  %v231 = vpop.f32.mrf.mxu0
  %v232 = vadd.f32 0.0, %v231
  %v233 = vpop.f32.mrf.mxu0
  %v234 = vpop.f32.mrf.mxu0
  %235 = vdwg.mxu0
  %v237 = vsel %vm92, %v134, 0
  %v240 = vsel %vm92, %v137, 0
  %v243 = vsel %vm92, %v142, 0
  %245 = vmatprep.subr.mxu0 0.0
  %246 = vmatpush1.msra.mxu0 0.0
  %247 = vmatprep.subr.mxu0 0.0
  %248 = vmatpush1.msra.mxu0 0.0
  %249 = vmatprep.subr.mxu0 0.0
  %250 = vmatpush1.msra.mxu0 0.0
  %251 = vmatprep.subr.mxu0 0.0
  %252 = vmatpush1.msra.mxu0 0.0
  %253 = vmatprep.subr.mxu0 0.0
  %254 = vmatpush1.msra.mxu0 0.0
  %255 = vmatprep.subr.mxu0 0.0
  %256 = vmatpush1.msra.mxu0 0.0
  %257 = vmatprep.subr.mxu0 0.0
  %258 = vmatpush1.msra.mxu0 0.0
  %259 = vmatprep.subr.mxu0 0.0
  %260 = vmatpush1.msra.mxu0 0.0
  %261 = vmatprep.subr.mxu0 %v60
  %262 = vmatpush1.msra.mxu0 %v59
  %263 = vmatprep.subr.mxu0 %v58
  %264 = vmatpush1.msra.mxu0 %v57
  %265 = vmatprep.subr.mxu0 %v56
  %266 = vmatpush1.msra.mxu0 %v55
  %267 = vmatprep.subr.mxu0 %v54
  %268 = vmatpush1.msra.mxu0 %v53
  %269 = vmatprep.subr.mxu0 %v52
  %270 = vmatpush1.msra.mxu0 %v51
  %271 = vmatprep.subr.mxu0 %v50
  %272 = vmatpush1.msra.mxu0 %v49
  %273 = vmatprep.subr.mxu0 %v48
  %274 = vmatpush1.msra.mxu0 %v47
  %275 = vmatprep.subr.mxu0 %v46
  %276 = vmatpush1.msra.mxu0 %v45
  %277 = vmatprep.subr.mxu0 0.0
  %278 = vmatpush2.msra.mxu0 0.0
  %279 = vmatprep.subr.mxu0 0.0
  %280 = vmatpush2.msra.mxu0 0.0
  %281 = vmatprep.subr.mxu0 0.0
  %282 = vmatpush2.msra.mxu0 0.0
  %283 = vmatprep.subr.mxu0 0.0
  %284 = vmatpush2.msra.mxu0 0.0
  %285 = vmatprep.subr.mxu0 0.0
  %286 = vmatpush2.msra.mxu0 0.0
  %287 = vmatprep.subr.mxu0 0.0
  %288 = vmatpush2.msra.mxu0 0.0
  %289 = vmatprep.subr.mxu0 0.0
  %290 = vmatpush2.msra.mxu0 0.0
  %291 = vmatprep.subr.mxu0 0.0
  %292 = vmatpush2.msra.mxu0 0.0
  %293 = vmatprep.subr.mxu0 0.0
  %294 = vmatpush2.msra.mxu0 0.0
  %295 = vmatprep.subr.mxu0 0.0
  %296 = vmatpush2.msra.mxu0 0.0
  %297 = vmatprep.subr.mxu0 0.0
  %298 = vmatpush2.msra.mxu0 0.0
  %299 = vmatprep.subr.mxu0 0.0
  %300 = vmatpush2.msra.mxu0 0.0
  %301 = vmatprep.subr.mxu0 0.0
  %302 = vmatpush2.msra.mxu0 0.0
  %303 = vmatprep.subr.mxu0 0.0
  %304 = vmatpush2.msra.mxu0 0.0
  %305 = vmatprep.subr.mxu0 0.0
  %306 = vmatpush2.msra.mxu0 0.0
  %307 = vmatprep.subr.mxu0 0.0
  %308 = vmatpush2.msra.mxu0 0.0
  %309 = vmatprep.mubr.f32.mxu0 0.0
  %310 = vmatmul.mubr.f32.gmra.mxu0 %v237
  %v311 = vpop.f32.mrf.mxu0
  %v312 = vadd.f32 %v220, %v311
  %v313 = vpop.f32.mrf.mxu0
  %v314 = vadd.f32 %v222, %v313
  %315 = vmatprep.mubr.f32.mxu0 0.0
  %316 = vmatmul.mubr.f32.gmra.mxu0 %v240
  %v317 = vpop.f32.mrf.mxu0
  %v318 = vadd.f32 %v224, %v317
  %v319 = vpop.f32.mrf.mxu0
  %v320 = vadd.f32 %v226, %v319
  %321 = vmatprep.mubr.f32.mxu0 0.0
  %322 = vmatmul.mubr.f32.gmra.mxu0 %v243
  %v323 = vpop.f32.mrf.mxu0
  %v324 = vadd.f32 %v230, %v323
  %v325 = vpop.f32.mrf.mxu0
  %v326 = vadd.f32 %v232, %v325
  %327 = vdwg.mxu0
  %s328 = scalar_lea.vmem %s0, 64
  %v329 = vld [vmem:[%s328] sm:$0xff]
  %v330 = vld [vmem:[%s328 + $0x8] sm:$0xff]
  %v331 = vld [vmem:[%s328 + $0x10] sm:$0xff]
  %v332 = vld [vmem:[%s328 + $0x18] sm:$0xff]
  %v333 = vld [vmem:[%s328 + $0x20] sm:$0xff]
  %v334 = vld [vmem:[%s328 + $0x28] sm:$0xff]
  %v335 = vld [vmem:[%s328 + $0x30] sm:$0xff]
  %v336 = vld [vmem:[%s328 + $0x38] sm:$0xff]
  %v337 = vpack.c.bf16 %v330, %v329
  %v338 = vpack.c.bf16 %v332, %v331
  %v339 = vpack.c.bf16 %v334, %v333
  %v340 = vpack.c.bf16 %v336, %v335
  %341 = vmatprep.subr.bf16.mxu0 0
  %342 = vmatpush1.bf16.msra.mxu0 0
  %343 = vmatprep.subr.bf16.mxu0 0
  %344 = vmatpush1.bf16.msra.mxu0 0
  %345 = vmatprep.subr.bf16.mxu0 0
  %346 = vmatpush1.bf16.msra.mxu0 0
  %347 = vmatprep.subr.bf16.mxu0 0
  %348 = vmatpush1.bf16.msra.mxu0 0
  %349 = vmatprep.subr.bf16.mxu0 0
  %350 = vmatpush1.bf16.msra.mxu0 %v340
  %351 = vmatprep.subr.bf16.mxu0 0
  %352 = vmatpush1.bf16.msra.mxu0 %v339
  %353 = vmatprep.subr.bf16.mxu0 0
  %354 = vmatpush1.bf16.msra.mxu0 %v338
  %355 = vmatprep.subr.bf16.mxu0 0
  %356 = vmatpush1.bf16.msra.mxu0 %v337
  %357 = vmatprep.subr.bf16.mxu0 0
  %358 = vmatpush2.bf16.msra.mxu0 0
  %359 = vmatprep.subr.bf16.mxu0 0
  %360 = vmatpush2.bf16.msra.mxu0 0
  %361 = vmatprep.subr.bf16.mxu0 0
  %362 = vmatpush2.bf16.msra.mxu0 0
  %363 = vmatprep.subr.bf16.mxu0 0
  %364 = vmatpush2.bf16.msra.mxu0 0
  %365 = vmatprep.subr.bf16.mxu0 0
  %366 = vmatpush2.bf16.msra.mxu0 0
  %367 = vmatprep.subr.bf16.mxu0 0
  %368 = vmatpush2.bf16.msra.mxu0 0
  %369 = vmatprep.subr.bf16.mxu0 0
  %370 = vmatpush2.bf16.msra.mxu0 0
  %371 = vmatprep.subr.bf16.mxu0 0
  %372 = vmatpush2.bf16.msra.mxu0 0
  %373 = vmatprep.mubr.bf16.mxu0 0
  %374 = vmatmul.mubr.bf16.gmra.mxu0 %v94
  %v375 = vpop.f32.mrf.mxu0
  %v376 = vadd.f32 0.0, %v375
  %v377 = vpop.f32.mrf.mxu0
  %v378 = vpop.f32.mrf.mxu0
  %v379 = vadd.f32 0.0, %v378
  %v380 = vpop.f32.mrf.mxu0
  %381 = vmatprep.mubr.bf16.mxu0 0
  %382 = vmatmul.mubr.bf16.gmra.mxu0 %v97
  %v383 = vpop.f32.mrf.mxu0
  %v384 = vadd.f32 0.0, %v383
  %v385 = vpop.f32.mrf.mxu0
  %v386 = vpop.f32.mrf.mxu0
  %v387 = vpop.f32.mrf.mxu0
  %388 = vdwg.mxu0
  %s389 = scalar_lea.vmem %s1, 128
  %v390 = vld [vmem:[%s389] sm:$0xff]
  %v391 = vld [vmem:[%s389 + $0x8] sm:$0xff]
  %v392 = vld [vmem:[%s389 + $0x10] sm:$0xff]
  %v393 = vld [vmem:[%s389 + $0x18] sm:$0xff]
  %v394 = vld [vmem:[%s389 + $0x20] sm:$0xff]
  %v395 = vld [vmem:[%s389 + $0x28] sm:$0xff]
  %v396 = vld [vmem:[%s389 + $0x30] sm:$0xff]
  %v397 = vld [vmem:[%s389 + $0x38] sm:$0xff]
  %v398 = vld [vmem:[%s389 + $0x40] sm:$0xff]
  %v399 = vld [vmem:[%s389 + $0x48] sm:$0xff]
  %v400 = vld [vmem:[%s389 + $0x50] sm:$0xff]
  %v401 = vld [vmem:[%s389 + $0x58] sm:$0xff]
  %v402 = vld [vmem:[%s389 + $0x60] sm:$0xff]
  %v403 = vld [vmem:[%s389 + $0x68] sm:$0xff]
  %v404 = vld [vmem:[%s389 + $0x70] sm:$0xff]
  %v405 = vld [vmem:[%s389 + $0x78] sm:$0xff]
  %v406 = vpack.c.bf16 %v392, %v390
  %v407 = vpack.c.bf16 %v393, %v391
  %v408 = vpack.c.bf16 %v396, %v394
  %v409 = vpack.c.bf16 %v397, %v395
  %v410 = vpack.c.bf16 %v400, %v398
  %v411 = vpack.c.bf16 %v401, %v399
  %v412 = vpack.c.bf16 %v404, %v402
  %v413 = vpack.c.bf16 %v405, %v403
  %414 = vmatprep.subr.bf16.mxu0 0
  %415 = vmatpush1.bf16.msra.mxu0 0
  %416 = vmatprep.subr.bf16.mxu0 0
  %417 = vmatpush1.bf16.msra.mxu0 0
  %418 = vmatprep.subr.bf16.mxu0 0
  %419 = vmatpush1.bf16.msra.mxu0 0
  %420 = vmatprep.subr.bf16.mxu0 0
  %421 = vmatpush1.bf16.msra.mxu0 0
  %422 = vmatprep.subr.bf16.mxu0 %v413
  %423 = vmatpush1.bf16.msra.mxu0 %v412
  %424 = vmatprep.subr.bf16.mxu0 %v411
  %425 = vmatpush1.bf16.msra.mxu0 %v410
  %426 = vmatprep.subr.bf16.mxu0 %v409
  %427 = vmatpush1.bf16.msra.mxu0 %v408
  %428 = vmatprep.subr.bf16.mxu0 %v407
  %429 = vmatpush1.bf16.msra.mxu0 %v406
  %430 = vmatprep.subr.bf16.mxu0 0
  %431 = vmatpush2.bf16.msra.mxu0 0
  %432 = vmatprep.subr.bf16.mxu0 0
  %433 = vmatpush2.bf16.msra.mxu0 0
  %434 = vmatprep.subr.bf16.mxu0 0
  %435 = vmatpush2.bf16.msra.mxu0 0
  %436 = vmatprep.subr.bf16.mxu0 0
  %437 = vmatpush2.bf16.msra.mxu0 0
  %438 = vmatprep.subr.bf16.mxu0 0
  %439 = vmatpush2.bf16.msra.mxu0 0
  %440 = vmatprep.subr.bf16.mxu0 0
  %441 = vmatpush2.bf16.msra.mxu0 0
  %442 = vmatprep.subr.bf16.mxu0 0
  %443 = vmatpush2.bf16.msra.mxu0 0
  %444 = vmatprep.subr.bf16.mxu0 0
  %445 = vmatpush2.bf16.msra.mxu0 0
  %446 = vmatprep.mubr.bf16.mxu0 0
  %447 = vmatmul.mubr.bf16.gmra.mxu0 %v180
  %v448 = vpop.f32.mrf.mxu0
  %v449 = vadd.f32 0.0, %v448
  %v450 = vpop.f32.mrf.mxu0
  %v451 = vadd.f32 0.0, %v450
  %v452 = vpop.f32.mrf.mxu0
  %v453 = vadd.f32 0.0, %v452
  %v454 = vpop.f32.mrf.mxu0
  %v455 = vadd.f32 0.0, %v454
  %456 = vmatprep.mubr.bf16.mxu0 0
  %457 = vmatmul.mubr.bf16.gmra.mxu0 %v183
  %v458 = vpop.f32.mrf.mxu0
  %v459 = vadd.f32 0.0, %v458
  %v460 = vpop.f32.mrf.mxu0
  %v461 = vadd.f32 0.0, %v460
  %v462 = vpop.f32.mrf.mxu0
  %v463 = vpop.f32.mrf.mxu0
  %464 = vdwg.mxu0
  %v466 = vsel %vm92, %v376, 0
  %v469 = vsel %vm92, %v379, 0
  %v472 = vsel %vm92, %v384, 0
  %474 = vmatprep.subr.mxu0 0.0
  %475 = vmatpush1.msra.mxu0 0.0
  %476 = vmatprep.subr.mxu0 0.0
  %477 = vmatpush1.msra.mxu0 0.0
  %478 = vmatprep.subr.mxu0 0.0
  %479 = vmatpush1.msra.mxu0 0.0
  %480 = vmatprep.subr.mxu0 0.0
  %481 = vmatpush1.msra.mxu0 0.0
  %482 = vmatprep.subr.mxu0 0.0
  %483 = vmatpush1.msra.mxu0 0.0
  %484 = vmatprep.subr.mxu0 0.0
  %485 = vmatpush1.msra.mxu0 0.0
  %486 = vmatprep.subr.mxu0 0.0
  %487 = vmatpush1.msra.mxu0 0.0
  %488 = vmatprep.subr.mxu0 0.0
  %489 = vmatpush1.msra.mxu0 0.0
  %490 = vmatprep.subr.mxu0 %v60
  %491 = vmatpush1.msra.mxu0 %v59
  %492 = vmatprep.subr.mxu0 %v58
  %493 = vmatpush1.msra.mxu0 %v57
  %494 = vmatprep.subr.mxu0 %v56
  %495 = vmatpush1.msra.mxu0 %v55
  %496 = vmatprep.subr.mxu0 %v54
  %497 = vmatpush1.msra.mxu0 %v53
  %498 = vmatprep.subr.mxu0 %v52
  %499 = vmatpush1.msra.mxu0 %v51
  %500 = vmatprep.subr.mxu0 %v50
  %501 = vmatpush1.msra.mxu0 %v49
  %502 = vmatprep.subr.mxu0 %v48
  %503 = vmatpush1.msra.mxu0 %v47
  %504 = vmatprep.subr.mxu0 %v46
  %505 = vmatpush1.msra.mxu0 %v45
  %506 = vmatprep.subr.mxu0 0.0
  %507 = vmatpush2.msra.mxu0 0.0
  %508 = vmatprep.subr.mxu0 0.0
  %509 = vmatpush2.msra.mxu0 0.0
  %510 = vmatprep.subr.mxu0 0.0
  %511 = vmatpush2.msra.mxu0 0.0
  %512 = vmatprep.subr.mxu0 0.0
  %513 = vmatpush2.msra.mxu0 0.0
  %514 = vmatprep.subr.mxu0 0.0
  %515 = vmatpush2.msra.mxu0 0.0
  %516 = vmatprep.subr.mxu0 0.0
  %517 = vmatpush2.msra.mxu0 0.0
  %518 = vmatprep.subr.mxu0 0.0
  %519 = vmatpush2.msra.mxu0 0.0
  %520 = vmatprep.subr.mxu0 0.0
  %521 = vmatpush2.msra.mxu0 0.0
  %522 = vmatprep.subr.mxu0 0.0
  %523 = vmatpush2.msra.mxu0 0.0
  %524 = vmatprep.subr.mxu0 0.0
  %525 = vmatpush2.msra.mxu0 0.0
  %526 = vmatprep.subr.mxu0 0.0
  %527 = vmatpush2.msra.mxu0 0.0
  %528 = vmatprep.subr.mxu0 0.0
  %529 = vmatpush2.msra.mxu0 0.0
  %530 = vmatprep.subr.mxu0 0.0
  %531 = vmatpush2.msra.mxu0 0.0
  %532 = vmatprep.subr.mxu0 0.0
  %533 = vmatpush2.msra.mxu0 0.0
  %534 = vmatprep.subr.mxu0 0.0
  %535 = vmatpush2.msra.mxu0 0.0
  %536 = vmatprep.subr.mxu0 0.0
  %537 = vmatpush2.msra.mxu0 0.0
  %538 = vmatprep.mubr.f32.mxu0 0.0
  %539 = vmatmul.mubr.f32.gmra.mxu0 %v466
  %v540 = vpop.f32.mrf.mxu0
  %v541 = vadd.f32 %v449, %v540
  %v542 = vpop.f32.mrf.mxu0
  %v543 = vadd.f32 %v451, %v542
  %544 = vmatprep.mubr.f32.mxu0 0.0
  %545 = vmatmul.mubr.f32.gmra.mxu0 %v469
  %v546 = vpop.f32.mrf.mxu0
  %v547 = vadd.f32 %v453, %v546
  %v548 = vpop.f32.mrf.mxu0
  %v549 = vadd.f32 %v455, %v548
  %550 = vmatprep.mubr.f32.mxu0 0.0
  %551 = vmatmul.mubr.f32.gmra.mxu0 %v472
  %v552 = vpop.f32.mrf.mxu0
  %v553 = vadd.f32 %v459, %v552
  %v554 = vpop.f32.mrf.mxu0
  %v555 = vadd.f32 %v461, %v554
  %556 = vdwg.mxu0
  %v557 = vadd.f32 %v312, %v314
  %558 = vadd.xlane.f32.xlu0 %v557
  %v559 = vpop.xlane.xlu0 %558
  %v560 = vadd.f32 %v318, %v320
  %561 = vadd.xlane.f32.xlu0 %v560
  %v562 = vpop.xlane.xlu0 %561
  %vm563 = vcmask 1042432
  %v564 = vsel %vm563, %v324, 0.0
  %v565 = vsel %vm563, %v326, 0.0
  %v566 = vadd.f32 %v564, %v565
  %567 = vadd.xlane.f32.xlu0 %v566
  %v568 = vpop.xlane.xlu0 %567
  %v569 = vadd.f32 %v559, 0.0
  %v570 = vadd.f32 %v562, 0.0
  %v571 = vadd.f32 %v568, 0.0
  %v572 = vadd.f32 %v541, %v543
  %573 = vadd.xlane.f32.xlu0 %v572
  %v574 = vpop.xlane.xlu0 %573
  %v575 = vadd.f32 %v547, %v549
  %576 = vadd.xlane.f32.xlu0 %v575
  %v577 = vpop.xlane.xlu0 %576
  %v578 = vsel %vm563, %v553, 0.0
  %v579 = vsel %vm563, %v555, 0.0
  %v580 = vadd.f32 %v578, %v579
  %581 = vadd.xlane.f32.xlu0 %v580
  %v582 = vpop.xlane.xlu0 %581
  %v583 = vadd.f32 %v569, %v574
  %v584 = vadd.f32 %v570, %v577
  %v585 = vadd.f32 %v571, %v582
  %v586 = vmul.f32 %v583, 0.001953125
  %v587 = vmul.f32 %v584, 0.001953125
  %v588 = vmul.f32 %v585, 0.001953125
  %v589 = vsub.f32 %v312, %v586
  %v590 = vsub.f32 %v314, %v586
  %v591 = vsub.f32 %v318, %v587
  %v592 = vsub.f32 %v320, %v587
  %v593 = vsub.f32 %v324, %v588
  %v594 = vsub.f32 %v326, %v588
  %v595 = vmul.f32 %v589, %v589
  %v596 = vmul.f32 %v590, %v590
  %v597 = vmul.f32 %v591, %v591
  %v598 = vmul.f32 %v592, %v592
  %v599 = vmul.f32 %v593, %v593
  %v600 = vmul.f32 %v594, %v594
  %v601 = vadd.f32 %v595, %v596
  %602 = vadd.xlane.f32.xlu0 %v601
  %v603 = vpop.xlane.xlu0 %602
  %v604 = vadd.f32 %v597, %v598
  %605 = vadd.xlane.f32.xlu0 %v604
  %v606 = vpop.xlane.xlu0 %605
  %v607 = vsel %vm563, %v599, 0.0
  %v608 = vsel %vm563, %v600, 0.0
  %v609 = vadd.f32 %v607, %v608
  %610 = vadd.xlane.f32.xlu0 %v609
  %v611 = vpop.xlane.xlu0 %610
  %v612 = vadd.f32 %v603, 0.0
  %v613 = vadd.f32 %v606, 0.0
  %v614 = vadd.f32 %v611, 0.0
  %v615 = vsub.f32 %v541, %v586
  %v616 = vsub.f32 %v543, %v586
  %v617 = vsub.f32 %v547, %v587
  %v618 = vsub.f32 %v549, %v587
  %v619 = vsub.f32 %v553, %v588
  %v620 = vsub.f32 %v555, %v588
  %v621 = vmul.f32 %v615, %v615
  %v622 = vmul.f32 %v616, %v616
  %v623 = vmul.f32 %v617, %v617
  %v624 = vmul.f32 %v618, %v618
  %v625 = vmul.f32 %v619, %v619
  %v626 = vmul.f32 %v620, %v620
  %v627 = vadd.f32 %v621, %v622
  %628 = vadd.xlane.f32.xlu0 %v627
  %v629 = vpop.xlane.xlu0 %628
  %v630 = vadd.f32 %v623, %v624
  %631 = vadd.xlane.f32.xlu0 %v630
  %v632 = vpop.xlane.xlu0 %631
  %v633 = vsel %vm563, %v625, 0.0
  %v634 = vsel %vm563, %v626, 0.0
  %v635 = vadd.f32 %v633, %v634
  %636 = vadd.xlane.f32.xlu0 %v635
  %v637 = vpop.xlane.xlu0 %636
  %v638 = vadd.f32 %v612, %v629
  %v639 = vadd.f32 %v613, %v632
  %v640 = vadd.f32 %v614, %v637
  %v641 = vmul.f32 %v638, 0.001953125
  %v642 = vmul.f32 %v639, 0.001953125
  %v643 = vmul.f32 %v640, 0.001953125
  %v644 = vld [vmem:[%s8] sm:$0xff]
  %v645 = vld [vmem:[%s8 + $0x8] sm:$0xff]
  %v646 = vld [vmem:[%s8 + $0x10] sm:$0x7]
  %v647 = vadd.f32 %v641, 1e-05
  %v648 = vadd.f32 %v642, 1e-05
  %v649 = vadd.f32 %v643, 1e-05
  %v650 = vrsqrt.pop %v647
  %v651 = vrsqrt.pop %v648
  %v652 = vrsqrt.pop %v649
  %v653 = vmul.f32 %v644, %v650
  %v654 = vmul.f32 %v645, %v651
  %v655 = vmul.f32 %v646, %v652
  %s656 = scalar_lea.vmem %s8, 24
  %v657 = vld [vmem:[%s656] sm:$0xff]
  %v658 = vld [vmem:[%s656 + $0x8] sm:$0xff]
  %v659 = vld [vmem:[%s656 + $0x10] sm:$0x7]
  %v660 = vmul.f32 %v586, %v653
  %v661 = vmul.f32 %v587, %v654
  %v662 = vmul.f32 %v588, %v655
  %v663 = vsub.f32 %v657, %v660
  %v664 = vsub.f32 %v658, %v661
  %v665 = vsub.f32 %v659, %v662
  %667 = vset.pattern.permute.xlu0 0
  %668 = vperm.xlu0 %667, %v653
  %v669 = vpop.permute.xlu0 %668
  %672 = vset.pattern.permute.xlu0 0
  %673 = vperm.xlu0 %672, %v654
  %v674 = vpop.permute.xlu0 %673
  %677 = vset.pattern.permute.xlu0 0
  %678 = vperm.xlu0 %677, %v655
  %v679 = vpop.permute.xlu0 %678
  %v681 = vmul.f32 %v312, %v669
  %v682 = vmul.f32 %v314, %v669
  %v683 = vmul.f32 %v318, %v674
  %v684 = vmul.f32 %v320, %v674
  %v685 = vmul.f32 %v324, %v679
  %v686 = vmul.f32 %v326, %v679
  %688 = vset.pattern.permute.xlu0 0
  %689 = vperm.xlu0 %688, %v663
  %v690 = vpop.permute.xlu0 %689
  %693 = vset.pattern.permute.xlu0 0
  %694 = vperm.xlu0 %693, %v664
  %v695 = vpop.permute.xlu0 %694
  %698 = vset.pattern.permute.xlu0 0
  %699 = vperm.xlu0 %698, %v665
  %v700 = vpop.permute.xlu0 %699
  %v702 = vadd.f32 %v681, %v690
  %v703 = vadd.f32 %v682, %v690
  %v704 = vadd.f32 %v683, %v695
  %v705 = vadd.f32 %v684, %v695
  %v706 = vadd.f32 %v685, %v700
  %v707 = vadd.f32 %v686, %v700
  %v708 = vmax.f32 %v702, 0.0
  %v709 = vmax.f32 %v703, 0.0
  %v710 = vmax.f32 %v704, 0.0
  %v711 = vmax.f32 %v705, 0.0
  %v712 = vmax.f32 %v706, 0.0
  %v713 = vmax.f32 %v707, 0.0
  %v714 = vmin.f32 %v708, 6.0
  %v715 = vmin.f32 %v709, 6.0
  %v716 = vmin.f32 %v710, 6.0
  %v717 = vmin.f32 %v711, 6.0
  %v718 = vmin.f32 %v712, 6.0
  %v719 = vmin.f32 %v713, 6.0
  %v720 = vmul.f32 %v541, %v669
  %v721 = vmul.f32 %v543, %v669
  %v722 = vmul.f32 %v547, %v674
  %v723 = vmul.f32 %v549, %v674
  %v724 = vmul.f32 %v553, %v679
  %v725 = vmul.f32 %v555, %v679
  %v726 = vadd.f32 %v720, %v690
  %v727 = vadd.f32 %v721, %v690
  %v728 = vadd.f32 %v722, %v695
  %v729 = vadd.f32 %v723, %v695
  %v730 = vadd.f32 %v724, %v700
  %v731 = vadd.f32 %v725, %v700
  %v732 = vmax.f32 %v726, 0.0
  %v733 = vmax.f32 %v727, 0.0
  %v734 = vmax.f32 %v728, 0.0
  %v735 = vmax.f32 %v729, 0.0
  %v736 = vmax.f32 %v730, 0.0
  %v737 = vmax.f32 %v731, 0.0
  %v738 = vmin.f32 %v732, 6.0
  %v739 = vmin.f32 %v733, 6.0
  %v740 = vmin.f32 %v734, 6.0
  %v741 = vmin.f32 %v735, 6.0
  %v742 = vmin.f32 %v736, 6.0
  %v743 = vmin.f32 %v737, 6.0
  %747 = vrot.lane.b32.xlu0 %v715, 17
  %v748 = vpop.permute.xlu0 %747
  %749 = vrot.lane.b32.xlu0 %v717, 17
  %v750 = vpop.permute.xlu0 %749
  %751 = vrot.lane.b32.xlu0 %v719, 17
  %v752 = vpop.permute.xlu0 %751
  %759 = vrot.lane.b32.xlu0 %v714, 17
  %v760 = vpop.permute.xlu0 %759
  %761 = vrot.lane.b32.xlu0 %v716, 17
  %v762 = vpop.permute.xlu0 %761
  %763 = vrot.lane.b32.xlu0 %v718, 17
  %v764 = vpop.permute.xlu0 %763
  %vm765 = vcmask 138240
  %v766 = vsel %vm765, %v760, %v748
  %v767 = vsel %vm765, %v762, %v750
  %v768 = vsel %vm765, %v764, %v752
  %v775 = vsel %vm765, %v748, %v760
  %v776 = vsel %vm765, %v750, %v762
  %v777 = vsel %vm765, %v752, %v764
  %v778 = vld [vmem:[%s6] sm:$0x3]
  %v780 = vlaneseq
  %v781 = vshrl.u32 %v780, 7
  %v782 = vsub.s32 0, %v781
  %v783 = vrot.slane %v778, %v782
  %v784 = vlaneseq
  %v785 = vshrl.u32 %v784, 7
  %v786 = vsub.s32 1, %v785
  %v787 = vrot.slane %v778, %v786
  %v790 = vmul.f32 %v775, %v783
  %v791 = vmul.f32 %v766, %v787
  %v792 = vmul.f32 %v776, %v783
  %v793 = vmul.f32 %v767, %v787
  %v794 = vmul.f32 %v777, %v783
  %v795 = vmul.f32 %v768, %v787
  %797 = vset.pattern.permute.xlu0 0
  %798 = vperm.xlu0 %797, %v61
  %v799 = vpop.permute.xlu0 %798
  %802 = vset.pattern.permute.xlu0 0
  %803 = vperm.xlu0 %802, %v62
  %v804 = vpop.permute.xlu0 %803
  %807 = vset.pattern.permute.xlu0 0
  %808 = vperm.xlu0 %807, %v63
  %v809 = vpop.permute.xlu0 %808
  %v811 = vmul.f32 %v790, %v799
  %v812 = vmul.f32 %v791, %v799
  %v813 = vmul.f32 %v792, %v804
  %v814 = vmul.f32 %v793, %v804
  %v815 = vmul.f32 %v794, %v809
  %v816 = vmul.f32 %v795, %v809
  %v817 = vadd.f32 %v811, 0.0
  %v818 = vadd.f32 %v812, 0.0
  %v819 = vadd.f32 %v813, 0.0
  %v820 = vadd.f32 %v814, 0.0
  %v821 = vadd.f32 %v815, 0.0
  %v822 = vadd.f32 %v816, 0.0
  %823 = vrot.lane.b32.xlu0 %v715, 16
  %v824 = vpop.permute.xlu0 %823
  %825 = vrot.lane.b32.xlu0 %v717, 16
  %v826 = vpop.permute.xlu0 %825
  %827 = vrot.lane.b32.xlu0 %v719, 16
  %v828 = vpop.permute.xlu0 %827
  %832 = vrot.lane.b32.xlu0 %v714, 16
  %v833 = vpop.permute.xlu0 %832
  %834 = vrot.lane.b32.xlu0 %v716, 16
  %v835 = vpop.permute.xlu0 %834
  %836 = vrot.lane.b32.xlu0 %v718, 16
  %v837 = vpop.permute.xlu0 %836
  %vm838 = vcmask 130048
  %v839 = vsel %vm838, %v833, %v824
  %v840 = vsel %vm838, %v835, %v826
  %v841 = vsel %vm838, %v837, %v828
  %v848 = vsel %vm838, %v824, %v833
  %v849 = vsel %vm838, %v826, %v835
  %v850 = vsel %vm838, %v828, %v837
  %s851 = scalar_lea.vmem %s6, 2
  %v852 = vld [vmem:[%s851] sm:$0x3]
  %v854 = vlaneseq
  %v855 = vshrl.u32 %v854, 7
  %v856 = vsub.s32 0, %v855
  %v857 = vrot.slane %v852, %v856
  %v858 = vlaneseq
  %v859 = vshrl.u32 %v858, 7
  %v860 = vsub.s32 1, %v859
  %v861 = vrot.slane %v852, %v860
  %v864 = vmul.f32 %v848, %v857
  %v865 = vmul.f32 %v839, %v861
  %v866 = vmul.f32 %v849, %v857
  %v867 = vmul.f32 %v840, %v861
  %v868 = vmul.f32 %v850, %v857
  %v869 = vmul.f32 %v841, %v861
  %870 = vset.pattern.permute.xlu0 1
  %871 = vperm.xlu0 %870, %v61
  %v872 = vpop.permute.xlu0 %871
  %874 = vset.pattern.permute.xlu0 1
  %875 = vperm.xlu0 %874, %v62
  %v876 = vpop.permute.xlu0 %875
  %878 = vset.pattern.permute.xlu0 1
  %879 = vperm.xlu0 %878, %v63
  %v880 = vpop.permute.xlu0 %879
  %v882 = vmul.f32 %v864, %v872
  %v883 = vmul.f32 %v865, %v872
  %v884 = vmul.f32 %v866, %v876
  %v885 = vmul.f32 %v867, %v876
  %v886 = vmul.f32 %v868, %v880
  %v887 = vmul.f32 %v869, %v880
  %v888 = vadd.f32 %v817, %v882
  %v889 = vadd.f32 %v818, %v883
  %v890 = vadd.f32 %v819, %v884
  %v891 = vadd.f32 %v820, %v885
  %v892 = vadd.f32 %v821, %v886
  %v893 = vadd.f32 %v822, %v887
  %894 = vrot.lane.b32.xlu0 %v715, 15
  %v895 = vpop.permute.xlu0 %894
  %896 = vrot.lane.b32.xlu0 %v717, 15
  %v897 = vpop.permute.xlu0 %896
  %898 = vrot.lane.b32.xlu0 %v719, 15
  %v899 = vpop.permute.xlu0 %898
  %903 = vrot.lane.b32.xlu0 %v714, 15
  %v904 = vpop.permute.xlu0 %903
  %905 = vrot.lane.b32.xlu0 %v716, 15
  %v906 = vpop.permute.xlu0 %905
  %907 = vrot.lane.b32.xlu0 %v718, 15
  %v908 = vpop.permute.xlu0 %907
  %vm909 = vcmask 121856
  %v910 = vsel %vm909, %v904, %v895
  %v911 = vsel %vm909, %v906, %v897
  %v912 = vsel %vm909, %v908, %v899
  %v919 = vsel %vm909, %v895, %v904
  %v920 = vsel %vm909, %v897, %v906
  %v921 = vsel %vm909, %v899, %v908
  %s922 = scalar_lea.vmem %s6, 4
  %v923 = vld [vmem:[%s922] sm:$0x3]
  %v925 = vlaneseq
  %v926 = vshrl.u32 %v925, 7
  %v927 = vsub.s32 0, %v926
  %v928 = vrot.slane %v923, %v927
  %v929 = vlaneseq
  %v930 = vshrl.u32 %v929, 7
  %v931 = vsub.s32 1, %v930
  %v932 = vrot.slane %v923, %v931
  %v935 = vmul.f32 %v919, %v928
  %v936 = vmul.f32 %v910, %v932
  %v937 = vmul.f32 %v920, %v928
  %v938 = vmul.f32 %v911, %v932
  %v939 = vmul.f32 %v921, %v928
  %v940 = vmul.f32 %v912, %v932
  %941 = vset.pattern.permute.xlu0 2
  %942 = vperm.xlu0 %941, %v61
  %v943 = vpop.permute.xlu0 %942
  %945 = vset.pattern.permute.xlu0 2
  %946 = vperm.xlu0 %945, %v62
  %v947 = vpop.permute.xlu0 %946
  %949 = vset.pattern.permute.xlu0 2
  %950 = vperm.xlu0 %949, %v63
  %v951 = vpop.permute.xlu0 %950
  %v953 = vmul.f32 %v935, %v943
  %v954 = vmul.f32 %v936, %v943
  %v955 = vmul.f32 %v937, %v947
  %v956 = vmul.f32 %v938, %v947
  %v957 = vmul.f32 %v939, %v951
  %v958 = vmul.f32 %v940, %v951
  %v959 = vadd.f32 %v888, %v953
  %v960 = vadd.f32 %v889, %v954
  %v961 = vadd.f32 %v890, %v955
  %v962 = vadd.f32 %v891, %v956
  %v963 = vadd.f32 %v892, %v957
  %v964 = vadd.f32 %v893, %v958
  %965 = vrot.lane.b32.xlu0 %v715, 1
  %v966 = vpop.permute.xlu0 %965
  %967 = vrot.lane.b32.xlu0 %v717, 1
  %v968 = vpop.permute.xlu0 %967
  %969 = vrot.lane.b32.xlu0 %v719, 1
  %v970 = vpop.permute.xlu0 %969
  %974 = vrot.lane.b32.xlu0 %v714, 1
  %v975 = vpop.permute.xlu0 %974
  %976 = vrot.lane.b32.xlu0 %v716, 1
  %v977 = vpop.permute.xlu0 %976
  %978 = vrot.lane.b32.xlu0 %v718, 1
  %v979 = vpop.permute.xlu0 %978
  %vm980 = vcmask 7168
  %v981 = vsel %vm980, %v975, %v966
  %v982 = vsel %vm980, %v977, %v968
  %v983 = vsel %vm980, %v979, %v970
  %v990 = vsel %vm980, %v966, %v975
  %v991 = vsel %vm980, %v968, %v977
  %v992 = vsel %vm980, %v970, %v979
  %s993 = scalar_lea.vmem %s6, 6
  %v994 = vld [vmem:[%s993] sm:$0x3]
  %v996 = vlaneseq
  %v997 = vshrl.u32 %v996, 7
  %v998 = vsub.s32 0, %v997
  %v999 = vrot.slane %v994, %v998
  %v1000 = vlaneseq
  %v1001 = vshrl.u32 %v1000, 7
  %v1002 = vsub.s32 1, %v1001
  %v1003 = vrot.slane %v994, %v1002
  %v1006 = vmul.f32 %v990, %v999
  %v1007 = vmul.f32 %v981, %v1003
  %v1008 = vmul.f32 %v991, %v999
  %v1009 = vmul.f32 %v982, %v1003
  %v1010 = vmul.f32 %v992, %v999
  %v1011 = vmul.f32 %v983, %v1003
  %1012 = vset.pattern.permute.xlu0 3
  %1013 = vperm.xlu0 %1012, %v61
  %v1014 = vpop.permute.xlu0 %1013
  %1016 = vset.pattern.permute.xlu0 3
  %1017 = vperm.xlu0 %1016, %v62
  %v1018 = vpop.permute.xlu0 %1017
  %1020 = vset.pattern.permute.xlu0 3
  %1021 = vperm.xlu0 %1020, %v63
  %v1022 = vpop.permute.xlu0 %1021
  %v1024 = vmul.f32 %v1006, %v1014
  %v1025 = vmul.f32 %v1007, %v1014
  %v1026 = vmul.f32 %v1008, %v1018
  %v1027 = vmul.f32 %v1009, %v1018
  %v1028 = vmul.f32 %v1010, %v1022
  %v1029 = vmul.f32 %v1011, %v1022
  %v1030 = vadd.f32 %v959, %v1024
  %v1031 = vadd.f32 %v960, %v1025
  %v1032 = vadd.f32 %v961, %v1026
  %v1033 = vadd.f32 %v962, %v1027
  %v1034 = vadd.f32 %v963, %v1028
  %v1035 = vadd.f32 %v964, %v1029
  %s1036 = scalar_lea.vmem %s6, 8
  %v1037 = vld [vmem:[%s1036] sm:$0x3]
  %v1039 = vlaneseq
  %v1040 = vshrl.u32 %v1039, 7
  %v1041 = vsub.s32 0, %v1040
  %v1042 = vrot.slane %v1037, %v1041
  %v1043 = vlaneseq
  %v1044 = vshrl.u32 %v1043, 7
  %v1045 = vsub.s32 1, %v1044
  %v1046 = vrot.slane %v1037, %v1045
  %v1049 = vmul.f32 %v714, %v1042
  %v1050 = vmul.f32 %v715, %v1046
  %v1051 = vmul.f32 %v716, %v1042
  %v1052 = vmul.f32 %v717, %v1046
  %v1053 = vmul.f32 %v718, %v1042
  %v1054 = vmul.f32 %v719, %v1046
  %1055 = vset.pattern.permute.xlu0 4
  %1056 = vperm.xlu0 %1055, %v61
  %v1057 = vpop.permute.xlu0 %1056
  %1059 = vset.pattern.permute.xlu0 4
  %1060 = vperm.xlu0 %1059, %v62
  %v1061 = vpop.permute.xlu0 %1060
  %1063 = vset.pattern.permute.xlu0 4
  %1064 = vperm.xlu0 %1063, %v63
  %v1065 = vpop.permute.xlu0 %1064
  %v1067 = vmul.f32 %v1049, %v1057
  %v1068 = vmul.f32 %v1050, %v1057
  %v1069 = vmul.f32 %v1051, %v1061
  %v1070 = vmul.f32 %v1052, %v1061
  %v1071 = vmul.f32 %v1053, %v1065
  %v1072 = vmul.f32 %v1054, %v1065
  %v1073 = vadd.f32 %v1030, %v1067
  %v1074 = vadd.f32 %v1031, %v1068
  %v1075 = vadd.f32 %v1032, %v1069
  %v1076 = vadd.f32 %v1033, %v1070
  %v1077 = vadd.f32 %v1034, %v1071
  %v1078 = vadd.f32 %v1035, %v1072
  %1079 = vrot.lane.b32.xlu0 %v714, 127
  %v1080 = vpop.permute.xlu0 %1079
  %1081 = vrot.lane.b32.xlu0 %v715, 127
  %v1082 = vpop.permute.xlu0 %1081
  %1083 = vrot.lane.b32.xlu0 %v716, 127
  %v1084 = vpop.permute.xlu0 %1083
  %1085 = vrot.lane.b32.xlu0 %v717, 127
  %v1086 = vpop.permute.xlu0 %1085
  %1087 = vrot.lane.b32.xlu0 %v718, 127
  %v1088 = vpop.permute.xlu0 %1087
  %1089 = vrot.lane.b32.xlu0 %v719, 127
  %v1090 = vpop.permute.xlu0 %1089
  %vm1091 = vcmask 1039360
  %v1092 = vsel %vm1091, %v1080, %v1082
  %v1093 = vsel %vm1091, %v1084, %v1086
  %v1094 = vsel %vm1091, %v1088, %v1090
  %v1104 = vsel %vm1091, %v1082, %v1080
  %v1105 = vsel %vm1091, %v1086, %v1084
  %v1106 = vsel %vm1091, %v1090, %v1088
  %s1107 = scalar_lea.vmem %s6, 10
  %v1108 = vld [vmem:[%s1107] sm:$0x3]
  %v1110 = vlaneseq
  %v1111 = vshrl.u32 %v1110, 7
  %v1112 = vsub.s32 0, %v1111
  %v1113 = vrot.slane %v1108, %v1112
  %v1114 = vlaneseq
  %v1115 = vshrl.u32 %v1114, 7
  %v1116 = vsub.s32 1, %v1115
  %v1117 = vrot.slane %v1108, %v1116
  %v1120 = vmul.f32 %v1092, %v1113
  %v1121 = vmul.f32 %v1104, %v1117
  %v1122 = vmul.f32 %v1093, %v1113
  %v1123 = vmul.f32 %v1105, %v1117
  %v1124 = vmul.f32 %v1094, %v1113
  %v1125 = vmul.f32 %v1106, %v1117
  %1126 = vset.pattern.permute.xlu0 5
  %1127 = vperm.xlu0 %1126, %v61
  %v1128 = vpop.permute.xlu0 %1127
  %1130 = vset.pattern.permute.xlu0 5
  %1131 = vperm.xlu0 %1130, %v62
  %v1132 = vpop.permute.xlu0 %1131
  %1134 = vset.pattern.permute.xlu0 5
  %1135 = vperm.xlu0 %1134, %v63
  %v1136 = vpop.permute.xlu0 %1135
  %v1138 = vmul.f32 %v1120, %v1128
  %v1139 = vmul.f32 %v1121, %v1128
  %v1140 = vmul.f32 %v1122, %v1132
  %v1141 = vmul.f32 %v1123, %v1132
  %v1142 = vmul.f32 %v1124, %v1136
  %v1143 = vmul.f32 %v1125, %v1136
  %v1144 = vadd.f32 %v1073, %v1138
  %v1145 = vadd.f32 %v1074, %v1139
  %v1146 = vadd.f32 %v1075, %v1140
  %v1147 = vadd.f32 %v1076, %v1141
  %v1148 = vadd.f32 %v1077, %v1142
  %v1149 = vadd.f32 %v1078, %v1143
  %1150 = vrot.lane.b32.xlu0 %v714, 113
  %v1151 = vpop.permute.xlu0 %1150
  %1152 = vrot.lane.b32.xlu0 %v715, 113
  %v1153 = vpop.permute.xlu0 %1152
  %1154 = vrot.lane.b32.xlu0 %v716, 113
  %v1155 = vpop.permute.xlu0 %1154
  %1156 = vrot.lane.b32.xlu0 %v717, 113
  %v1157 = vpop.permute.xlu0 %1156
  %1158 = vrot.lane.b32.xlu0 %v718, 113
  %v1159 = vpop.permute.xlu0 %1158
  %1160 = vrot.lane.b32.xlu0 %v719, 113
  %v1161 = vpop.permute.xlu0 %1160
  %vm1162 = vcmask 924672
  %v1163 = vsel %vm1162, %v1151, %v1153
  %v1164 = vsel %vm1162, %v1155, %v1157
  %v1165 = vsel %vm1162, %v1159, %v1161
  %v1175 = vsel %vm1162, %v1153, %v1151
  %v1176 = vsel %vm1162, %v1157, %v1155
  %v1177 = vsel %vm1162, %v1161, %v1159
  %s1178 = scalar_lea.vmem %s6, 12
  %v1179 = vld [vmem:[%s1178] sm:$0x3]
  %v1181 = vlaneseq
  %v1182 = vshrl.u32 %v1181, 7
  %v1183 = vsub.s32 0, %v1182
  %v1184 = vrot.slane %v1179, %v1183
  %v1185 = vlaneseq
  %v1186 = vshrl.u32 %v1185, 7
  %v1187 = vsub.s32 1, %v1186
  %v1188 = vrot.slane %v1179, %v1187
  %v1191 = vmul.f32 %v1163, %v1184
  %v1192 = vmul.f32 %v1175, %v1188
  %v1193 = vmul.f32 %v1164, %v1184
  %v1194 = vmul.f32 %v1176, %v1188
  %v1195 = vmul.f32 %v1165, %v1184
  %v1196 = vmul.f32 %v1177, %v1188
  %1197 = vset.pattern.permute.xlu0 6
  %1198 = vperm.xlu0 %1197, %v61
  %v1199 = vpop.permute.xlu0 %1198
  %1201 = vset.pattern.permute.xlu0 6
  %1202 = vperm.xlu0 %1201, %v62
  %v1203 = vpop.permute.xlu0 %1202
  %1205 = vset.pattern.permute.xlu0 6
  %1206 = vperm.xlu0 %1205, %v63
  %v1207 = vpop.permute.xlu0 %1206
  %v1209 = vmul.f32 %v1191, %v1199
  %v1210 = vmul.f32 %v1192, %v1199
  %v1211 = vmul.f32 %v1193, %v1203
  %v1212 = vmul.f32 %v1194, %v1203
  %v1213 = vmul.f32 %v1195, %v1207
  %v1214 = vmul.f32 %v1196, %v1207
  %v1215 = vadd.f32 %v1144, %v1209
  %v1216 = vadd.f32 %v1145, %v1210
  %v1217 = vadd.f32 %v1146, %v1211
  %v1218 = vadd.f32 %v1147, %v1212
  %v1219 = vadd.f32 %v1148, %v1213
  %v1220 = vadd.f32 %v1149, %v1214
  %1221 = vrot.lane.b32.xlu0 %v714, 112
  %v1222 = vpop.permute.xlu0 %1221
  %1223 = vrot.lane.b32.xlu0 %v715, 112
  %v1224 = vpop.permute.xlu0 %1223
  %1225 = vrot.lane.b32.xlu0 %v716, 112
  %v1226 = vpop.permute.xlu0 %1225
  %1227 = vrot.lane.b32.xlu0 %v717, 112
  %v1228 = vpop.permute.xlu0 %1227
  %1229 = vrot.lane.b32.xlu0 %v718, 112
  %v1230 = vpop.permute.xlu0 %1229
  %1231 = vrot.lane.b32.xlu0 %v719, 112
  %v1232 = vpop.permute.xlu0 %1231
  %vm1233 = vcmask 916480
  %v1234 = vsel %vm1233, %v1222, %v1224
  %v1235 = vsel %vm1233, %v1226, %v1228
  %v1236 = vsel %vm1233, %v1230, %v1232
  %v1246 = vsel %vm1233, %v1224, %v1222
  %v1247 = vsel %vm1233, %v1228, %v1226
  %v1248 = vsel %vm1233, %v1232, %v1230
  %s1249 = scalar_lea.vmem %s6, 14
  %v1250 = vld [vmem:[%s1249] sm:$0x3]
  %v1252 = vlaneseq
  %v1253 = vshrl.u32 %v1252, 7
  %v1254 = vsub.s32 0, %v1253
  %v1255 = vrot.slane %v1250, %v1254
  %v1256 = vlaneseq
  %v1257 = vshrl.u32 %v1256, 7
  %v1258 = vsub.s32 1, %v1257
  %v1259 = vrot.slane %v1250, %v1258
  %v1262 = vmul.f32 %v1234, %v1255
  %v1263 = vmul.f32 %v1246, %v1259
  %v1264 = vmul.f32 %v1235, %v1255
  %v1265 = vmul.f32 %v1247, %v1259
  %v1266 = vmul.f32 %v1236, %v1255
  %v1267 = vmul.f32 %v1248, %v1259
  %1268 = vset.pattern.permute.xlu0 7
  %1269 = vperm.xlu0 %1268, %v61
  %v1270 = vpop.permute.xlu0 %1269
  %1272 = vset.pattern.permute.xlu0 7
  %1273 = vperm.xlu0 %1272, %v62
  %v1274 = vpop.permute.xlu0 %1273
  %1276 = vset.pattern.permute.xlu0 7
  %1277 = vperm.xlu0 %1276, %v63
  %v1278 = vpop.permute.xlu0 %1277
  %v1280 = vmul.f32 %v1262, %v1270
  %v1281 = vmul.f32 %v1263, %v1270
  %v1282 = vmul.f32 %v1264, %v1274
  %v1283 = vmul.f32 %v1265, %v1274
  %v1284 = vmul.f32 %v1266, %v1278
  %v1285 = vmul.f32 %v1267, %v1278
  %v1286 = vadd.f32 %v1215, %v1280
  %v1287 = vadd.f32 %v1216, %v1281
  %v1288 = vadd.f32 %v1217, %v1282
  %v1289 = vadd.f32 %v1218, %v1283
  %v1290 = vadd.f32 %v1219, %v1284
  %v1291 = vadd.f32 %v1220, %v1285
  %1292 = vrot.lane.b32.xlu0 %v714, 111
  %v1293 = vpop.permute.xlu0 %1292
  %1294 = vrot.lane.b32.xlu0 %v715, 111
  %v1295 = vpop.permute.xlu0 %1294
  %1296 = vrot.lane.b32.xlu0 %v716, 111
  %v1297 = vpop.permute.xlu0 %1296
  %1298 = vrot.lane.b32.xlu0 %v717, 111
  %v1299 = vpop.permute.xlu0 %1298
  %1300 = vrot.lane.b32.xlu0 %v718, 111
  %v1301 = vpop.permute.xlu0 %1300
  %1302 = vrot.lane.b32.xlu0 %v719, 111
  %v1303 = vpop.permute.xlu0 %1302
  %vm1304 = vcmask 908288
  %v1305 = vsel %vm1304, %v1293, %v1295
  %v1306 = vsel %vm1304, %v1297, %v1299
  %v1307 = vsel %vm1304, %v1301, %v1303
  %v1317 = vsel %vm1304, %v1295, %v1293
  %v1318 = vsel %vm1304, %v1299, %v1297
  %v1319 = vsel %vm1304, %v1303, %v1301
  %s1320 = scalar_lea.vmem %s6, 16
  %v1321 = vld [vmem:[%s1320] sm:$0x3]
  %v1323 = vlaneseq
  %v1324 = vshrl.u32 %v1323, 7
  %v1325 = vsub.s32 0, %v1324
  %v1326 = vrot.slane %v1321, %v1325
  %v1327 = vlaneseq
  %v1328 = vshrl.u32 %v1327, 7
  %v1329 = vsub.s32 1, %v1328
  %v1330 = vrot.slane %v1321, %v1329
  %v1333 = vmul.f32 %v1305, %v1326
  %v1334 = vmul.f32 %v1317, %v1330
  %v1335 = vmul.f32 %v1306, %v1326
  %v1336 = vmul.f32 %v1318, %v1330
  %v1337 = vmul.f32 %v1307, %v1326
  %v1338 = vmul.f32 %v1319, %v1330
  %1339 = vset.pattern.permute.xlu0 8
  %1340 = vperm.xlu0 %1339, %v61
  %v1341 = vpop.permute.xlu0 %1340
  %1343 = vset.pattern.permute.xlu0 8
  %1344 = vperm.xlu0 %1343, %v62
  %v1345 = vpop.permute.xlu0 %1344
  %1347 = vset.pattern.permute.xlu0 8
  %1348 = vperm.xlu0 %1347, %v63
  %v1349 = vpop.permute.xlu0 %1348
  %v1351 = vmul.f32 %v1333, %v1341
  %v1352 = vmul.f32 %v1334, %v1341
  %v1353 = vmul.f32 %v1335, %v1345
  %v1354 = vmul.f32 %v1336, %v1345
  %v1355 = vmul.f32 %v1337, %v1349
  %v1356 = vmul.f32 %v1338, %v1349
  %v1357 = vadd.f32 %v1286, %v1351
  %v1358 = vadd.f32 %v1287, %v1352
  %v1359 = vadd.f32 %v1288, %v1353
  %v1360 = vadd.f32 %v1289, %v1354
  %v1361 = vadd.f32 %v1290, %v1355
  %v1362 = vadd.f32 %v1291, %v1356
  %1366 = vrot.lane.b32.xlu0 %v739, 17
  %v1367 = vpop.permute.xlu0 %1366
  %1368 = vrot.lane.b32.xlu0 %v741, 17
  %v1369 = vpop.permute.xlu0 %1368
  %1370 = vrot.lane.b32.xlu0 %v743, 17
  %v1371 = vpop.permute.xlu0 %1370
  %1378 = vrot.lane.b32.xlu0 %v738, 17
  %v1379 = vpop.permute.xlu0 %1378
  %1380 = vrot.lane.b32.xlu0 %v740, 17
  %v1381 = vpop.permute.xlu0 %1380
  %1382 = vrot.lane.b32.xlu0 %v742, 17
  %v1383 = vpop.permute.xlu0 %1382
  %v1384 = vsel %vm765, %v1379, %v1367
  %v1385 = vsel %vm765, %v1381, %v1369
  %v1386 = vsel %vm765, %v1383, %v1371
  %v1393 = vsel %vm765, %v1367, %v1379
  %v1394 = vsel %vm765, %v1369, %v1381
  %v1395 = vsel %vm765, %v1371, %v1383
  %v1396 = vmul.f32 %v1393, %v783
  %v1397 = vmul.f32 %v1384, %v787
  %v1398 = vmul.f32 %v1394, %v783
  %v1399 = vmul.f32 %v1385, %v787
  %v1400 = vmul.f32 %v1395, %v783
  %v1401 = vmul.f32 %v1386, %v787
  %v1402 = vmul.f32 %v1396, %v799
  %v1403 = vmul.f32 %v1397, %v799
  %v1404 = vmul.f32 %v1398, %v804
  %v1405 = vmul.f32 %v1399, %v804
  %v1406 = vmul.f32 %v1400, %v809
  %v1407 = vmul.f32 %v1401, %v809
  %v1408 = vadd.f32 %v1402, 0.0
  %v1409 = vadd.f32 %v1403, 0.0
  %v1410 = vadd.f32 %v1404, 0.0
  %v1411 = vadd.f32 %v1405, 0.0
  %v1412 = vadd.f32 %v1406, 0.0
  %v1413 = vadd.f32 %v1407, 0.0
  %1414 = vrot.lane.b32.xlu0 %v739, 16
  %v1415 = vpop.permute.xlu0 %1414
  %1416 = vrot.lane.b32.xlu0 %v741, 16
  %v1417 = vpop.permute.xlu0 %1416
  %1418 = vrot.lane.b32.xlu0 %v743, 16
  %v1419 = vpop.permute.xlu0 %1418
  %1423 = vrot.lane.b32.xlu0 %v738, 16
  %v1424 = vpop.permute.xlu0 %1423
  %1425 = vrot.lane.b32.xlu0 %v740, 16
  %v1426 = vpop.permute.xlu0 %1425
  %1427 = vrot.lane.b32.xlu0 %v742, 16
  %v1428 = vpop.permute.xlu0 %1427
  %v1429 = vsel %vm838, %v1424, %v1415
  %v1430 = vsel %vm838, %v1426, %v1417
  %v1431 = vsel %vm838, %v1428, %v1419
  %v1438 = vsel %vm838, %v1415, %v1424
  %v1439 = vsel %vm838, %v1417, %v1426
  %v1440 = vsel %vm838, %v1419, %v1428
  %v1441 = vmul.f32 %v1438, %v857
  %v1442 = vmul.f32 %v1429, %v861
  %v1443 = vmul.f32 %v1439, %v857
  %v1444 = vmul.f32 %v1430, %v861
  %v1445 = vmul.f32 %v1440, %v857
  %v1446 = vmul.f32 %v1431, %v861
  %v1447 = vmul.f32 %v1441, %v872
  %v1448 = vmul.f32 %v1442, %v872
  %v1449 = vmul.f32 %v1443, %v876
  %v1450 = vmul.f32 %v1444, %v876
  %v1451 = vmul.f32 %v1445, %v880
  %v1452 = vmul.f32 %v1446, %v880
  %v1453 = vadd.f32 %v1408, %v1447
  %v1454 = vadd.f32 %v1409, %v1448
  %v1455 = vadd.f32 %v1410, %v1449
  %v1456 = vadd.f32 %v1411, %v1450
  %v1457 = vadd.f32 %v1412, %v1451
  %v1458 = vadd.f32 %v1413, %v1452
  %1459 = vrot.lane.b32.xlu0 %v739, 15
  %v1460 = vpop.permute.xlu0 %1459
  %1461 = vrot.lane.b32.xlu0 %v741, 15
  %v1462 = vpop.permute.xlu0 %1461
  %1463 = vrot.lane.b32.xlu0 %v743, 15
  %v1464 = vpop.permute.xlu0 %1463
  %1468 = vrot.lane.b32.xlu0 %v738, 15
  %v1469 = vpop.permute.xlu0 %1468
  %1470 = vrot.lane.b32.xlu0 %v740, 15
  %v1471 = vpop.permute.xlu0 %1470
  %1472 = vrot.lane.b32.xlu0 %v742, 15
  %v1473 = vpop.permute.xlu0 %1472
  %v1474 = vsel %vm909, %v1469, %v1460
  %v1475 = vsel %vm909, %v1471, %v1462
  %v1476 = vsel %vm909, %v1473, %v1464
  %v1483 = vsel %vm909, %v1460, %v1469
  %v1484 = vsel %vm909, %v1462, %v1471
  %v1485 = vsel %vm909, %v1464, %v1473
  %v1486 = vmul.f32 %v1483, %v928
  %v1487 = vmul.f32 %v1474, %v932
  %v1488 = vmul.f32 %v1484, %v928
  %v1489 = vmul.f32 %v1475, %v932
  %v1490 = vmul.f32 %v1485, %v928
  %v1491 = vmul.f32 %v1476, %v932
  %v1492 = vmul.f32 %v1486, %v943
  %v1493 = vmul.f32 %v1487, %v943
  %v1494 = vmul.f32 %v1488, %v947
  %v1495 = vmul.f32 %v1489, %v947
  %v1496 = vmul.f32 %v1490, %v951
  %v1497 = vmul.f32 %v1491, %v951
  %v1498 = vadd.f32 %v1453, %v1492
  %v1499 = vadd.f32 %v1454, %v1493
  %v1500 = vadd.f32 %v1455, %v1494
  %v1501 = vadd.f32 %v1456, %v1495
  %v1502 = vadd.f32 %v1457, %v1496
  %v1503 = vadd.f32 %v1458, %v1497
  %1504 = vrot.lane.b32.xlu0 %v739, 1
  %v1505 = vpop.permute.xlu0 %1504
  %1506 = vrot.lane.b32.xlu0 %v741, 1
  %v1507 = vpop.permute.xlu0 %1506
  %1508 = vrot.lane.b32.xlu0 %v743, 1
  %v1509 = vpop.permute.xlu0 %1508
  %1513 = vrot.lane.b32.xlu0 %v738, 1
  %v1514 = vpop.permute.xlu0 %1513
  %1515 = vrot.lane.b32.xlu0 %v740, 1
  %v1516 = vpop.permute.xlu0 %1515
  %1517 = vrot.lane.b32.xlu0 %v742, 1
  %v1518 = vpop.permute.xlu0 %1517
  %v1519 = vsel %vm980, %v1514, %v1505
  %v1520 = vsel %vm980, %v1516, %v1507
  %v1521 = vsel %vm980, %v1518, %v1509
  %v1528 = vsel %vm980, %v1505, %v1514
  %v1529 = vsel %vm980, %v1507, %v1516
  %v1530 = vsel %vm980, %v1509, %v1518
  %v1531 = vmul.f32 %v1528, %v999
  %v1532 = vmul.f32 %v1519, %v1003
  %v1533 = vmul.f32 %v1529, %v999
  %v1534 = vmul.f32 %v1520, %v1003
  %v1535 = vmul.f32 %v1530, %v999
  %v1536 = vmul.f32 %v1521, %v1003
  %v1537 = vmul.f32 %v1531, %v1014
  %v1538 = vmul.f32 %v1532, %v1014
  %v1539 = vmul.f32 %v1533, %v1018
  %v1540 = vmul.f32 %v1534, %v1018
  %v1541 = vmul.f32 %v1535, %v1022
  %v1542 = vmul.f32 %v1536, %v1022
  %v1543 = vadd.f32 %v1498, %v1537
  %v1544 = vadd.f32 %v1499, %v1538
  %v1545 = vadd.f32 %v1500, %v1539
  %v1546 = vadd.f32 %v1501, %v1540
  %v1547 = vadd.f32 %v1502, %v1541
  %v1548 = vadd.f32 %v1503, %v1542
  %v1549 = vmul.f32 %v738, %v1042
  %v1550 = vmul.f32 %v739, %v1046
  %v1551 = vmul.f32 %v740, %v1042
  %v1552 = vmul.f32 %v741, %v1046
  %v1553 = vmul.f32 %v742, %v1042
  %v1554 = vmul.f32 %v743, %v1046
  %v1555 = vmul.f32 %v1549, %v1057
  %v1556 = vmul.f32 %v1550, %v1057
  %v1557 = vmul.f32 %v1551, %v1061
  %v1558 = vmul.f32 %v1552, %v1061
  %v1559 = vmul.f32 %v1553, %v1065
  %v1560 = vmul.f32 %v1554, %v1065
  %v1561 = vadd.f32 %v1543, %v1555
  %v1562 = vadd.f32 %v1544, %v1556
  %v1563 = vadd.f32 %v1545, %v1557
  %v1564 = vadd.f32 %v1546, %v1558
  %v1565 = vadd.f32 %v1547, %v1559
  %v1566 = vadd.f32 %v1548, %v1560
  %1567 = vrot.lane.b32.xlu0 %v738, 127
  %v1568 = vpop.permute.xlu0 %1567
  %1569 = vrot.lane.b32.xlu0 %v739, 127
  %v1570 = vpop.permute.xlu0 %1569
  %1571 = vrot.lane.b32.xlu0 %v740, 127
  %v1572 = vpop.permute.xlu0 %1571
  %1573 = vrot.lane.b32.xlu0 %v741, 127
  %v1574 = vpop.permute.xlu0 %1573
  %1575 = vrot.lane.b32.xlu0 %v742, 127
  %v1576 = vpop.permute.xlu0 %1575
  %1577 = vrot.lane.b32.xlu0 %v743, 127
  %v1578 = vpop.permute.xlu0 %1577
  %v1579 = vsel %vm1091, %v1568, %v1570
  %v1580 = vsel %vm1091, %v1572, %v1574
  %v1581 = vsel %vm1091, %v1576, %v1578
  %v1591 = vsel %vm1091, %v1570, %v1568
  %v1592 = vsel %vm1091, %v1574, %v1572
  %v1593 = vsel %vm1091, %v1578, %v1576
  %v1594 = vmul.f32 %v1579, %v1113
  %v1595 = vmul.f32 %v1591, %v1117
  %v1596 = vmul.f32 %v1580, %v1113
  %v1597 = vmul.f32 %v1592, %v1117
  %v1598 = vmul.f32 %v1581, %v1113
  %v1599 = vmul.f32 %v1593, %v1117
  %v1600 = vmul.f32 %v1594, %v1128
  %v1601 = vmul.f32 %v1595, %v1128
  %v1602 = vmul.f32 %v1596, %v1132
  %v1603 = vmul.f32 %v1597, %v1132
  %v1604 = vmul.f32 %v1598, %v1136
  %v1605 = vmul.f32 %v1599, %v1136
  %v1606 = vadd.f32 %v1561, %v1600
  %v1607 = vadd.f32 %v1562, %v1601
  %v1608 = vadd.f32 %v1563, %v1602
  %v1609 = vadd.f32 %v1564, %v1603
  %v1610 = vadd.f32 %v1565, %v1604
  %v1611 = vadd.f32 %v1566, %v1605
  %1612 = vrot.lane.b32.xlu0 %v738, 113
  %v1613 = vpop.permute.xlu0 %1612
  %1614 = vrot.lane.b32.xlu0 %v739, 113
  %v1615 = vpop.permute.xlu0 %1614
  %1616 = vrot.lane.b32.xlu0 %v740, 113
  %v1617 = vpop.permute.xlu0 %1616
  %1618 = vrot.lane.b32.xlu0 %v741, 113
  %v1619 = vpop.permute.xlu0 %1618
  %1620 = vrot.lane.b32.xlu0 %v742, 113
  %v1621 = vpop.permute.xlu0 %1620
  %1622 = vrot.lane.b32.xlu0 %v743, 113
  %v1623 = vpop.permute.xlu0 %1622
  %v1624 = vsel %vm1162, %v1613, %v1615
  %v1625 = vsel %vm1162, %v1617, %v1619
  %v1626 = vsel %vm1162, %v1621, %v1623
  %v1636 = vsel %vm1162, %v1615, %v1613
  %v1637 = vsel %vm1162, %v1619, %v1617
  %v1638 = vsel %vm1162, %v1623, %v1621
  %v1639 = vmul.f32 %v1624, %v1184
  %v1640 = vmul.f32 %v1636, %v1188
  %v1641 = vmul.f32 %v1625, %v1184
  %v1642 = vmul.f32 %v1637, %v1188
  %v1643 = vmul.f32 %v1626, %v1184
  %v1644 = vmul.f32 %v1638, %v1188
  %v1645 = vmul.f32 %v1639, %v1199
  %v1646 = vmul.f32 %v1640, %v1199
  %v1647 = vmul.f32 %v1641, %v1203
  %v1648 = vmul.f32 %v1642, %v1203
  %v1649 = vmul.f32 %v1643, %v1207
  %v1650 = vmul.f32 %v1644, %v1207
  %v1651 = vadd.f32 %v1606, %v1645
  %v1652 = vadd.f32 %v1607, %v1646
  %v1653 = vadd.f32 %v1608, %v1647
  %v1654 = vadd.f32 %v1609, %v1648
  %v1655 = vadd.f32 %v1610, %v1649
  %v1656 = vadd.f32 %v1611, %v1650
  %1657 = vrot.lane.b32.xlu0 %v738, 112
  %v1658 = vpop.permute.xlu0 %1657
  %1659 = vrot.lane.b32.xlu0 %v739, 112
  %v1660 = vpop.permute.xlu0 %1659
  %1661 = vrot.lane.b32.xlu0 %v740, 112
  %v1662 = vpop.permute.xlu0 %1661
  %1663 = vrot.lane.b32.xlu0 %v741, 112
  %v1664 = vpop.permute.xlu0 %1663
  %1665 = vrot.lane.b32.xlu0 %v742, 112
  %v1666 = vpop.permute.xlu0 %1665
  %1667 = vrot.lane.b32.xlu0 %v743, 112
  %v1668 = vpop.permute.xlu0 %1667
  %v1669 = vsel %vm1233, %v1658, %v1660
  %v1670 = vsel %vm1233, %v1662, %v1664
  %v1671 = vsel %vm1233, %v1666, %v1668
  %v1681 = vsel %vm1233, %v1660, %v1658
  %v1682 = vsel %vm1233, %v1664, %v1662
  %v1683 = vsel %vm1233, %v1668, %v1666
  %v1684 = vmul.f32 %v1669, %v1255
  %v1685 = vmul.f32 %v1681, %v1259
  %v1686 = vmul.f32 %v1670, %v1255
  %v1687 = vmul.f32 %v1682, %v1259
  %v1688 = vmul.f32 %v1671, %v1255
  %v1689 = vmul.f32 %v1683, %v1259
  %v1690 = vmul.f32 %v1684, %v1270
  %v1691 = vmul.f32 %v1685, %v1270
  %v1692 = vmul.f32 %v1686, %v1274
  %v1693 = vmul.f32 %v1687, %v1274
  %v1694 = vmul.f32 %v1688, %v1278
  %v1695 = vmul.f32 %v1689, %v1278
  %v1696 = vadd.f32 %v1651, %v1690
  %v1697 = vadd.f32 %v1652, %v1691
  %v1698 = vadd.f32 %v1653, %v1692
  %v1699 = vadd.f32 %v1654, %v1693
  %v1700 = vadd.f32 %v1655, %v1694
  %v1701 = vadd.f32 %v1656, %v1695
  %1702 = vrot.lane.b32.xlu0 %v738, 111
  %v1703 = vpop.permute.xlu0 %1702
  %1704 = vrot.lane.b32.xlu0 %v739, 111
  %v1705 = vpop.permute.xlu0 %1704
  %1706 = vrot.lane.b32.xlu0 %v740, 111
  %v1707 = vpop.permute.xlu0 %1706
  %1708 = vrot.lane.b32.xlu0 %v741, 111
  %v1709 = vpop.permute.xlu0 %1708
  %1710 = vrot.lane.b32.xlu0 %v742, 111
  %v1711 = vpop.permute.xlu0 %1710
  %1712 = vrot.lane.b32.xlu0 %v743, 111
  %v1713 = vpop.permute.xlu0 %1712
  %v1714 = vsel %vm1304, %v1703, %v1705
  %v1715 = vsel %vm1304, %v1707, %v1709
  %v1716 = vsel %vm1304, %v1711, %v1713
  %v1726 = vsel %vm1304, %v1705, %v1703
  %v1727 = vsel %vm1304, %v1709, %v1707
  %v1728 = vsel %vm1304, %v1713, %v1711
  %v1729 = vmul.f32 %v1714, %v1326
  %v1730 = vmul.f32 %v1726, %v1330
  %v1731 = vmul.f32 %v1715, %v1326
  %v1732 = vmul.f32 %v1727, %v1330
  %v1733 = vmul.f32 %v1716, %v1326
  %v1734 = vmul.f32 %v1728, %v1330
  %v1735 = vmul.f32 %v1729, %v1341
  %v1736 = vmul.f32 %v1730, %v1341
  %v1737 = vmul.f32 %v1731, %v1345
  %v1738 = vmul.f32 %v1732, %v1345
  %v1739 = vmul.f32 %v1733, %v1349
  %v1740 = vmul.f32 %v1734, %v1349
  %v1741 = vadd.f32 %v1696, %v1735
  %v1742 = vadd.f32 %v1697, %v1736
  %v1743 = vadd.f32 %v1698, %v1737
  %v1744 = vadd.f32 %v1699, %v1738
  %v1745 = vadd.f32 %v1700, %v1739
  %v1746 = vadd.f32 %v1701, %v1740
  %v1747 = vadd.f32 %v1357, %v1358
  %1748 = vadd.xlane.f32.xlu0 %v1747
  %v1749 = vpop.xlane.xlu0 %1748
  %v1750 = vadd.f32 %v1359, %v1360
  %1751 = vadd.xlane.f32.xlu0 %v1750
  %v1752 = vpop.xlane.xlu0 %1751
  %v1753 = vsel %vm563, %v1361, 0.0
  %v1754 = vsel %vm563, %v1362, 0.0
  %v1755 = vadd.f32 %v1753, %v1754
  %1756 = vadd.xlane.f32.xlu0 %v1755
  %v1757 = vpop.xlane.xlu0 %1756
  %v1758 = vadd.f32 %v1749, 0.0
  %v1759 = vadd.f32 %v1752, 0.0
  %v1760 = vadd.f32 %v1757, 0.0
  %v1761 = vadd.f32 %v1741, %v1742
  %1762 = vadd.xlane.f32.xlu0 %v1761
  %v1763 = vpop.xlane.xlu0 %1762
  %v1764 = vadd.f32 %v1743, %v1744
  %1765 = vadd.xlane.f32.xlu0 %v1764
  %v1766 = vpop.xlane.xlu0 %1765
  %v1767 = vsel %vm563, %v1745, 0.0
  %v1768 = vsel %vm563, %v1746, 0.0
  %v1769 = vadd.f32 %v1767, %v1768
  %1770 = vadd.xlane.f32.xlu0 %v1769
  %v1771 = vpop.xlane.xlu0 %1770
  %v1772 = vadd.f32 %v1758, %v1763
  %v1773 = vadd.f32 %v1759, %v1766
  %v1774 = vadd.f32 %v1760, %v1771
  %v1775 = vmul.f32 %v1772, 0.001953125
  %v1776 = vmul.f32 %v1773, 0.001953125
  %v1777 = vmul.f32 %v1774, 0.001953125
  %v1778 = vsub.f32 %v1357, %v1775
  %v1779 = vsub.f32 %v1358, %v1775
  %v1780 = vsub.f32 %v1359, %v1776
  %v1781 = vsub.f32 %v1360, %v1776
  %v1782 = vsub.f32 %v1361, %v1777
  %v1783 = vsub.f32 %v1362, %v1777
  %v1784 = vmul.f32 %v1778, %v1778
  %v1785 = vmul.f32 %v1779, %v1779
  %v1786 = vmul.f32 %v1780, %v1780
  %v1787 = vmul.f32 %v1781, %v1781
  %v1788 = vmul.f32 %v1782, %v1782
  %v1789 = vmul.f32 %v1783, %v1783
  %v1790 = vadd.f32 %v1784, %v1785
  %1791 = vadd.xlane.f32.xlu0 %v1790
  %v1792 = vpop.xlane.xlu0 %1791
  %v1793 = vadd.f32 %v1786, %v1787
  %1794 = vadd.xlane.f32.xlu0 %v1793
  %v1795 = vpop.xlane.xlu0 %1794
  %v1796 = vsel %vm563, %v1788, 0.0
  %v1797 = vsel %vm563, %v1789, 0.0
  %v1798 = vadd.f32 %v1796, %v1797
  %1799 = vadd.xlane.f32.xlu0 %v1798
  %v1800 = vpop.xlane.xlu0 %1799
  %v1801 = vadd.f32 %v1792, 0.0
  %v1802 = vadd.f32 %v1795, 0.0
  %v1803 = vadd.f32 %v1800, 0.0
  %v1804 = vsub.f32 %v1741, %v1775
  %v1805 = vsub.f32 %v1742, %v1775
  %v1806 = vsub.f32 %v1743, %v1776
  %v1807 = vsub.f32 %v1744, %v1776
  %v1808 = vsub.f32 %v1745, %v1777
  %v1809 = vsub.f32 %v1746, %v1777
  %v1810 = vmul.f32 %v1804, %v1804
  %v1811 = vmul.f32 %v1805, %v1805
  %v1812 = vmul.f32 %v1806, %v1806
  %v1813 = vmul.f32 %v1807, %v1807
  %v1814 = vmul.f32 %v1808, %v1808
  %v1815 = vmul.f32 %v1809, %v1809
  %v1816 = vadd.f32 %v1810, %v1811
  %1817 = vadd.xlane.f32.xlu0 %v1816
  %v1818 = vpop.xlane.xlu0 %1817
  %v1819 = vadd.f32 %v1812, %v1813
  %1820 = vadd.xlane.f32.xlu0 %v1819
  %v1821 = vpop.xlane.xlu0 %1820
  %v1822 = vsel %vm563, %v1814, 0.0
  %v1823 = vsel %vm563, %v1815, 0.0
  %v1824 = vadd.f32 %v1822, %v1823
  %1825 = vadd.xlane.f32.xlu0 %v1824
  %v1826 = vpop.xlane.xlu0 %1825
  %v1827 = vadd.f32 %v1801, %v1818
  %v1828 = vadd.f32 %v1802, %v1821
  %v1829 = vadd.f32 %v1803, %v1826
  %v1830 = vmul.f32 %v1827, 0.001953125
  %v1831 = vmul.f32 %v1828, 0.001953125
  %v1832 = vmul.f32 %v1829, 0.001953125
  %v1833 = vld [vmem:[%s9] sm:$0xff]
  %v1834 = vld [vmem:[%s9 + $0x8] sm:$0xff]
  %v1835 = vld [vmem:[%s9 + $0x10] sm:$0x7]
  %v1836 = vadd.f32 %v1830, 1e-05
  %v1837 = vadd.f32 %v1831, 1e-05
  %v1838 = vadd.f32 %v1832, 1e-05
  %v1839 = vrsqrt.pop %v1836
  %v1840 = vrsqrt.pop %v1837
  %v1841 = vrsqrt.pop %v1838
  %v1842 = vmul.f32 %v1833, %v1839
  %v1843 = vmul.f32 %v1834, %v1840
  %v1844 = vmul.f32 %v1835, %v1841
  %s1845 = scalar_lea.vmem %s9, 24
  %v1846 = vld [vmem:[%s1845] sm:$0xff]
  %v1847 = vld [vmem:[%s1845 + $0x8] sm:$0xff]
  %v1848 = vld [vmem:[%s1845 + $0x10] sm:$0x7]
  %v1849 = vmul.f32 %v1775, %v1842
  %v1850 = vmul.f32 %v1776, %v1843
  %v1851 = vmul.f32 %v1777, %v1844
  %v1852 = vsub.f32 %v1846, %v1849
  %v1853 = vsub.f32 %v1847, %v1850
  %v1854 = vsub.f32 %v1848, %v1851
  %1856 = vset.pattern.permute.xlu0 0
  %1857 = vperm.xlu0 %1856, %v1842
  %v1858 = vpop.permute.xlu0 %1857
  %1861 = vset.pattern.permute.xlu0 0
  %1862 = vperm.xlu0 %1861, %v1843
  %v1863 = vpop.permute.xlu0 %1862
  %1866 = vset.pattern.permute.xlu0 0
  %1867 = vperm.xlu0 %1866, %v1844
  %v1868 = vpop.permute.xlu0 %1867
  %v1870 = vmul.f32 %v1357, %v1858
  %v1871 = vmul.f32 %v1358, %v1858
  %v1872 = vmul.f32 %v1359, %v1863
  %v1873 = vmul.f32 %v1360, %v1863
  %v1874 = vmul.f32 %v1361, %v1868
  %v1875 = vmul.f32 %v1362, %v1868
  %1877 = vset.pattern.permute.xlu0 0
  %1878 = vperm.xlu0 %1877, %v1852
  %v1879 = vpop.permute.xlu0 %1878
  %1882 = vset.pattern.permute.xlu0 0
  %1883 = vperm.xlu0 %1882, %v1853
  %v1884 = vpop.permute.xlu0 %1883
  %1887 = vset.pattern.permute.xlu0 0
  %1888 = vperm.xlu0 %1887, %v1854
  %v1889 = vpop.permute.xlu0 %1888
  %v1891 = vadd.f32 %v1870, %v1879
  %v1892 = vadd.f32 %v1871, %v1879
  %v1893 = vadd.f32 %v1872, %v1884
  %v1894 = vadd.f32 %v1873, %v1884
  %v1895 = vadd.f32 %v1874, %v1889
  %v1896 = vadd.f32 %v1875, %v1889
  %v1897 = vmax.f32 %v1891, 0.0
  %v1898 = vmax.f32 %v1892, 0.0
  %v1899 = vmax.f32 %v1893, 0.0
  %v1900 = vmax.f32 %v1894, 0.0
  %v1901 = vmax.f32 %v1895, 0.0
  %v1902 = vmax.f32 %v1896, 0.0
  %v1903 = vmin.f32 %v1897, 6.0
  %v1904 = vmin.f32 %v1898, 6.0
  %v1905 = vmin.f32 %v1899, 6.0
  %v1906 = vmin.f32 %v1900, 6.0
  %v1907 = vmin.f32 %v1901, 6.0
  %v1908 = vmin.f32 %v1902, 6.0
  %v1909 = vpack.c.bf16 %v1905, %v1903
  %v1910 = vpack.c.bf16 %v1906, %v1904
  %v1911 = vpack.c.bf16 %v1907, %v1907
  %v1912 = vpack.c.bf16 %v1908, %v1908
  %v1921 = vunpack.c.l.b16 %v64
  %v1922 = vunpack.c.l.b16 %v65
  %v1923 = vunpack.c.l.b16 %v66
  %v1924 = vunpack.c.l.b16 %v67
  %v1925 = vunpack.c.l.b16 %v68
  %v1926 = vunpack.c.l.b16 %v69
  %v1927 = vunpack.c.l.b16 %v70
  %v1928 = vunpack.c.l.b16 %v71
  %v1929 = vpack.c.b16 %v1922, %v1921
  %v1930 = vpack.c.b16 %v1924, %v1923
  %v1931 = vpack.c.b16 %v1926, %v1925
  %v1932 = vpack.c.b16 %v1928, %v1927
  %vm1933 = vcmask 154624
  %v1935 = vsel %vm1933, %v1929, 0
  %v1938 = vsel %vm1933, %v1930, 0
  %v1941 = vsel %vm1933, %v1931, 0
  %v1944 = vsel %vm1933, %v1932, 0
  %vm1946 = vcmask 1040384
  %vm1947 = vcmask 1041408
  %v1948 = vsel %vm1946, 4294967295, 65535
  %v1949 = vsel %vm1947, %v1948, 0
  %v1951 = vand.u32 %v1911, %v1949
  %v1954 = vand.u32 %v1912, %v1949
  %1956 = vmatprep.subr.bf16.mxu0 0
  %1957 = vmatpush1.bf16.msra.mxu0 0
  %1958 = vmatprep.subr.bf16.mxu0 0
  %1959 = vmatpush1.bf16.msra.mxu0 0
  %1960 = vmatprep.subr.bf16.mxu0 0
  %1961 = vmatpush1.bf16.msra.mxu0 0
  %1962 = vmatprep.subr.bf16.mxu0 0
  %1963 = vmatpush1.bf16.msra.mxu0 0
  %1964 = vmatprep.subr.bf16.mxu0 0
  %1965 = vmatpush1.bf16.msra.mxu0 0
  %1966 = vmatprep.subr.bf16.mxu0 0
  %1967 = vmatpush1.bf16.msra.mxu0 0
  %1968 = vmatprep.subr.bf16.mxu0 %v1954
  %1969 = vmatpush1.bf16.msra.mxu0 %v1951
  %1970 = vmatprep.subr.bf16.mxu0 %v1910
  %1971 = vmatpush1.bf16.msra.mxu0 %v1909
  %1972 = vmatprep.subr.bf16.mxu0 0
  %1973 = vmatpush2.bf16.msra.mxu0 0
  %1974 = vmatprep.subr.bf16.mxu0 0
  %1975 = vmatpush2.bf16.msra.mxu0 0
  %1976 = vmatprep.subr.bf16.mxu0 0
  %1977 = vmatpush2.bf16.msra.mxu0 0
  %1978 = vmatprep.subr.bf16.mxu0 0
  %1979 = vmatpush2.bf16.msra.mxu0 0
  %1980 = vmatprep.subr.bf16.mxu0 0
  %1981 = vmatpush2.bf16.msra.mxu0 0
  %1982 = vmatprep.subr.bf16.mxu0 0
  %1983 = vmatpush2.bf16.msra.mxu0 0
  %1984 = vmatprep.subr.bf16.mxu0 0
  %1985 = vmatpush2.bf16.msra.mxu0 0
  %1986 = vmatprep.subr.bf16.mxu0 0
  %1987 = vmatpush2.bf16.msra.mxu0 0
  %1988 = vmatprep.mubr.bf16.mxu0 0
  %1989 = vmatmul.mubr.bf16.gmra.mxu0 %v1935
  %v1990 = vpop.f32.mrf.mxu0
  %v1991 = vadd.f32 0.0, %v1990
  %v1992 = vpop.f32.mrf.mxu0
  %v1993 = vadd.f32 0.0, %v1992
  %v1994 = vpop.f32.mrf.mxu0
  %v1995 = vadd.f32 0.0, %v1994
  %v1996 = vpop.f32.mrf.mxu0
  %v1997 = vadd.f32 0.0, %v1996
  %1998 = vmatprep.mubr.bf16.mxu0 0
  %1999 = vmatmul.mubr.bf16.gmra.mxu0 %v1938
  %v2000 = vpop.f32.mrf.mxu0
  %v2001 = vadd.f32 0.0, %v2000
  %v2002 = vpop.f32.mrf.mxu0
  %v2003 = vadd.f32 0.0, %v2002
  %v2004 = vpop.f32.mrf.mxu0
  %v2005 = vadd.f32 0.0, %v2004
  %v2006 = vpop.f32.mrf.mxu0
  %v2007 = vadd.f32 0.0, %v2006
  %2008 = vmatprep.mubr.bf16.mxu0 0
  %2009 = vmatmul.mubr.bf16.gmra.mxu0 %v1941
  %v2010 = vpop.f32.mrf.mxu0
  %v2011 = vadd.f32 0.0, %v2010
  %v2012 = vpop.f32.mrf.mxu0
  %v2013 = vadd.f32 0.0, %v2012
  %v2014 = vpop.f32.mrf.mxu0
  %v2015 = vadd.f32 0.0, %v2014
  %v2016 = vpop.f32.mrf.mxu0
  %v2017 = vadd.f32 0.0, %v2016
  %2018 = vmatprep.mubr.bf16.mxu0 0
  %2019 = vmatmul.mubr.bf16.gmra.mxu0 %v1944
  %v2020 = vpop.f32.mrf.mxu0
  %v2021 = vadd.f32 0.0, %v2020
  %v2022 = vpop.f32.mrf.mxu0
  %v2023 = vadd.f32 0.0, %v2022
  %v2024 = vpop.f32.mrf.mxu0
  %v2025 = vadd.f32 0.0, %v2024
  %v2026 = vpop.f32.mrf.mxu0
  %v2027 = vadd.f32 0.0, %v2026
  %2028 = vdwg.mxu0
  %v2029 = vmul.f32 %v1741, %v1858
  %v2030 = vmul.f32 %v1742, %v1858
  %v2031 = vmul.f32 %v1743, %v1863
  %v2032 = vmul.f32 %v1744, %v1863
  %v2033 = vmul.f32 %v1745, %v1868
  %v2034 = vmul.f32 %v1746, %v1868
  %v2035 = vadd.f32 %v2029, %v1879
  %v2036 = vadd.f32 %v2030, %v1879
  %v2037 = vadd.f32 %v2031, %v1884
  %v2038 = vadd.f32 %v2032, %v1884
  %v2039 = vadd.f32 %v2033, %v1889
  %v2040 = vadd.f32 %v2034, %v1889
  %v2041 = vmax.f32 %v2035, 0.0
  %v2042 = vmax.f32 %v2036, 0.0
  %v2043 = vmax.f32 %v2037, 0.0
  %v2044 = vmax.f32 %v2038, 0.0
  %v2045 = vmax.f32 %v2039, 0.0
  %v2046 = vmax.f32 %v2040, 0.0
  %v2047 = vmin.f32 %v2041, 6.0
  %v2048 = vmin.f32 %v2042, 6.0
  %v2049 = vmin.f32 %v2043, 6.0
  %v2050 = vmin.f32 %v2044, 6.0
  %v2051 = vmin.f32 %v2045, 6.0
  %v2052 = vmin.f32 %v2046, 6.0
  %v2053 = vpack.c.bf16 %v2049, %v2047
  %v2054 = vpack.c.bf16 %v2050, %v2048
  %v2055 = vpack.c.bf16 %v2051, %v2051
  %v2056 = vpack.c.bf16 %v2052, %v2052
  %v2058 = vand.u32 %v2055, %v1949
  %v2061 = vand.u32 %v2056, %v1949
  %2063 = vmatprep.subr.bf16.mxu0 0
  %2064 = vmatpush1.bf16.msra.mxu0 0
  %2065 = vmatprep.subr.bf16.mxu0 0
  %2066 = vmatpush1.bf16.msra.mxu0 0
  %2067 = vmatprep.subr.bf16.mxu0 0
  %2068 = vmatpush1.bf16.msra.mxu0 0
  %2069 = vmatprep.subr.bf16.mxu0 0
  %2070 = vmatpush1.bf16.msra.mxu0 0
  %2071 = vmatprep.subr.bf16.mxu0 0
  %2072 = vmatpush1.bf16.msra.mxu0 0
  %2073 = vmatprep.subr.bf16.mxu0 0
  %2074 = vmatpush1.bf16.msra.mxu0 0
  %2075 = vmatprep.subr.bf16.mxu0 %v2061
  %2076 = vmatpush1.bf16.msra.mxu0 %v2058
  %2077 = vmatprep.subr.bf16.mxu0 %v2054
  %2078 = vmatpush1.bf16.msra.mxu0 %v2053
  %2079 = vmatprep.subr.bf16.mxu0 0
  %2080 = vmatpush2.bf16.msra.mxu0 0
  %2081 = vmatprep.subr.bf16.mxu0 0
  %2082 = vmatpush2.bf16.msra.mxu0 0
  %2083 = vmatprep.subr.bf16.mxu0 0
  %2084 = vmatpush2.bf16.msra.mxu0 0
  %2085 = vmatprep.subr.bf16.mxu0 0
  %2086 = vmatpush2.bf16.msra.mxu0 0
  %2087 = vmatprep.subr.bf16.mxu0 0
  %2088 = vmatpush2.bf16.msra.mxu0 0
  %2089 = vmatprep.subr.bf16.mxu0 0
  %2090 = vmatpush2.bf16.msra.mxu0 0
  %2091 = vmatprep.subr.bf16.mxu0 0
  %2092 = vmatpush2.bf16.msra.mxu0 0
  %2093 = vmatprep.subr.bf16.mxu0 0
  %2094 = vmatpush2.bf16.msra.mxu0 0
  %2095 = vmatprep.mubr.bf16.mxu0 0
  %2096 = vmatmul.mubr.bf16.gmra.mxu0 %v1935
  %v2097 = vpop.f32.mrf.mxu0
  %v2098 = vadd.f32 0.0, %v2097
  %v2099 = vpop.f32.mrf.mxu0
  %v2100 = vadd.f32 0.0, %v2099
  %v2101 = vpop.f32.mrf.mxu0
  %v2102 = vadd.f32 0.0, %v2101
  %v2103 = vpop.f32.mrf.mxu0
  %v2104 = vadd.f32 0.0, %v2103
  %2105 = vmatprep.mubr.bf16.mxu0 0
  %2106 = vmatmul.mubr.bf16.gmra.mxu0 %v1938
  %v2107 = vpop.f32.mrf.mxu0
  %v2108 = vadd.f32 0.0, %v2107
  %v2109 = vpop.f32.mrf.mxu0
  %v2110 = vadd.f32 0.0, %v2109
  %v2111 = vpop.f32.mrf.mxu0
  %v2112 = vadd.f32 0.0, %v2111
  %v2113 = vpop.f32.mrf.mxu0
  %v2114 = vadd.f32 0.0, %v2113
  %2115 = vmatprep.mubr.bf16.mxu0 0
  %2116 = vmatmul.mubr.bf16.gmra.mxu0 %v1941
  %v2117 = vpop.f32.mrf.mxu0
  %v2118 = vadd.f32 0.0, %v2117
  %v2119 = vpop.f32.mrf.mxu0
  %v2120 = vadd.f32 0.0, %v2119
  %v2121 = vpop.f32.mrf.mxu0
  %v2122 = vadd.f32 0.0, %v2121
  %v2123 = vpop.f32.mrf.mxu0
  %v2124 = vadd.f32 0.0, %v2123
  %2125 = vmatprep.mubr.bf16.mxu0 0
  %2126 = vmatmul.mubr.bf16.gmra.mxu0 %v1944
  %v2127 = vpop.f32.mrf.mxu0
  %v2128 = vadd.f32 0.0, %v2127
  %v2129 = vpop.f32.mrf.mxu0
  %v2130 = vadd.f32 0.0, %v2129
  %v2131 = vpop.f32.mrf.mxu0
  %v2132 = vadd.f32 0.0, %v2131
  %v2133 = vpop.f32.mrf.mxu0
  %v2134 = vadd.f32 0.0, %v2133
  %2135 = vdwg.mxu0
  %v2136 = vadd.f32 %v1991, %v1993
  %2137 = vadd.xlane.f32.xlu0 %v2136
  %v2138 = vpop.xlane.xlu0 %2137
  %v2139 = vadd.f32 %v1995, %v1997
  %2140 = vadd.xlane.f32.xlu0 %v2139
  %v2141 = vpop.xlane.xlu0 %2140
  %v2142 = vadd.f32 %v2001, %v2003
  %2143 = vadd.xlane.f32.xlu0 %v2142
  %v2144 = vpop.xlane.xlu0 %2143
  %v2145 = vadd.f32 %v2005, %v2007
  %2146 = vadd.xlane.f32.xlu0 %v2145
  %v2147 = vpop.xlane.xlu0 %2146
  %v2148 = vadd.f32 %v2011, %v2013
  %2149 = vadd.xlane.f32.xlu0 %v2148
  %v2150 = vpop.xlane.xlu0 %2149
  %v2151 = vadd.f32 %v2015, %v2017
  %2152 = vadd.xlane.f32.xlu0 %v2151
  %v2153 = vpop.xlane.xlu0 %2152
  %v2154 = vadd.f32 %v2021, %v2023
  %2155 = vadd.xlane.f32.xlu0 %v2154
  %v2156 = vpop.xlane.xlu0 %2155
  %v2157 = vadd.f32 %v2025, %v2027
  %2158 = vadd.xlane.f32.xlu0 %v2157
  %v2159 = vpop.xlane.xlu0 %2158
  %v2160 = vadd.f32 %v2138, 0.0
  %v2161 = vadd.f32 %v2141, 0.0
  %v2162 = vadd.f32 %v2144, 0.0
  %v2163 = vadd.f32 %v2147, 0.0
  %v2164 = vadd.f32 %v2150, 0.0
  %v2165 = vadd.f32 %v2153, 0.0
  %v2166 = vadd.f32 %v2156, 0.0
  %v2167 = vadd.f32 %v2159, 0.0
  %v2168 = vadd.f32 %v2098, %v2100
  %2169 = vadd.xlane.f32.xlu0 %v2168
  %v2170 = vpop.xlane.xlu0 %2169
  %v2171 = vadd.f32 %v2102, %v2104
  %2172 = vadd.xlane.f32.xlu0 %v2171
  %v2173 = vpop.xlane.xlu0 %2172
  %v2174 = vadd.f32 %v2108, %v2110
  %2175 = vadd.xlane.f32.xlu0 %v2174
  %v2176 = vpop.xlane.xlu0 %2175
  %v2177 = vadd.f32 %v2112, %v2114
  %2178 = vadd.xlane.f32.xlu0 %v2177
  %v2179 = vpop.xlane.xlu0 %2178
  %v2180 = vadd.f32 %v2118, %v2120
  %2181 = vadd.xlane.f32.xlu0 %v2180
  %v2182 = vpop.xlane.xlu0 %2181
  %v2183 = vadd.f32 %v2122, %v2124
  %2184 = vadd.xlane.f32.xlu0 %v2183
  %v2185 = vpop.xlane.xlu0 %2184
  %v2186 = vadd.f32 %v2128, %v2130
  %2187 = vadd.xlane.f32.xlu0 %v2186
  %v2188 = vpop.xlane.xlu0 %2187
  %v2189 = vadd.f32 %v2132, %v2134
  %2190 = vadd.xlane.f32.xlu0 %v2189
  %v2191 = vpop.xlane.xlu0 %2190
  %v2192 = vadd.f32 %v2160, %v2170
  %v2193 = vadd.f32 %v2161, %v2173
  %v2194 = vadd.f32 %v2162, %v2176
  %v2195 = vadd.f32 %v2163, %v2179
  %v2196 = vadd.f32 %v2164, %v2182
  %v2197 = vadd.f32 %v2165, %v2185
  %v2198 = vadd.f32 %v2166, %v2188
  %v2199 = vadd.f32 %v2167, %v2191
  %v2200 = vmul.f32 %v2192, 0.001953125
  %v2201 = vmul.f32 %v2193, 0.001953125
  %v2202 = vmul.f32 %v2194, 0.001953125
  %v2203 = vmul.f32 %v2195, 0.001953125
  %v2204 = vmul.f32 %v2196, 0.001953125
  %v2205 = vmul.f32 %v2197, 0.001953125
  %v2206 = vmul.f32 %v2198, 0.001953125
  %v2207 = vmul.f32 %v2199, 0.001953125
  %v2208 = vsub.f32 %v1991, %v2200
  %v2209 = vsub.f32 %v1993, %v2200
  %v2210 = vsub.f32 %v1995, %v2201
  %v2211 = vsub.f32 %v1997, %v2201
  %v2212 = vsub.f32 %v2001, %v2202
  %v2213 = vsub.f32 %v2003, %v2202
  %v2214 = vsub.f32 %v2005, %v2203
  %v2215 = vsub.f32 %v2007, %v2203
  %v2216 = vsub.f32 %v2011, %v2204
  %v2217 = vsub.f32 %v2013, %v2204
  %v2218 = vsub.f32 %v2015, %v2205
  %v2219 = vsub.f32 %v2017, %v2205
  %v2220 = vsub.f32 %v2021, %v2206
  %v2221 = vsub.f32 %v2023, %v2206
  %v2222 = vsub.f32 %v2025, %v2207
  %v2223 = vsub.f32 %v2027, %v2207
  %v2224 = vmul.f32 %v2208, %v2208
  %v2225 = vmul.f32 %v2209, %v2209
  %v2226 = vmul.f32 %v2210, %v2210
  %v2227 = vmul.f32 %v2211, %v2211
  %v2228 = vmul.f32 %v2212, %v2212
  %v2229 = vmul.f32 %v2213, %v2213
  %v2230 = vmul.f32 %v2214, %v2214
  %v2231 = vmul.f32 %v2215, %v2215
  %v2232 = vmul.f32 %v2216, %v2216
  %v2233 = vmul.f32 %v2217, %v2217
  %v2234 = vmul.f32 %v2218, %v2218
  %v2235 = vmul.f32 %v2219, %v2219
  %v2236 = vmul.f32 %v2220, %v2220
  %v2237 = vmul.f32 %v2221, %v2221
  %v2238 = vmul.f32 %v2222, %v2222
  %v2239 = vmul.f32 %v2223, %v2223
  %v2240 = vadd.f32 %v2224, %v2225
  %2241 = vadd.xlane.f32.xlu0 %v2240
  %v2242 = vpop.xlane.xlu0 %2241
  %v2243 = vadd.f32 %v2226, %v2227
  %2244 = vadd.xlane.f32.xlu0 %v2243
  %v2245 = vpop.xlane.xlu0 %2244
  %v2246 = vadd.f32 %v2228, %v2229
  %2247 = vadd.xlane.f32.xlu0 %v2246
  %v2248 = vpop.xlane.xlu0 %2247
  %v2249 = vadd.f32 %v2230, %v2231
  %2250 = vadd.xlane.f32.xlu0 %v2249
  %v2251 = vpop.xlane.xlu0 %2250
  %v2252 = vadd.f32 %v2232, %v2233
  %2253 = vadd.xlane.f32.xlu0 %v2252
  %v2254 = vpop.xlane.xlu0 %2253
  %v2255 = vadd.f32 %v2234, %v2235
  %2256 = vadd.xlane.f32.xlu0 %v2255
  %v2257 = vpop.xlane.xlu0 %2256
  %v2258 = vadd.f32 %v2236, %v2237
  %2259 = vadd.xlane.f32.xlu0 %v2258
  %v2260 = vpop.xlane.xlu0 %2259
  %v2261 = vadd.f32 %v2238, %v2239
  %2262 = vadd.xlane.f32.xlu0 %v2261
  %v2263 = vpop.xlane.xlu0 %2262
  %v2264 = vadd.f32 %v2242, 0.0
  %v2265 = vadd.f32 %v2245, 0.0
  %v2266 = vadd.f32 %v2248, 0.0
  %v2267 = vadd.f32 %v2251, 0.0
  %v2268 = vadd.f32 %v2254, 0.0
  %v2269 = vadd.f32 %v2257, 0.0
  %v2270 = vadd.f32 %v2260, 0.0
  %v2271 = vadd.f32 %v2263, 0.0
  %v2272 = vsub.f32 %v2098, %v2200
  %v2273 = vsub.f32 %v2100, %v2200
  %v2274 = vsub.f32 %v2102, %v2201
  %v2275 = vsub.f32 %v2104, %v2201
  %v2276 = vsub.f32 %v2108, %v2202
  %v2277 = vsub.f32 %v2110, %v2202
  %v2278 = vsub.f32 %v2112, %v2203
  %v2279 = vsub.f32 %v2114, %v2203
  %v2280 = vsub.f32 %v2118, %v2204
  %v2281 = vsub.f32 %v2120, %v2204
  %v2282 = vsub.f32 %v2122, %v2205
  %v2283 = vsub.f32 %v2124, %v2205
  %v2284 = vsub.f32 %v2128, %v2206
  %v2285 = vsub.f32 %v2130, %v2206
  %v2286 = vsub.f32 %v2132, %v2207
  %v2287 = vsub.f32 %v2134, %v2207
  %v2288 = vmul.f32 %v2272, %v2272
  %v2289 = vmul.f32 %v2273, %v2273
  %v2290 = vmul.f32 %v2274, %v2274
  %v2291 = vmul.f32 %v2275, %v2275
  %v2292 = vmul.f32 %v2276, %v2276
  %v2293 = vmul.f32 %v2277, %v2277
  %v2294 = vmul.f32 %v2278, %v2278
  %v2295 = vmul.f32 %v2279, %v2279
  %v2296 = vmul.f32 %v2280, %v2280
  %v2297 = vmul.f32 %v2281, %v2281
  %v2298 = vmul.f32 %v2282, %v2282
  %v2299 = vmul.f32 %v2283, %v2283
  %v2300 = vmul.f32 %v2284, %v2284
  %v2301 = vmul.f32 %v2285, %v2285
  %v2302 = vmul.f32 %v2286, %v2286
  %v2303 = vmul.f32 %v2287, %v2287
  %v2304 = vadd.f32 %v2288, %v2289
  %2305 = vadd.xlane.f32.xlu0 %v2304
  %v2306 = vpop.xlane.xlu0 %2305
  %v2307 = vadd.f32 %v2290, %v2291
  %2308 = vadd.xlane.f32.xlu0 %v2307
  %v2309 = vpop.xlane.xlu0 %2308
  %v2310 = vadd.f32 %v2292, %v2293
  %2311 = vadd.xlane.f32.xlu0 %v2310
  %v2312 = vpop.xlane.xlu0 %2311
  %v2313 = vadd.f32 %v2294, %v2295
  %2314 = vadd.xlane.f32.xlu0 %v2313
  %v2315 = vpop.xlane.xlu0 %2314
  %v2316 = vadd.f32 %v2296, %v2297
  %2317 = vadd.xlane.f32.xlu0 %v2316
  %v2318 = vpop.xlane.xlu0 %2317
  %v2319 = vadd.f32 %v2298, %v2299
  %2320 = vadd.xlane.f32.xlu0 %v2319
  %v2321 = vpop.xlane.xlu0 %2320
  %v2322 = vadd.f32 %v2300, %v2301
  %2323 = vadd.xlane.f32.xlu0 %v2322
  %v2324 = vpop.xlane.xlu0 %2323
  %v2325 = vadd.f32 %v2302, %v2303
  %2326 = vadd.xlane.f32.xlu0 %v2325
  %v2327 = vpop.xlane.xlu0 %2326
  %v2328 = vadd.f32 %v2264, %v2306
  %v2329 = vadd.f32 %v2265, %v2309
  %v2330 = vadd.f32 %v2266, %v2312
  %v2331 = vadd.f32 %v2267, %v2315
  %v2332 = vadd.f32 %v2268, %v2318
  %v2333 = vadd.f32 %v2269, %v2321
  %v2334 = vadd.f32 %v2270, %v2324
  %v2335 = vadd.f32 %v2271, %v2327
  %v2336 = vmul.f32 %v2328, 0.001953125
  %v2337 = vmul.f32 %v2329, 0.001953125
  %v2338 = vmul.f32 %v2330, 0.001953125
  %v2339 = vmul.f32 %v2331, 0.001953125
  %v2340 = vmul.f32 %v2332, 0.001953125
  %v2341 = vmul.f32 %v2333, 0.001953125
  %v2342 = vmul.f32 %v2334, 0.001953125
  %v2343 = vmul.f32 %v2335, 0.001953125
  %v2344 = vld [vmem:[%s10] sm:$0xff]
  %v2345 = vld [vmem:[%s10 + $0x8] sm:$0xff]
  %v2346 = vld [vmem:[%s10 + $0x10] sm:$0xff]
  %v2347 = vld [vmem:[%s10 + $0x18] sm:$0xff]
  %v2348 = vld [vmem:[%s10 + $0x20] sm:$0xff]
  %v2349 = vld [vmem:[%s10 + $0x28] sm:$0xff]
  %v2350 = vld [vmem:[%s10 + $0x30] sm:$0xff]
  %v2351 = vld [vmem:[%s10 + $0x38] sm:$0xff]
  %v2352 = vadd.f32 %v2336, 1e-05
  %v2353 = vadd.f32 %v2337, 1e-05
  %v2354 = vadd.f32 %v2338, 1e-05
  %v2355 = vadd.f32 %v2339, 1e-05
  %v2356 = vadd.f32 %v2340, 1e-05
  %v2357 = vadd.f32 %v2341, 1e-05
  %v2358 = vadd.f32 %v2342, 1e-05
  %v2359 = vadd.f32 %v2343, 1e-05
  %v2360 = vrsqrt.pop %v2352
  %v2361 = vrsqrt.pop %v2353
  %v2362 = vrsqrt.pop %v2354
  %v2363 = vrsqrt.pop %v2355
  %v2364 = vrsqrt.pop %v2356
  %v2365 = vrsqrt.pop %v2357
  %v2366 = vrsqrt.pop %v2358
  %v2367 = vrsqrt.pop %v2359
  %v2368 = vmul.f32 %v2344, %v2360
  %v2369 = vmul.f32 %v2345, %v2361
  %v2370 = vmul.f32 %v2346, %v2362
  %v2371 = vmul.f32 %v2347, %v2363
  %v2372 = vmul.f32 %v2348, %v2364
  %v2373 = vmul.f32 %v2349, %v2365
  %v2374 = vmul.f32 %v2350, %v2366
  %v2375 = vmul.f32 %v2351, %v2367
  %s2376 = scalar_lea.vmem %s10, 64
  %v2377 = vld [vmem:[%s2376] sm:$0xff]
  %v2378 = vld [vmem:[%s2376 + $0x8] sm:$0xff]
  %v2379 = vld [vmem:[%s2376 + $0x10] sm:$0xff]
  %v2380 = vld [vmem:[%s2376 + $0x18] sm:$0xff]
  %v2381 = vld [vmem:[%s2376 + $0x20] sm:$0xff]
  %v2382 = vld [vmem:[%s2376 + $0x28] sm:$0xff]
  %v2383 = vld [vmem:[%s2376 + $0x30] sm:$0xff]
  %v2384 = vld [vmem:[%s2376 + $0x38] sm:$0xff]
  %v2385 = vmul.f32 %v2200, %v2368
  %v2386 = vmul.f32 %v2201, %v2369
  %v2387 = vmul.f32 %v2202, %v2370
  %v2388 = vmul.f32 %v2203, %v2371
  %v2389 = vmul.f32 %v2204, %v2372
  %v2390 = vmul.f32 %v2205, %v2373
  %v2391 = vmul.f32 %v2206, %v2374
  %v2392 = vmul.f32 %v2207, %v2375
  %v2393 = vsub.f32 %v2377, %v2385
  %v2394 = vsub.f32 %v2378, %v2386
  %v2395 = vsub.f32 %v2379, %v2387
  %v2396 = vsub.f32 %v2380, %v2388
  %v2397 = vsub.f32 %v2381, %v2389
  %v2398 = vsub.f32 %v2382, %v2390
  %v2399 = vsub.f32 %v2383, %v2391
  %v2400 = vsub.f32 %v2384, %v2392
  %2402 = vset.pattern.permute.xlu0 0
  %2403 = vperm.xlu0 %2402, %v2368
  %v2404 = vpop.permute.xlu0 %2403
  %2407 = vset.pattern.permute.xlu0 0
  %2408 = vperm.xlu0 %2407, %v2369
  %v2409 = vpop.permute.xlu0 %2408
  %2412 = vset.pattern.permute.xlu0 0
  %2413 = vperm.xlu0 %2412, %v2370
  %v2414 = vpop.permute.xlu0 %2413
  %2417 = vset.pattern.permute.xlu0 0
  %2418 = vperm.xlu0 %2417, %v2371
  %v2419 = vpop.permute.xlu0 %2418
  %2422 = vset.pattern.permute.xlu0 0
  %2423 = vperm.xlu0 %2422, %v2372
  %v2424 = vpop.permute.xlu0 %2423
  %2427 = vset.pattern.permute.xlu0 0
  %2428 = vperm.xlu0 %2427, %v2373
  %v2429 = vpop.permute.xlu0 %2428
  %2432 = vset.pattern.permute.xlu0 0
  %2433 = vperm.xlu0 %2432, %v2374
  %v2434 = vpop.permute.xlu0 %2433
  %2437 = vset.pattern.permute.xlu0 0
  %2438 = vperm.xlu0 %2437, %v2375
  %v2439 = vpop.permute.xlu0 %2438
  %v2441 = vmul.f32 %v1991, %v2404
  %v2442 = vmul.f32 %v1993, %v2404
  %v2443 = vmul.f32 %v1995, %v2409
  %v2444 = vmul.f32 %v1997, %v2409
  %v2445 = vmul.f32 %v2001, %v2414
  %v2446 = vmul.f32 %v2003, %v2414
  %v2447 = vmul.f32 %v2005, %v2419
  %v2448 = vmul.f32 %v2007, %v2419
  %v2449 = vmul.f32 %v2011, %v2424
  %v2450 = vmul.f32 %v2013, %v2424
  %v2451 = vmul.f32 %v2015, %v2429
  %v2452 = vmul.f32 %v2017, %v2429
  %v2453 = vmul.f32 %v2021, %v2434
  %v2454 = vmul.f32 %v2023, %v2434
  %v2455 = vmul.f32 %v2025, %v2439
  %v2456 = vmul.f32 %v2027, %v2439
  %2458 = vset.pattern.permute.xlu0 0
  %2459 = vperm.xlu0 %2458, %v2393
  %v2460 = vpop.permute.xlu0 %2459
  %2463 = vset.pattern.permute.xlu0 0
  %2464 = vperm.xlu0 %2463, %v2394
  %v2465 = vpop.permute.xlu0 %2464
  %2468 = vset.pattern.permute.xlu0 0
  %2469 = vperm.xlu0 %2468, %v2395
  %v2470 = vpop.permute.xlu0 %2469
  %2473 = vset.pattern.permute.xlu0 0
  %2474 = vperm.xlu0 %2473, %v2396
  %v2475 = vpop.permute.xlu0 %2474
  %2478 = vset.pattern.permute.xlu0 0
  %2479 = vperm.xlu0 %2478, %v2397
  %v2480 = vpop.permute.xlu0 %2479
  %2483 = vset.pattern.permute.xlu0 0
  %2484 = vperm.xlu0 %2483, %v2398
  %v2485 = vpop.permute.xlu0 %2484
  %2488 = vset.pattern.permute.xlu0 0
  %2489 = vperm.xlu0 %2488, %v2399
  %v2490 = vpop.permute.xlu0 %2489
  %2493 = vset.pattern.permute.xlu0 0
  %2494 = vperm.xlu0 %2493, %v2400
  %v2495 = vpop.permute.xlu0 %2494
  %v2497 = vadd.f32 %v2441, %v2460
  %v2498 = vadd.f32 %v2442, %v2460
  %v2499 = vadd.f32 %v2443, %v2465
  %v2500 = vadd.f32 %v2444, %v2465
  %v2501 = vadd.f32 %v2445, %v2470
  %v2502 = vadd.f32 %v2446, %v2470
  %v2503 = vadd.f32 %v2447, %v2475
  %v2504 = vadd.f32 %v2448, %v2475
  %v2505 = vadd.f32 %v2449, %v2480
  %v2506 = vadd.f32 %v2450, %v2480
  %v2507 = vadd.f32 %v2451, %v2485
  %v2508 = vadd.f32 %v2452, %v2485
  %v2509 = vadd.f32 %v2453, %v2490
  %v2510 = vadd.f32 %v2454, %v2490
  %v2511 = vadd.f32 %v2455, %v2495
  %v2512 = vadd.f32 %v2456, %v2495
  %2513 = vst [vmem:[%s11] sm:$0xff] %v2497
  %2514 = vst [vmem:[%s11 + $0x8] sm:$0xff] %v2498
  %2515 = vst [vmem:[%s11 + $0x10] sm:$0xff] %v2499
  %2516 = vst [vmem:[%s11 + $0x18] sm:$0xff] %v2500
  %2517 = vst [vmem:[%s11 + $0x20] sm:$0xff] %v2501
  %2518 = vst [vmem:[%s11 + $0x28] sm:$0xff] %v2502
  %2519 = vst [vmem:[%s11 + $0x30] sm:$0xff] %v2503
  %2520 = vst [vmem:[%s11 + $0x38] sm:$0xff] %v2504
  %2521 = vst [vmem:[%s11 + $0x40] sm:$0xff] %v2505
  %2522 = vst [vmem:[%s11 + $0x48] sm:$0xff] %v2506
  %2523 = vst [vmem:[%s11 + $0x50] sm:$0xff] %v2507
  %2524 = vst [vmem:[%s11 + $0x58] sm:$0xff] %v2508
  %2525 = vst [vmem:[%s11 + $0x60] sm:$0xff] %v2509
  %2526 = vst [vmem:[%s11 + $0x68] sm:$0xff] %v2510
  %2527 = vst [vmem:[%s11 + $0x70] sm:$0xff] %v2511
  %2528 = vst [vmem:[%s11 + $0x78] sm:$0xff] %v2512
  %v2529 = vmul.f32 %v2098, %v2404
  %v2530 = vmul.f32 %v2100, %v2404
  %v2531 = vmul.f32 %v2102, %v2409
  %v2532 = vmul.f32 %v2104, %v2409
  %v2533 = vmul.f32 %v2108, %v2414
  %v2534 = vmul.f32 %v2110, %v2414
  %v2535 = vmul.f32 %v2112, %v2419
  %v2536 = vmul.f32 %v2114, %v2419
  %v2537 = vmul.f32 %v2118, %v2424
  %v2538 = vmul.f32 %v2120, %v2424
  %v2539 = vmul.f32 %v2122, %v2429
  %v2540 = vmul.f32 %v2124, %v2429
  %v2541 = vmul.f32 %v2128, %v2434
  %v2542 = vmul.f32 %v2130, %v2434
  %v2543 = vmul.f32 %v2132, %v2439
  %v2544 = vmul.f32 %v2134, %v2439
  %v2545 = vadd.f32 %v2529, %v2460
  %v2546 = vadd.f32 %v2530, %v2460
  %v2547 = vadd.f32 %v2531, %v2465
  %v2548 = vadd.f32 %v2532, %v2465
  %v2549 = vadd.f32 %v2533, %v2470
  %v2550 = vadd.f32 %v2534, %v2470
  %v2551 = vadd.f32 %v2535, %v2475
  %v2552 = vadd.f32 %v2536, %v2475
  %v2553 = vadd.f32 %v2537, %v2480
  %v2554 = vadd.f32 %v2538, %v2480
  %v2555 = vadd.f32 %v2539, %v2485
  %v2556 = vadd.f32 %v2540, %v2485
  %v2557 = vadd.f32 %v2541, %v2490
  %v2558 = vadd.f32 %v2542, %v2490
  %v2559 = vadd.f32 %v2543, %v2495
  %v2560 = vadd.f32 %v2544, %v2495
  %s2561 = scalar_lea.vmem %s11, 128
  %2562 = vst [vmem:[%s2561] sm:$0xff] %v2545
  %2563 = vst [vmem:[%s2561 + $0x8] sm:$0xff] %v2546
  %2564 = vst [vmem:[%s2561 + $0x10] sm:$0xff] %v2547
  %2565 = vst [vmem:[%s2561 + $0x18] sm:$0xff] %v2548
  %2566 = vst [vmem:[%s2561 + $0x20] sm:$0xff] %v2549
  %2567 = vst [vmem:[%s2561 + $0x28] sm:$0xff] %v2550
  %2568 = vst [vmem:[%s2561 + $0x30] sm:$0xff] %v2551
  %2569 = vst [vmem:[%s2561 + $0x38] sm:$0xff] %v2552
  %2570 = vst [vmem:[%s2561 + $0x40] sm:$0xff] %v2553
  %2571 = vst [vmem:[%s2561 + $0x48] sm:$0xff] %v2554
  %2572 = vst [vmem:[%s2561 + $0x50] sm:$0xff] %v2555
  %2573 = vst [vmem:[%s2561 + $0x58] sm:$0xff] %v2556
  %2574 = vst [vmem:[%s2561 + $0x60] sm:$0xff] %v2557
  %2575 = vst [vmem:[%s2561 + $0x68] sm:$0xff] %v2558
  %2576 = vst [vmem:[%s2561 + $0x70] sm:$0xff] %v2559
  %2577 = vst [vmem:[%s2561 + $0x78] sm:$0xff] %v2560
  // Predicated region
  $region46: #{decoder_block_pallas.1} parent=0 // pred_check
    _
  $region47: #{decoder_block_pallas.1} parent=0 // pred_check_branch
    %2579 = sbr.rel (0) target = $region49
  $region48: #{decoder_block_pallas.1} parent=0 // pred_region
    _
  $region49: #{decoder_block_pallas.1} parent=0 // pred_fallthru
    _
  // Predicated region
  $region50: #{decoder_block_pallas.1} parent=0 // pred_check
    _
  $region51: #{decoder_block_pallas.1} parent=0 // pred_check_branch
    %2581 = sbr.rel (0) target = $region53
  $region52: #{decoder_block_pallas.1} parent=0 // pred_region
    _
  $region53: #{decoder_block_pallas.1} parent=0 // pred_fallthru
    _

</llo_original>
